<compile_context>
chip_gen: v6e
topology: v6e:2x2x1
jax: 0.10.0
libtpu: 0.0.40
codegen_flags: <defaults>
</compile_context>

<pallas_src>
import functools

import jax
import jax.numpy as jnp
from jax.experimental import pallas as pl
from jax.experimental.pallas import tpu as pltpu

# Hyperparameters from the PyTorch file.
HIDDENS = 6
INPUTS = 4
LAYERS = 2        # hard-coded as two explicit LSTM layers in the kernel
OUTPUTS = 1
FC1_DIM = 128

# Padded layout constants.
GP = 128          # lane stripe per gate (vreg-aligned slices)
NG = 4            # i, f, o, g  (sigmoid gates first, tanh gate last)
G4 = NG * GP      # padded gate width = 512
BP = 8            # batch rows padded to one full sublane tile per timestep


def _cell(gates, c):
    """LSTM cell update from (BP, G4) pre-activations (i,f,o,g stripes)."""
    sg = jax.nn.sigmoid(gates[:, :3 * GP])      # one EUP stripe covers i, f, o
    gg = jnp.tanh(gates[:, 3 * GP:])            # g stripe
    i_g = sg[:, 0:GP]                           # vreg-aligned stripe selects
    f_g = sg[:, GP:2 * GP]
    o_g = sg[:, 2 * GP:3 * GP]
    c_new = f_g * c + i_g * gg
    h_new = o_g * jnp.tanh(c_new)
    return h_new, c_new


def _netz_kernel(x_ref,                         # (T*BP, I) time-major, batch padded
                 wih0_ref, whh0_ref, b0_ref,    # (I, G4), (GP, G4), (1, G4)
                 wk1_ref, b1_ref,               # (2*GP, G4) = [wih1; whh1], (1, G4)
                 w1_ref, bf1_ref,               # (GP, FC1), (1, FC1)
                 w2_ref, bf2_ref,               # (FC1, GP) col 0 = fc2 weight, (1, 1)
                 out_ref,                       # (T*BP, GP); result lives in lane 0
                 *, T):
    f32 = jnp.float32

    # Layer-0 input projection hoisted out of the time loop: one batched MXU pass.
    xg0 = jnp.dot(x_ref[...], wih0_ref[...], preferred_element_type=f32) + b0_ref[...]

    whh0 = whh0_ref[...]
    wk1 = wk1_ref[...]
    b1b = jnp.broadcast_to(b1_ref[...], (BP, G4))   # hoisted; no per-step broadcast

    h0 = jnp.zeros((BP, GP), f32)
    c0 = jnp.zeros((BP, GP), f32)
    h1 = jnp.zeros((BP, GP), f32)
    c1 = jnp.zeros((BP, GP), f32)
    h1_steps = []                                   # per-step hidden states, in vregs

    # Wavefront: iteration s computes layer-0 step s and layer-1 step s-1.
    # Both read only state produced before iteration s, so the two per-step
    # serial chains are independent and overlap.
    for s in range(T + 1):                          # static unroll (T small)
        h0_new, c0_new = h0, c0
        if s < T:
            g0 = xg0[s * BP:(s + 1) * BP, :] + jnp.dot(
                h0, whh0, preferred_element_type=f32)            # (BP, G4)
            h0_new, c0_new = _cell(g0, c0)
        if s >= 1:
            # Layer-1 input projection folded into the recurrent matmul:
            # [h0_{s-1}, h1_{s-2}] @ [wih1; whh1]  -- one MXU push, K = 256.
            lhs = jnp.concatenate([h0, h1], axis=1)              # (BP, 2*GP)
            g1 = jnp.dot(lhs, wk1, preferred_element_type=f32) + b1b
            h1, c1 = _cell(g1, c1)
            h1_steps.append(h1)
        h0, c0 = h0_new, c0_new

    # Head on all (t, b) rows at once: ReLU -> fc1 -> ReLU -> fc2 (all MXU).
    h1_all = jnp.concatenate(h1_steps, axis=0)                   # (T*BP, GP)
    hid = jnp.maximum(h1_all, 0.0)
    a1 = jnp.dot(hid, w1_ref[...], preferred_element_type=f32) + bf1_ref[...]
    a1 = jnp.maximum(a1, 0.0)                                    # (T*BP, 128)
    out = jnp.dot(a1, w2_ref[...], preferred_element_type=f32) + bf2_ref[...]
    out_ref[...] = out                                           # lane-dense store


def _pack_gate_cols(w):
    """(in_dim, 4H) torch gate order i,f,g,o -> (in_dim, G4) stripes i,f,o,g."""
    H = HIDDENS
    i, f, g, o = (w[:, k * H:(k + 1) * H] for k in range(4))
    stripes = [jnp.pad(blk, ((0, 0), (0, GP - H))) for blk in (i, f, o, g)]
    return jnp.concatenate(stripes, axis=1)


def _pad_rows(w, rows):
    return jnp.pad(w, ((0, rows - w.shape[0]), (0, 0)))


def pack_params(params):
    """One-time repack of torch-layout parameters into the kernel layout.

    All pads are exact zeros (required: zero pad rows/lanes keep padded gate
    lanes and padded contraction rows inert).
    """
    f32 = jnp.float32
    wih0 = _pack_gate_cols(params["wih0"].T.astype(f32))                    # (I, G4)
    whh0 = _pad_rows(_pack_gate_cols(params["whh0"].T.astype(f32)), GP)     # (GP, G4)
    b0 = _pack_gate_cols((params["bih0"] + params["bhh0"]).reshape(1, -1).astype(f32))
    wih1 = _pad_rows(_pack_gate_cols(params["wih1"].T.astype(f32)), GP)     # (GP, G4)
    whh1 = _pad_rows(_pack_gate_cols(params["whh1"].T.astype(f32)), GP)     # (GP, G4)
    wk1 = jnp.concatenate([wih1, whh1], axis=0)                             # (2GP, G4)
    b1 = _pack_gate_cols((params["bih1"] + params["bhh1"]).reshape(1, -1).astype(f32))
    w1 = _pad_rows(params["w_fc1"].T.astype(f32), GP)                       # (GP, 128)
    bf1 = params["b_fc1"].reshape(1, -1).astype(f32)                        # (1, 128)
    w2 = jnp.pad(params["w_fc2"].T.astype(f32),
                 ((0, 0), (0, GP - OUTPUTS)))                               # (128, GP)
    bf2 = params["b_fc2"].reshape(1, 1).astype(f32)                         # (1, 1)
    return dict(wih0=wih0, whh0=whh0, b0=b0, wk1=wk1, b1=b1,
                w1=w1, bf1=bf1, w2=w2, bf2=bf2)


@jax.jit
def netz_forward(x, packed):
    """x: (B, T, INPUTS) float32 -> (B*T, OUTPUTS) float32 (row = b*T + t)."""
    B, T, _ = x.shape
    assert B <= BP, "this small-batch kernel pads batch to 8 rows per step"

    # Time-major layout, batch padded to a full sublane tile (8 rows) per step
    # so every per-step slice inside the kernel is a whole (8,128) vreg tile.
    x_tm = jnp.transpose(x, (1, 0, 2)).astype(jnp.float32)          # (T, B, I)
    x_tm = jnp.pad(x_tm, ((0, 0), (0, BP - B), (0, 0))).reshape(T * BP, INPUTS)

    kernel = functools.partial(_netz_kernel, T=T)
    args = (x_tm, packed["wih0"], packed["whh0"], packed["b0"],
            packed["wk1"], packed["b1"], packed["w1"], packed["bf1"],
            packed["w2"], packed["bf2"])
    out_full = pl.pallas_call(
        kernel,
        out_shape=jax.ShapeDtypeStruct((T * BP, GP), jnp.float32),
        in_specs=[pl.BlockSpec(memory_space=pltpu.MemorySpace.VMEM)] * len(args),
        out_specs=pl.BlockSpec(memory_space=pltpu.MemorySpace.VMEM),
    )(*args)

    # Kernel rows are time-major (t*BP + b); fc2 result sits in lane 0.
    # Torch's output.view(-1, hiddens) ordering is (b*T + t).
    out = out_full[:, :OUTPUTS].reshape(T, BP, OUTPUTS)[:, :B, :]   # (T, B, 1)
    return out.transpose(1, 0, 2).reshape(B * T, OUTPUTS)


def init_params(key):
    """Deterministic synthetic parameters (PyTorch-like uniform init)."""
    H, I = HIDDENS, INPUTS
    ks = jax.random.split(key, 12)
    u = lambda k, shape, s: jax.random.uniform(k, shape, jnp.float32, -s, s)
    s_lstm = 1.0 / (H ** 0.5)
    s_fc1 = 1.0 / (H ** 0.5)
    s_fc2 = 1.0 / (FC1_DIM ** 0.5)
    return dict(
        wih0=u(ks[0], (4 * H, I), s_lstm),
        whh0=u(ks[1], (4 * H, H), s_lstm),
        bih0=u(ks[2], (4 * H,), s_lstm),
        bhh0=u(ks[3], (4 * H,), s_lstm),
        wih1=u(ks[4], (4 * H, H), s_lstm),
        whh1=u(ks[5], (4 * H, H), s_lstm),
        bih1=u(ks[6], (4 * H,), s_lstm),
        bhh1=u(ks[7], (4 * H,), s_lstm),
        w_fc1=u(ks[8], (FC1_DIM, H), s_fc1),
        b_fc1=u(ks[9], (FC1_DIM,), s_fc1),
        w_fc2=u(ks[10], (OUTPUTS, FC1_DIM), s_fc2),
        b_fc2=u(ks[11], (OUTPUTS,), s_fc2),
    )


def netz_reference(x, params):
    """Pure-JAX reference mirroring torch.nn.LSTM(num_layers=2) + fc stack."""
    B, T, _ = x.shape
    H = HIDDENS

    def cell(x_t, h, c, wih, whh, b):
        gates = x_t @ wih.T + h @ whh.T + b
        i = jax.nn.sigmoid(gates[:, :H])
        f = jax.nn.sigmoid(gates[:, H:2 * H])
        g = jnp.tanh(gates[:, 2 * H:3 * H])
        o = jax.nn.sigmoid(gates[:, 3 * H:])
        c = f * c + i * g
        h = o * jnp.tanh(c)
        return h, c

    h0 = c0 = h1 = c1 = jnp.zeros((B, H), jnp.float32)
    b0 = params["bih0"] + params["bhh0"]
    b1 = params["bih1"] + params["bhh1"]
    outs = []
    for t in range(T):
        h0, c0 = cell(x[:, t, :], h0, c0, params["wih0"], params["whh0"], b0)
        h1, c1 = cell(h0, h1, c1, params["wih1"], params["whh1"], b1)
        outs.append(h1)
    out = jnp.stack(outs, axis=1).reshape(B * T, H)   # == output.view(-1, H)
    out = jnp.maximum(out, 0.0)
    out = out @ params["w_fc1"].T + params["b_fc1"]
    out = jnp.maximum(out, 0.0)
    out = out @ params["w_fc2"].T + params["b_fc2"]
    return out


if __name__ == "__main__":
    key = jax.random.PRNGKey(0)
    k_param, k_x = jax.random.split(key)
    params = init_params(k_param)
    packed = pack_params(params)        # one-time weight repack, off the hot path

    B, T = 2, 8
    x = jax.random.normal(k_x, (B, T, INPUTS), dtype=jnp.float32)

    out = jax.block_until_ready(netz_forward(x, packed))
    ref = netz_reference(x, params)
    assert out.shape == (B * T, OUTPUTS), out.shape
    err = jnp.max(jnp.abs(out - ref))
    assert jnp.allclose(out, ref, atol=1e-5, rtol=1e-5), f"max abs err {err}"
    print("KERNEL_OK")
</pallas_src>

<mosaic_0001>
module attributes {stable_mosaic.version = 11 : i64} {
  func.func @_netz_kernel(%arg0: memref<64x4xf32, #tpu.memory_space<vmem>>, %arg1: memref<4x512xf32, #tpu.memory_space<vmem>>, %arg2: memref<128x512xf32, #tpu.memory_space<vmem>>, %arg3: memref<1x512xf32, #tpu.memory_space<vmem>>, %arg4: memref<256x512xf32, #tpu.memory_space<vmem>>, %arg5: memref<1x512xf32, #tpu.memory_space<vmem>>, %arg6: memref<128x128xf32, #tpu.memory_space<vmem>>, %arg7: memref<1x128xf32, #tpu.memory_space<vmem>>, %arg8: memref<128x128xf32, #tpu.memory_space<vmem>>, %arg9: memref<1x1xf32, #tpu.memory_space<vmem>>, %arg10: memref<64x128xf32, #tpu.memory_space<vmem>>) attributes {dimension_semantics = [], scalar_prefetch = 0 : i64, scratch_operands = 0 : i64, tpu.core_type = #tpu.core_type<tc>} {
    %c0 = arith.constant 0 : index
    %c0_0 = arith.constant 0 : index
    %0 = vector.load %arg0[%c0, %c0_0] : memref<64x4xf32, #tpu.memory_space<vmem>>, vector<64x4xf32>
    %c0_1 = arith.constant 0 : index
    %c0_2 = arith.constant 0 : index
    %1 = vector.load %arg1[%c0_1, %c0_2] : memref<4x512xf32, #tpu.memory_space<vmem>>, vector<4x512xf32>
    %cst = arith.constant dense<0.000000e+00> : vector<64x512xf32>
    %2 = tpu.matmul %0, %1, %cst {dimension_numbers = #tpu.dot_dimension_numbers<[1], [0], [0], [1], [0, 0, 1, 1], [], []>} : vector<64x4xf32>, vector<4x512xf32>, vector<64x512xf32> -> vector<64x512xf32>
    %c0_3 = arith.constant 0 : index
    %c0_4 = arith.constant 0 : index
    %3 = vector.load %arg3[%c0_3, %c0_4] : memref<1x512xf32, #tpu.memory_space<vmem>>, vector<1x512xf32>
    %4 = vector.broadcast %3 : vector<1x512xf32> to vector<64x512xf32>
    %5 = arith.addf %2, %4 : vector<64x512xf32>
    %c0_5 = arith.constant 0 : index
    %c0_6 = arith.constant 0 : index
    %6 = vector.load %arg2[%c0_5, %c0_6] : memref<128x512xf32, #tpu.memory_space<vmem>>, vector<128x512xf32>
    %c0_7 = arith.constant 0 : index
    %c0_8 = arith.constant 0 : index
    %7 = vector.load %arg4[%c0_7, %c0_8] : memref<256x512xf32, #tpu.memory_space<vmem>>, vector<256x512xf32>
    %c0_9 = arith.constant 0 : index
    %c0_10 = arith.constant 0 : index
    %8 = vector.load %arg5[%c0_9, %c0_10] : memref<1x512xf32, #tpu.memory_space<vmem>>, vector<1x512xf32>
    %9 = vector.shape_cast %8 : vector<1x512xf32> to vector<1x512xf32>
    %10 = vector.broadcast %9 : vector<1x512xf32> to vector<8x512xf32>
    %cst_11 = arith.constant 0.000000e+00 : f32
    %11 = vector.broadcast %cst_11 : f32 to vector<8x128xf32>
    %cst_12 = arith.constant 0.000000e+00 : f32
    %12 = vector.broadcast %cst_12 : f32 to vector<8x128xf32>
    %cst_13 = arith.constant 0.000000e+00 : f32
    %13 = vector.broadcast %cst_13 : f32 to vector<8x128xf32>
    %cst_14 = arith.constant 0.000000e+00 : f32
    %14 = vector.broadcast %cst_14 : f32 to vector<8x128xf32>
    %15 = vector.extract_strided_slice %5 {offsets = [0, 0], sizes = [8, 512], strides = [1, 1]} : vector<64x512xf32> to vector<8x512xf32>
    %cst_15 = arith.constant dense<0.000000e+00> : vector<8x512xf32>
    %16 = tpu.matmul %11, %6, %cst_15 {dimension_numbers = #tpu.dot_dimension_numbers<[1], [0], [0], [1], [0, 0, 1, 1], [], []>} : vector<8x128xf32>, vector<128x512xf32>, vector<8x512xf32> -> vector<8x512xf32>
    %17 = arith.addf %15, %16 : vector<8x512xf32>
    %18 = vector.extract_strided_slice %17 {offsets = [0, 0], sizes = [8, 384], strides = [1, 1]} : vector<8x512xf32> to vector<8x384xf32>
    %19 = arith.negf %18 : vector<8x384xf32>
    %20 = math.exp %19 : vector<8x384xf32>
    %cst_16 = arith.constant 1.000000e+00 : f32
    %21 = vector.broadcast %cst_16 : f32 to vector<8x384xf32>
    %22 = arith.addf %21, %20 : vector<8x384xf32>
    %23 = arith.divf %21, %22 : vector<8x384xf32>
    %24 = vector.extract_strided_slice %17 {offsets = [0, 384], sizes = [8, 128], strides = [1, 1]} : vector<8x512xf32> to vector<8x128xf32>
    %25 = math.tanh %24 : vector<8x128xf32>
    %26 = vector.extract_strided_slice %23 {offsets = [0, 0], sizes = [8, 128], strides = [1, 1]} : vector<8x384xf32> to vector<8x128xf32>
    %27 = vector.extract_strided_slice %23 {offsets = [0, 128], sizes = [8, 128], strides = [1, 1]} : vector<8x384xf32> to vector<8x128xf32>
    %28 = vector.extract_strided_slice %23 {offsets = [0, 256], sizes = [8, 128], strides = [1, 1]} : vector<8x384xf32> to vector<8x128xf32>
    %29 = arith.mulf %27, %12 : vector<8x128xf32>
    %30 = arith.mulf %26, %25 : vector<8x128xf32>
    %31 = arith.addf %29, %30 : vector<8x128xf32>
    %32 = math.tanh %31 : vector<8x128xf32>
    %33 = arith.mulf %28, %32 : vector<8x128xf32>
    %34 = vector.extract_strided_slice %5 {offsets = [8, 0], sizes = [8, 512], strides = [1, 1]} : vector<64x512xf32> to vector<8x512xf32>
    %cst_17 = arith.constant dense<0.000000e+00> : vector<8x512xf32>
    %35 = tpu.matmul %33, %6, %cst_17 {dimension_numbers = #tpu.dot_dimension_numbers<[1], [0], [0], [1], [0, 0, 1, 1], [], []>} : vector<8x128xf32>, vector<128x512xf32>, vector<8x512xf32> -> vector<8x512xf32>
    %36 = arith.addf %34, %35 : vector<8x512xf32>
    %37 = vector.extract_strided_slice %36 {offsets = [0, 0], sizes = [8, 384], strides = [1, 1]} : vector<8x512xf32> to vector<8x384xf32>
    %38 = arith.negf %37 : vector<8x384xf32>
    %39 = math.exp %38 : vector<8x384xf32>
    %cst_18 = arith.constant 1.000000e+00 : f32
    %40 = vector.broadcast %cst_18 : f32 to vector<8x384xf32>
    %41 = arith.addf %40, %39 : vector<8x384xf32>
    %42 = arith.divf %40, %41 : vector<8x384xf32>
    %43 = vector.extract_strided_slice %36 {offsets = [0, 384], sizes = [8, 128], strides = [1, 1]} : vector<8x512xf32> to vector<8x128xf32>
    %44 = math.tanh %43 : vector<8x128xf32>
    %45 = vector.extract_strided_slice %42 {offsets = [0, 0], sizes = [8, 128], strides = [1, 1]} : vector<8x384xf32> to vector<8x128xf32>
    %46 = vector.extract_strided_slice %42 {offsets = [0, 128], sizes = [8, 128], strides = [1, 1]} : vector<8x384xf32> to vector<8x128xf32>
    %47 = vector.extract_strided_slice %42 {offsets = [0, 256], sizes = [8, 128], strides = [1, 1]} : vector<8x384xf32> to vector<8x128xf32>
    %48 = arith.mulf %46, %31 : vector<8x128xf32>
    %49 = arith.mulf %45, %44 : vector<8x128xf32>
    %50 = arith.addf %48, %49 : vector<8x128xf32>
    %51 = math.tanh %50 : vector<8x128xf32>
    %52 = arith.mulf %47, %51 : vector<8x128xf32>
    %53 = tpu.concatenate %33, %13 in 1 : vector<8x128xf32>, vector<8x128xf32> -> vector<8x256xf32>
    %cst_19 = arith.constant dense<0.000000e+00> : vector<8x512xf32>
    %54 = tpu.matmul %53, %7, %cst_19 {dimension_numbers = #tpu.dot_dimension_numbers<[1], [0], [0], [1], [0, 0, 1, 1], [], []>} : vector<8x256xf32>, vector<256x512xf32>, vector<8x512xf32> -> vector<8x512xf32>
    %55 = arith.addf %54, %10 : vector<8x512xf32>
    %56 = vector.extract_strided_slice %55 {offsets = [0, 0], sizes = [8, 384], strides = [1, 1]} : vector<8x512xf32> to vector<8x384xf32>
    %57 = arith.negf %56 : vector<8x384xf32>
    %58 = math.exp %57 : vector<8x384xf32>
    %cst_20 = arith.constant 1.000000e+00 : f32
    %59 = vector.broadcast %cst_20 : f32 to vector<8x384xf32>
    %60 = arith.addf %59, %58 : vector<8x384xf32>
    %61 = arith.divf %59, %60 : vector<8x384xf32>
    %62 = vector.extract_strided_slice %55 {offsets = [0, 384], sizes = [8, 128], strides = [1, 1]} : vector<8x512xf32> to vector<8x128xf32>
    %63 = math.tanh %62 : vector<8x128xf32>
    %64 = vector.extract_strided_slice %61 {offsets = [0, 0], sizes = [8, 128], strides = [1, 1]} : vector<8x384xf32> to vector<8x128xf32>
    %65 = vector.extract_strided_slice %61 {offsets = [0, 128], sizes = [8, 128], strides = [1, 1]} : vector<8x384xf32> to vector<8x128xf32>
    %66 = vector.extract_strided_slice %61 {offsets = [0, 256], sizes = [8, 128], strides = [1, 1]} : vector<8x384xf32> to vector<8x128xf32>
    %67 = arith.mulf %65, %14 : vector<8x128xf32>
    %68 = arith.mulf %64, %63 : vector<8x128xf32>
    %69 = arith.addf %67, %68 : vector<8x128xf32>
    %70 = math.tanh %69 : vector<8x128xf32>
    %71 = arith.mulf %66, %70 : vector<8x128xf32>
    %72 = vector.extract_strided_slice %5 {offsets = [16, 0], sizes = [8, 512], strides = [1, 1]} : vector<64x512xf32> to vector<8x512xf32>
    %cst_21 = arith.constant dense<0.000000e+00> : vector<8x512xf32>
    %73 = tpu.matmul %52, %6, %cst_21 {dimension_numbers = #tpu.dot_dimension_numbers<[1], [0], [0], [1], [0, 0, 1, 1], [], []>} : vector<8x128xf32>, vector<128x512xf32>, vector<8x512xf32> -> vector<8x512xf32>
    %74 = arith.addf %72, %73 : vector<8x512xf32>
    %75 = vector.extract_strided_slice %74 {offsets = [0, 0], sizes = [8, 384], strides = [1, 1]} : vector<8x512xf32> to vector<8x384xf32>
    %76 = arith.negf %75 : vector<8x384xf32>
    %77 = math.exp %76 : vector<8x384xf32>
    %cst_22 = arith.constant 1.000000e+00 : f32
    %78 = vector.broadcast %cst_22 : f32 to vector<8x384xf32>
    %79 = arith.addf %78, %77 : vector<8x384xf32>
    %80 = arith.divf %78, %79 : vector<8x384xf32>
    %81 = vector.extract_strided_slice %74 {offsets = [0, 384], sizes = [8, 128], strides = [1, 1]} : vector<8x512xf32> to vector<8x128xf32>
    %82 = math.tanh %81 : vector<8x128xf32>
    %83 = vector.extract_strided_slice %80 {offsets = [0, 0], sizes = [8, 128], strides = [1, 1]} : vector<8x384xf32> to vector<8x128xf32>
    %84 = vector.extract_strided_slice %80 {offsets = [0, 128], sizes = [8, 128], strides = [1, 1]} : vector<8x384xf32> to vector<8x128xf32>
    %85 = vector.extract_strided_slice %80 {offsets = [0, 256], sizes = [8, 128], strides = [1, 1]} : vector<8x384xf32> to vector<8x128xf32>
    %86 = arith.mulf %84, %50 : vector<8x128xf32>
    %87 = arith.mulf %83, %82 : vector<8x128xf32>
    %88 = arith.addf %86, %87 : vector<8x128xf32>
    %89 = math.tanh %88 : vector<8x128xf32>
    %90 = arith.mulf %85, %89 : vector<8x128xf32>
    %91 = tpu.concatenate %52, %71 in 1 : vector<8x128xf32>, vector<8x128xf32> -> vector<8x256xf32>
    %cst_23 = arith.constant dense<0.000000e+00> : vector<8x512xf32>
    %92 = tpu.matmul %91, %7, %cst_23 {dimension_numbers = #tpu.dot_dimension_numbers<[1], [0], [0], [1], [0, 0, 1, 1], [], []>} : vector<8x256xf32>, vector<256x512xf32>, vector<8x512xf32> -> vector<8x512xf32>
    %93 = arith.addf %92, %10 : vector<8x512xf32>
    %94 = vector.extract_strided_slice %93 {offsets = [0, 0], sizes = [8, 384], strides = [1, 1]} : vector<8x512xf32> to vector<8x384xf32>
    %95 = arith.negf %94 : vector<8x384xf32>
    %96 = math.exp %95 : vector<8x384xf32>
    %cst_24 = arith.constant 1.000000e+00 : f32
    %97 = vector.broadcast %cst_24 : f32 to vector<8x384xf32>
    %98 = arith.addf %97, %96 : vector<8x384xf32>
    %99 = arith.divf %97, %98 : vector<8x384xf32>
    %100 = vector.extract_strided_slice %93 {offsets = [0, 384], sizes = [8, 128], strides = [1, 1]} : vector<8x512xf32> to vector<8x128xf32>
    %101 = math.tanh %100 : vector<8x128xf32>
    %102 = vector.extract_strided_slice %99 {offsets = [0, 0], sizes = [8, 128], strides = [1, 1]} : vector<8x384xf32> to vector<8x128xf32>
    %103 = vector.extract_strided_slice %99 {offsets = [0, 128], sizes = [8, 128], strides = [1, 1]} : vector<8x384xf32> to vector<8x128xf32>
    %104 = vector.extract_strided_slice %99 {offsets = [0, 256], sizes = [8, 128], strides = [1, 1]} : vector<8x384xf32> to vector<8x128xf32>
    %105 = arith.mulf %103, %69 : vector<8x128xf32>
    %106 = arith.mulf %102, %101 : vector<8x128xf32>
    %107 = arith.addf %105, %106 : vector<8x128xf32>
    %108 = math.tanh %107 : vector<8x128xf32>
    %109 = arith.mulf %104, %108 : vector<8x128xf32>
    %110 = vector.extract_strided_slice %5 {offsets = [24, 0], sizes = [8, 512], strides = [1, 1]} : vector<64x512xf32> to vector<8x512xf32>
    %cst_25 = arith.constant dense<0.000000e+00> : vector<8x512xf32>
    %111 = tpu.matmul %90, %6, %cst_25 {dimension_numbers = #tpu.dot_dimension_numbers<[1], [0], [0], [1], [0, 0, 1, 1], [], []>} : vector<8x128xf32>, vector<128x512xf32>, vector<8x512xf32> -> vector<8x512xf32>
    %112 = arith.addf %110, %111 : vector<8x512xf32>
    %113 = vector.extract_strided_slice %112 {offsets = [0, 0], sizes = [8, 384], strides = [1, 1]} : vector<8x512xf32> to vector<8x384xf32>
    %114 = arith.negf %113 : vector<8x384xf32>
    %115 = math.exp %114 : vector<8x384xf32>
    %cst_26 = arith.constant 1.000000e+00 : f32
    %116 = vector.broadcast %cst_26 : f32 to vector<8x384xf32>
    %117 = arith.addf %116, %115 : vector<8x384xf32>
    %118 = arith.divf %116, %117 : vector<8x384xf32>
    %119 = vector.extract_strided_slice %112 {offsets = [0, 384], sizes = [8, 128], strides = [1, 1]} : vector<8x512xf32> to vector<8x128xf32>
    %120 = math.tanh %119 : vector<8x128xf32>
    %121 = vector.extract_strided_slice %118 {offsets = [0, 0], sizes = [8, 128], strides = [1, 1]} : vector<8x384xf32> to vector<8x128xf32>
    %122 = vector.extract_strided_slice %118 {offsets = [0, 128], sizes = [8, 128], strides = [1, 1]} : vector<8x384xf32> to vector<8x128xf32>
    %123 = vector.extract_strided_slice %118 {offsets = [0, 256], sizes = [8, 128], strides = [1, 1]} : vector<8x384xf32> to vector<8x128xf32>
    %124 = arith.mulf %122, %88 : vector<8x128xf32>
    %125 = arith.mulf %121, %120 : vector<8x128xf32>
    %126 = arith.addf %124, %125 : vector<8x128xf32>
    %127 = math.tanh %126 : vector<8x128xf32>
    %128 = arith.mulf %123, %127 : vector<8x128xf32>
    %129 = tpu.concatenate %90, %109 in 1 : vector<8x128xf32>, vector<8x128xf32> -> vector<8x256xf32>
    %cst_27 = arith.constant dense<0.000000e+00> : vector<8x512xf32>
    %130 = tpu.matmul %129, %7, %cst_27 {dimension_numbers = #tpu.dot_dimension_numbers<[1], [0], [0], [1], [0, 0, 1, 1], [], []>} : vector<8x256xf32>, vector<256x512xf32>, vector<8x512xf32> -> vector<8x512xf32>
    %131 = arith.addf %130, %10 : vector<8x512xf32>
    %132 = vector.extract_strided_slice %131 {offsets = [0, 0], sizes = [8, 384], strides = [1, 1]} : vector<8x512xf32> to vector<8x384xf32>
    %133 = arith.negf %132 : vector<8x384xf32>
    %134 = math.exp %133 : vector<8x384xf32>
    %cst_28 = arith.constant 1.000000e+00 : f32
    %135 = vector.broadcast %cst_28 : f32 to vector<8x384xf32>
    %136 = arith.addf %135, %134 : vector<8x384xf32>
    %137 = arith.divf %135, %136 : vector<8x384xf32>
    %138 = vector.extract_strided_slice %131 {offsets = [0, 384], sizes = [8, 128], strides = [1, 1]} : vector<8x512xf32> to vector<8x128xf32>
    %139 = math.tanh %138 : vector<8x128xf32>
    %140 = vector.extract_strided_slice %137 {offsets = [0, 0], sizes = [8, 128], strides = [1, 1]} : vector<8x384xf32> to vector<8x128xf32>
    %141 = vector.extract_strided_slice %137 {offsets = [0, 128], sizes = [8, 128], strides = [1, 1]} : vector<8x384xf32> to vector<8x128xf32>
    %142 = vector.extract_strided_slice %137 {offsets = [0, 256], sizes = [8, 128], strides = [1, 1]} : vector<8x384xf32> to vector<8x128xf32>
    %143 = arith.mulf %141, %107 : vector<8x128xf32>
    %144 = arith.mulf %140, %139 : vector<8x128xf32>
    %145 = arith.addf %143, %144 : vector<8x128xf32>
    %146 = math.tanh %145 : vector<8x128xf32>
    %147 = arith.mulf %142, %146 : vector<8x128xf32>
    %148 = vector.extract_strided_slice %5 {offsets = [32, 0], sizes = [8, 512], strides = [1, 1]} : vector<64x512xf32> to vector<8x512xf32>
    %cst_29 = arith.constant dense<0.000000e+00> : vector<8x512xf32>
    %149 = tpu.matmul %128, %6, %cst_29 {dimension_numbers = #tpu.dot_dimension_numbers<[1], [0], [0], [1], [0, 0, 1, 1], [], []>} : vector<8x128xf32>, vector<128x512xf32>, vector<8x512xf32> -> vector<8x512xf32>
    %150 = arith.addf %148, %149 : vector<8x512xf32>
    %151 = vector.extract_strided_slice %150 {offsets = [0, 0], sizes = [8, 384], strides = [1, 1]} : vector<8x512xf32> to vector<8x384xf32>
    %152 = arith.negf %151 : vector<8x384xf32>
    %153 = math.exp %152 : vector<8x384xf32>
    %cst_30 = arith.constant 1.000000e+00 : f32
    %154 = vector.broadcast %cst_30 : f32 to vector<8x384xf32>
    %155 = arith.addf %154, %153 : vector<8x384xf32>
    %156 = arith.divf %154, %155 : vector<8x384xf32>
    %157 = vector.extract_strided_slice %150 {offsets = [0, 384], sizes = [8, 128], strides = [1, 1]} : vector<8x512xf32> to vector<8x128xf32>
    %158 = math.tanh %157 : vector<8x128xf32>
    %159 = vector.extract_strided_slice %156 {offsets = [0, 0], sizes = [8, 128], strides = [1, 1]} : vector<8x384xf32> to vector<8x128xf32>
    %160 = vector.extract_strided_slice %156 {offsets = [0, 128], sizes = [8, 128], strides = [1, 1]} : vector<8x384xf32> to vector<8x128xf32>
    %161 = vector.extract_strided_slice %156 {offsets = [0, 256], sizes = [8, 128], strides = [1, 1]} : vector<8x384xf32> to vector<8x128xf32>
    %162 = arith.mulf %160, %126 : vector<8x128xf32>
    %163 = arith.mulf %159, %158 : vector<8x128xf32>
    %164 = arith.addf %162, %163 : vector<8x128xf32>
    %165 = math.tanh %164 : vector<8x128xf32>
    %166 = arith.mulf %161, %165 : vector<8x128xf32>
    %167 = tpu.concatenate %128, %147 in 1 : vector<8x128xf32>, vector<8x128xf32> -> vector<8x256xf32>
    %cst_31 = arith.constant dense<0.000000e+00> : vector<8x512xf32>
    %168 = tpu.matmul %167, %7, %cst_31 {dimension_numbers = #tpu.dot_dimension_numbers<[1], [0], [0], [1], [0, 0, 1, 1], [], []>} : vector<8x256xf32>, vector<256x512xf32>, vector<8x512xf32> -> vector<8x512xf32>
    %169 = arith.addf %168, %10 : vector<8x512xf32>
    %170 = vector.extract_strided_slice %169 {offsets = [0, 0], sizes = [8, 384], strides = [1, 1]} : vector<8x512xf32> to vector<8x384xf32>
    %171 = arith.negf %170 : vector<8x384xf32>
    %172 = math.exp %171 : vector<8x384xf32>
    %cst_32 = arith.constant 1.000000e+00 : f32
    %173 = vector.broadcast %cst_32 : f32 to vector<8x384xf32>
    %174 = arith.addf %173, %172 : vector<8x384xf32>
    %175 = arith.divf %173, %174 : vector<8x384xf32>
    %176 = vector.extract_strided_slice %169 {offsets = [0, 384], sizes = [8, 128], strides = [1, 1]} : vector<8x512xf32> to vector<8x128xf32>
    %177 = math.tanh %176 : vector<8x128xf32>
    %178 = vector.extract_strided_slice %175 {offsets = [0, 0], sizes = [8, 128], strides = [1, 1]} : vector<8x384xf32> to vector<8x128xf32>
    %179 = vector.extract_strided_slice %175 {offsets = [0, 128], sizes = [8, 128], strides = [1, 1]} : vector<8x384xf32> to vector<8x128xf32>
    %180 = vector.extract_strided_slice %175 {offsets = [0, 256], sizes = [8, 128], strides = [1, 1]} : vector<8x384xf32> to vector<8x128xf32>
    %181 = arith.mulf %179, %145 : vector<8x128xf32>
    %182 = arith.mulf %178, %177 : vector<8x128xf32>
    %183 = arith.addf %181, %182 : vector<8x128xf32>
    %184 = math.tanh %183 : vector<8x128xf32>
    %185 = arith.mulf %180, %184 : vector<8x128xf32>
    %186 = vector.extract_strided_slice %5 {offsets = [40, 0], sizes = [8, 512], strides = [1, 1]} : vector<64x512xf32> to vector<8x512xf32>
    %cst_33 = arith.constant dense<0.000000e+00> : vector<8x512xf32>
    %187 = tpu.matmul %166, %6, %cst_33 {dimension_numbers = #tpu.dot_dimension_numbers<[1], [0], [0], [1], [0, 0, 1, 1], [], []>} : vector<8x128xf32>, vector<128x512xf32>, vector<8x512xf32> -> vector<8x512xf32>
    %188 = arith.addf %186, %187 : vector<8x512xf32>
    %189 = vector.extract_strided_slice %188 {offsets = [0, 0], sizes = [8, 384], strides = [1, 1]} : vector<8x512xf32> to vector<8x384xf32>
    %190 = arith.negf %189 : vector<8x384xf32>
    %191 = math.exp %190 : vector<8x384xf32>
    %cst_34 = arith.constant 1.000000e+00 : f32
    %192 = vector.broadcast %cst_34 : f32 to vector<8x384xf32>
    %193 = arith.addf %192, %191 : vector<8x384xf32>
    %194 = arith.divf %192, %193 : vector<8x384xf32>
    %195 = vector.extract_strided_slice %188 {offsets = [0, 384], sizes = [8, 128], strides = [1, 1]} : vector<8x512xf32> to vector<8x128xf32>
    %196 = math.tanh %195 : vector<8x128xf32>
    %197 = vector.extract_strided_slice %194 {offsets = [0, 0], sizes = [8, 128], strides = [1, 1]} : vector<8x384xf32> to vector<8x128xf32>
    %198 = vector.extract_strided_slice %194 {offsets = [0, 128], sizes = [8, 128], strides = [1, 1]} : vector<8x384xf32> to vector<8x128xf32>
    %199 = vector.extract_strided_slice %194 {offsets = [0, 256], sizes = [8, 128], strides = [1, 1]} : vector<8x384xf32> to vector<8x128xf32>
    %200 = arith.mulf %198, %164 : vector<8x128xf32>
    %201 = arith.mulf %197, %196 : vector<8x128xf32>
    %202 = arith.addf %200, %201 : vector<8x128xf32>
    %203 = math.tanh %202 : vector<8x128xf32>
    %204 = arith.mulf %199, %203 : vector<8x128xf32>
    %205 = tpu.concatenate %166, %185 in 1 : vector<8x128xf32>, vector<8x128xf32> -> vector<8x256xf32>
    %cst_35 = arith.constant dense<0.000000e+00> : vector<8x512xf32>
    %206 = tpu.matmul %205, %7, %cst_35 {dimension_numbers = #tpu.dot_dimension_numbers<[1], [0], [0], [1], [0, 0, 1, 1], [], []>} : vector<8x256xf32>, vector<256x512xf32>, vector<8x512xf32> -> vector<8x512xf32>
    %207 = arith.addf %206, %10 : vector<8x512xf32>
    %208 = vector.extract_strided_slice %207 {offsets = [0, 0], sizes = [8, 384], strides = [1, 1]} : vector<8x512xf32> to vector<8x384xf32>
    %209 = arith.negf %208 : vector<8x384xf32>
    %210 = math.exp %209 : vector<8x384xf32>
    %cst_36 = arith.constant 1.000000e+00 : f32
    %211 = vector.broadcast %cst_36 : f32 to vector<8x384xf32>
    %212 = arith.addf %211, %210 : vector<8x384xf32>
    %213 = arith.divf %211, %212 : vector<8x384xf32>
    %214 = vector.extract_strided_slice %207 {offsets = [0, 384], sizes = [8, 128], strides = [1, 1]} : vector<8x512xf32> to vector<8x128xf32>
    %215 = math.tanh %214 : vector<8x128xf32>
    %216 = vector.extract_strided_slice %213 {offsets = [0, 0], sizes = [8, 128], strides = [1, 1]} : vector<8x384xf32> to vector<8x128xf32>
    %217 = vector.extract_strided_slice %213 {offsets = [0, 128], sizes = [8, 128], strides = [1, 1]} : vector<8x384xf32> to vector<8x128xf32>
    %218 = vector.extract_strided_slice %213 {offsets = [0, 256], sizes = [8, 128], strides = [1, 1]} : vector<8x384xf32> to vector<8x128xf32>
    %219 = arith.mulf %217, %183 : vector<8x128xf32>
    %220 = arith.mulf %216, %215 : vector<8x128xf32>
    %221 = arith.addf %219, %220 : vector<8x128xf32>
    %222 = math.tanh %221 : vector<8x128xf32>
    %223 = arith.mulf %218, %222 : vector<8x128xf32>
    %224 = vector.extract_strided_slice %5 {offsets = [48, 0], sizes = [8, 512], strides = [1, 1]} : vector<64x512xf32> to vector<8x512xf32>
    %cst_37 = arith.constant dense<0.000000e+00> : vector<8x512xf32>
    %225 = tpu.matmul %204, %6, %cst_37 {dimension_numbers = #tpu.dot_dimension_numbers<[1], [0], [0], [1], [0, 0, 1, 1], [], []>} : vector<8x128xf32>, vector<128x512xf32>, vector<8x512xf32> -> vector<8x512xf32>
    %226 = arith.addf %224, %225 : vector<8x512xf32>
    %227 = vector.extract_strided_slice %226 {offsets = [0, 0], sizes = [8, 384], strides = [1, 1]} : vector<8x512xf32> to vector<8x384xf32>
    %228 = arith.negf %227 : vector<8x384xf32>
    %229 = math.exp %228 : vector<8x384xf32>
    %cst_38 = arith.constant 1.000000e+00 : f32
    %230 = vector.broadcast %cst_38 : f32 to vector<8x384xf32>
    %231 = arith.addf %230, %229 : vector<8x384xf32>
    %232 = arith.divf %230, %231 : vector<8x384xf32>
    %233 = vector.extract_strided_slice %226 {offsets = [0, 384], sizes = [8, 128], strides = [1, 1]} : vector<8x512xf32> to vector<8x128xf32>
    %234 = math.tanh %233 : vector<8x128xf32>
    %235 = vector.extract_strided_slice %232 {offsets = [0, 0], sizes = [8, 128], strides = [1, 1]} : vector<8x384xf32> to vector<8x128xf32>
    %236 = vector.extract_strided_slice %232 {offsets = [0, 128], sizes = [8, 128], strides = [1, 1]} : vector<8x384xf32> to vector<8x128xf32>
    %237 = vector.extract_strided_slice %232 {offsets = [0, 256], sizes = [8, 128], strides = [1, 1]} : vector<8x384xf32> to vector<8x128xf32>
    %238 = arith.mulf %236, %202 : vector<8x128xf32>
    %239 = arith.mulf %235, %234 : vector<8x128xf32>
    %240 = arith.addf %238, %239 : vector<8x128xf32>
    %241 = math.tanh %240 : vector<8x128xf32>
    %242 = arith.mulf %237, %241 : vector<8x128xf32>
    %243 = tpu.concatenate %204, %223 in 1 : vector<8x128xf32>, vector<8x128xf32> -> vector<8x256xf32>
    %cst_39 = arith.constant dense<0.000000e+00> : vector<8x512xf32>
    %244 = tpu.matmul %243, %7, %cst_39 {dimension_numbers = #tpu.dot_dimension_numbers<[1], [0], [0], [1], [0, 0, 1, 1], [], []>} : vector<8x256xf32>, vector<256x512xf32>, vector<8x512xf32> -> vector<8x512xf32>
    %245 = arith.addf %244, %10 : vector<8x512xf32>
    %246 = vector.extract_strided_slice %245 {offsets = [0, 0], sizes = [8, 384], strides = [1, 1]} : vector<8x512xf32> to vector<8x384xf32>
    %247 = arith.negf %246 : vector<8x384xf32>
    %248 = math.exp %247 : vector<8x384xf32>
    %cst_40 = arith.constant 1.000000e+00 : f32
    %249 = vector.broadcast %cst_40 : f32 to vector<8x384xf32>
    %250 = arith.addf %249, %248 : vector<8x384xf32>
    %251 = arith.divf %249, %250 : vector<8x384xf32>
    %252 = vector.extract_strided_slice %245 {offsets = [0, 384], sizes = [8, 128], strides = [1, 1]} : vector<8x512xf32> to vector<8x128xf32>
    %253 = math.tanh %252 : vector<8x128xf32>
    %254 = vector.extract_strided_slice %251 {offsets = [0, 0], sizes = [8, 128], strides = [1, 1]} : vector<8x384xf32> to vector<8x128xf32>
    %255 = vector.extract_strided_slice %251 {offsets = [0, 128], sizes = [8, 128], strides = [1, 1]} : vector<8x384xf32> to vector<8x128xf32>
    %256 = vector.extract_strided_slice %251 {offsets = [0, 256], sizes = [8, 128], strides = [1, 1]} : vector<8x384xf32> to vector<8x128xf32>
    %257 = arith.mulf %255, %221 : vector<8x128xf32>
    %258 = arith.mulf %254, %253 : vector<8x128xf32>
    %259 = arith.addf %257, %258 : vector<8x128xf32>
    %260 = math.tanh %259 : vector<8x128xf32>
    %261 = arith.mulf %256, %260 : vector<8x128xf32>
    %262 = vector.extract_strided_slice %5 {offsets = [56, 0], sizes = [8, 512], strides = [1, 1]} : vector<64x512xf32> to vector<8x512xf32>
    %cst_41 = arith.constant dense<0.000000e+00> : vector<8x512xf32>
    %263 = tpu.matmul %242, %6, %cst_41 {dimension_numbers = #tpu.dot_dimension_numbers<[1], [0], [0], [1], [0, 0, 1, 1], [], []>} : vector<8x128xf32>, vector<128x512xf32>, vector<8x512xf32> -> vector<8x512xf32>
    %264 = arith.addf %262, %263 : vector<8x512xf32>
    %265 = vector.extract_strided_slice %264 {offsets = [0, 0], sizes = [8, 384], strides = [1, 1]} : vector<8x512xf32> to vector<8x384xf32>
    %266 = arith.negf %265 : vector<8x384xf32>
    %267 = math.exp %266 : vector<8x384xf32>
    %cst_42 = arith.constant 1.000000e+00 : f32
    %268 = vector.broadcast %cst_42 : f32 to vector<8x384xf32>
    %269 = arith.addf %268, %267 : vector<8x384xf32>
    %270 = arith.divf %268, %269 : vector<8x384xf32>
    %271 = vector.extract_strided_slice %264 {offsets = [0, 384], sizes = [8, 128], strides = [1, 1]} : vector<8x512xf32> to vector<8x128xf32>
    %272 = math.tanh %271 : vector<8x128xf32>
    %273 = vector.extract_strided_slice %270 {offsets = [0, 0], sizes = [8, 128], strides = [1, 1]} : vector<8x384xf32> to vector<8x128xf32>
    %274 = vector.extract_strided_slice %270 {offsets = [0, 128], sizes = [8, 128], strides = [1, 1]} : vector<8x384xf32> to vector<8x128xf32>
    %275 = vector.extract_strided_slice %270 {offsets = [0, 256], sizes = [8, 128], strides = [1, 1]} : vector<8x384xf32> to vector<8x128xf32>
    %276 = arith.mulf %274, %240 : vector<8x128xf32>
    %277 = arith.mulf %273, %272 : vector<8x128xf32>
    %278 = arith.addf %276, %277 : vector<8x128xf32>
    %279 = math.tanh %278 : vector<8x128xf32>
    %280 = arith.mulf %275, %279 : vector<8x128xf32>
    %281 = tpu.concatenate %242, %261 in 1 : vector<8x128xf32>, vector<8x128xf32> -> vector<8x256xf32>
    %cst_43 = arith.constant dense<0.000000e+00> : vector<8x512xf32>
    %282 = tpu.matmul %281, %7, %cst_43 {dimension_numbers = #tpu.dot_dimension_numbers<[1], [0], [0], [1], [0, 0, 1, 1], [], []>} : vector<8x256xf32>, vector<256x512xf32>, vector<8x512xf32> -> vector<8x512xf32>
    %283 = arith.addf %282, %10 : vector<8x512xf32>
    %284 = vector.extract_strided_slice %283 {offsets = [0, 0], sizes = [8, 384], strides = [1, 1]} : vector<8x512xf32> to vector<8x384xf32>
    %285 = arith.negf %284 : vector<8x384xf32>
    %286 = math.exp %285 : vector<8x384xf32>
    %cst_44 = arith.constant 1.000000e+00 : f32
    %287 = vector.broadcast %cst_44 : f32 to vector<8x384xf32>
    %288 = arith.addf %287, %286 : vector<8x384xf32>
    %289 = arith.divf %287, %288 : vector<8x384xf32>
    %290 = vector.extract_strided_slice %283 {offsets = [0, 384], sizes = [8, 128], strides = [1, 1]} : vector<8x512xf32> to vector<8x128xf32>
    %291 = math.tanh %290 : vector<8x128xf32>
    %292 = vector.extract_strided_slice %289 {offsets = [0, 0], sizes = [8, 128], strides = [1, 1]} : vector<8x384xf32> to vector<8x128xf32>
    %293 = vector.extract_strided_slice %289 {offsets = [0, 128], sizes = [8, 128], strides = [1, 1]} : vector<8x384xf32> to vector<8x128xf32>
    %294 = vector.extract_strided_slice %289 {offsets = [0, 256], sizes = [8, 128], strides = [1, 1]} : vector<8x384xf32> to vector<8x128xf32>
    %295 = arith.mulf %293, %259 : vector<8x128xf32>
    %296 = arith.mulf %292, %291 : vector<8x128xf32>
    %297 = arith.addf %295, %296 : vector<8x128xf32>
    %298 = math.tanh %297 : vector<8x128xf32>
    %299 = arith.mulf %294, %298 : vector<8x128xf32>
    %300 = tpu.concatenate %280, %299 in 1 : vector<8x128xf32>, vector<8x128xf32> -> vector<8x256xf32>
    %cst_45 = arith.constant dense<0.000000e+00> : vector<8x512xf32>
    %301 = tpu.matmul %300, %7, %cst_45 {dimension_numbers = #tpu.dot_dimension_numbers<[1], [0], [0], [1], [0, 0, 1, 1], [], []>} : vector<8x256xf32>, vector<256x512xf32>, vector<8x512xf32> -> vector<8x512xf32>
    %302 = arith.addf %301, %10 : vector<8x512xf32>
    %303 = vector.extract_strided_slice %302 {offsets = [0, 0], sizes = [8, 384], strides = [1, 1]} : vector<8x512xf32> to vector<8x384xf32>
    %304 = arith.negf %303 : vector<8x384xf32>
    %305 = math.exp %304 : vector<8x384xf32>
    %cst_46 = arith.constant 1.000000e+00 : f32
    %306 = vector.broadcast %cst_46 : f32 to vector<8x384xf32>
    %307 = arith.addf %306, %305 : vector<8x384xf32>
    %308 = arith.divf %306, %307 : vector<8x384xf32>
    %309 = vector.extract_strided_slice %302 {offsets = [0, 384], sizes = [8, 128], strides = [1, 1]} : vector<8x512xf32> to vector<8x128xf32>
    %310 = math.tanh %309 : vector<8x128xf32>
    %311 = vector.extract_strided_slice %308 {offsets = [0, 0], sizes = [8, 128], strides = [1, 1]} : vector<8x384xf32> to vector<8x128xf32>
    %312 = vector.extract_strided_slice %308 {offsets = [0, 128], sizes = [8, 128], strides = [1, 1]} : vector<8x384xf32> to vector<8x128xf32>
    %313 = vector.extract_strided_slice %308 {offsets = [0, 256], sizes = [8, 128], strides = [1, 1]} : vector<8x384xf32> to vector<8x128xf32>
    %314 = arith.mulf %312, %297 : vector<8x128xf32>
    %315 = arith.mulf %311, %310 : vector<8x128xf32>
    %316 = arith.addf %314, %315 : vector<8x128xf32>
    %317 = math.tanh %316 : vector<8x128xf32>
    %318 = arith.mulf %313, %317 : vector<8x128xf32>
    %319 = tpu.concatenate %71, %109, %147, %185, %223, %261, %299, %318 in 0 : vector<8x128xf32>, vector<8x128xf32>, vector<8x128xf32>, vector<8x128xf32>, vector<8x128xf32>, vector<8x128xf32>, vector<8x128xf32>, vector<8x128xf32> -> vector<64x128xf32>
    %cst_47 = arith.constant 0.000000e+00 : f32
    %320 = vector.broadcast %cst_47 : f32 to vector<64x128xf32>
    %321 = arith.maximumf %319, %320 : vector<64x128xf32>
    %c0_48 = arith.constant 0 : index
    %c0_49 = arith.constant 0 : index
    %322 = vector.load %arg6[%c0_48, %c0_49] : memref<128x128xf32, #tpu.memory_space<vmem>>, vector<128x128xf32>
    %cst_50 = arith.constant dense<0.000000e+00> : vector<64x128xf32>
    %323 = tpu.matmul %321, %322, %cst_50 {dimension_numbers = #tpu.dot_dimension_numbers<[1], [0], [0], [1], [0, 0, 1, 1], [], []>} : vector<64x128xf32>, vector<128x128xf32>, vector<64x128xf32> -> vector<64x128xf32>
    %c0_51 = arith.constant 0 : index
    %c0_52 = arith.constant 0 : index
    %324 = vector.load %arg7[%c0_51, %c0_52] : memref<1x128xf32, #tpu.memory_space<vmem>>, vector<1x128xf32>
    %325 = vector.broadcast %324 : vector<1x128xf32> to vector<64x128xf32>
    %326 = arith.addf %323, %325 : vector<64x128xf32>
    %cst_53 = arith.constant 0.000000e+00 : f32
    %327 = vector.broadcast %cst_53 : f32 to vector<64x128xf32>
    %328 = arith.maximumf %326, %327 : vector<64x128xf32>
    %c0_54 = arith.constant 0 : index
    %c0_55 = arith.constant 0 : index
    %329 = vector.load %arg8[%c0_54, %c0_55] : memref<128x128xf32, #tpu.memory_space<vmem>>, vector<128x128xf32>
    %cst_56 = arith.constant dense<0.000000e+00> : vector<64x128xf32>
    %330 = tpu.matmul %328, %329, %cst_56 {dimension_numbers = #tpu.dot_dimension_numbers<[1], [0], [0], [1], [0, 0, 1, 1], [], []>} : vector<64x128xf32>, vector<128x128xf32>, vector<64x128xf32> -> vector<64x128xf32>
    %c0_57 = arith.constant 0 : index
    %c0_58 = arith.constant 0 : index
    %331 = vector.load %arg9[%c0_57, %c0_58] : memref<1x1xf32, #tpu.memory_space<vmem>>, vector<1x1xf32>
    %332 = vector.broadcast %331 : vector<1x1xf32> to vector<64x128xf32>
    %333 = arith.addf %330, %332 : vector<64x128xf32>
    %c0_59 = arith.constant 0 : index
    %c0_60 = arith.constant 0 : index
    %334 = vector.load %arg10[%c0_59, %c0_60] : memref<64x128xf32, #tpu.memory_space<vmem>>, vector<64x128xf32>
    tpu.vector_store %arg10[%c0_59, %c0_60], %333 {strides = array<i32>} : memref<64x128xf32, #tpu.memory_space<vmem>>, vector<64x128xf32>,
    return
  }
}

</mosaic_0001>

<llo_original>
// kernel: netz_forward.1
$region0: #{netz_forward.1}
  #allocation0 [shape = 'u32[]', space=smem, size = 0x4, offset = 0x4, fixed_abs, tag = 'smem constant byte address 0x4 - core index']
  #allocation1 [shape = 'u32[144,128]{1,0:T(1,128)}', space=vmem, size = 0x12000, scoped, tag = 'internal scratch']
  #allocation2 [shape = 'f32[1,1]{1,0:T(1,128)S(1)}', space=vmem, size = 0x200, scoped, tag = 'scoped memory for netz_forward.1']
  %s0 = inlined_call_operand.vmem [shape: f32[64,4], index: 0, kind: input, shape index: {}]
  %s1 = inlined_call_operand.vmem [shape: f32[4,512], index: 1, kind: input, shape index: {}]
  %s2 = inlined_call_operand.hbm [shape: f32[128,512], index: 2, kind: input, shape index: {}]
  %s3 = inlined_call_operand.vmem [shape: f32[1,512], index: 3, kind: input, shape index: {}]
  %s4 = inlined_call_operand.hbm [shape: f32[256,512], index: 4, kind: input, shape index: {}]
  %s5 = inlined_call_operand.vmem [shape: f32[1,512], index: 5, kind: input, shape index: {}]
  %s6 = inlined_call_operand.hbm [shape: f32[128,128], index: 6, kind: input, shape index: {}]
  %s7 = inlined_call_operand.vmem [shape: f32[1,128], index: 7, kind: input, shape index: {}]
  %s8 = inlined_call_operand.hbm [shape: f32[128,128], index: 8, kind: input, shape index: {}]
  %s9 = inlined_call_operand.<no memory space> [shape: f32[1,1], index: 9, kind: input, shape index: {}]
  %s10 = inlined_call_operand.vmem [shape: f32[64,128], index: 10, kind: output, shape index: {}]
  %s11 = sld [smem:[#allocation0]]
  $region66: #{netz_forward.1} parent=0
    _
  %s13 = ssub.s32 1, %s11
  %s14 = scalar_select 0, %s13, %s11
  %v15 = vstv %s9
  %16 = vst [vmem:[#allocation2] sm:$0x1] %v15
  $region1: #{netz_forward.1} parent=0
    #allocation3 [shape = 'u8[262144]{0}', space=vmem, size = 0x40000, scoped, tag = 'input window, operand 2, single buffered']
    #allocation4 [shape = 's32[1]{0}', space=sflag, size = 0x4, scoped, tag = 'scoped memory for netz_forward.1']
    #allocation5 [shape = 'u8[524288]{0}', space=vmem, size = 0x80000, scoped, tag = 'input window, operand 4, single buffered']
    #allocation6 [shape = 's32[1]{0}', space=sflag, size = 0x4, scoped, tag = 'scoped memory for netz_forward.1']
    #allocation7 [shape = 'u8[65536]{0}', space=vmem, size = 0x10000, scoped, tag = 'input window, operand 6, single buffered']
    #allocation8 [shape = 'u8[65536]{0}', space=vmem, size = 0x10000, scoped, tag = 'input window, operand 8, single buffered']
    #allocation9 [shape = 's32[1]{0}', space=sflag, size = 0x4, scoped, tag = 'scoped memory for netz_forward.1']
    %17 = vsyncpa [#allocation4], 0
    %18 = vsyncpa [#allocation6], 0
    %19 = vsyncpa [#allocation9], 0
    // Predicated region
    $region2: #{netz_forward.1} parent=1 // pred_check
      _
    $region3: #{netz_forward.1} parent=1 // pred_check_branch
      %21 = sbr.rel (0) target = $region5
    $region4: #{netz_forward.1} parent=1 // pred_region
      _
    $region5: #{netz_forward.1} parent=1 // pred_fallthru
      _
    // Predicated region
    $region6: #{netz_forward.1} parent=1 // pred_check
      _
    $region7: #{netz_forward.1} parent=1 // pred_check_branch
      %23 = sbr.rel (0) target = $region9
    $region8: #{netz_forward.1} parent=1 // pred_region
      _
    $region9: #{netz_forward.1} parent=1 // pred_fallthru
      _
    // Predicated region
    $region10: #{netz_forward.1} parent=1 // pred_check
      _
    $region11: #{netz_forward.1} parent=1 // pred_check_branch
      %25 = sbr.rel (0) target = $region13
    $region12: #{netz_forward.1} parent=1 // pred_region
      %s27 = ssub.s32 8192, 8192
      %28 = vsyncadd [#allocation4], %s27
      %s29 = sshll.u32 [#allocation3], 4
      %s30 = int_to_ptr.vmem [resolvable:$true] %s29
      %35 = dma.hbm_to_vmem [thread:$0]  %s2, 8192, %s30, [#allocation4], 512, 512, 32
    $region13: #{netz_forward.1} parent=1 // pred_fallthru
      _
    // Predicated region
    $region14: #{netz_forward.1} parent=1 // pred_check
      _
    $region15: #{netz_forward.1} parent=1 // pred_check_branch
      %37 = sbr.rel (0) target = $region17
    $region16: #{netz_forward.1} parent=1 // pred_region
      _
    $region17: #{netz_forward.1} parent=1 // pred_fallthru
      _
    // Predicated region
    $region18: #{netz_forward.1} parent=1 // pred_check
      _
    $region19: #{netz_forward.1} parent=1 // pred_check_branch
      %39 = sbr.rel (0) target = $region21
    $region20: #{netz_forward.1} parent=1 // pred_region
      %s41 = ssub.s32 16384, 16384
      %42 = vsyncadd [#allocation6], %s41
      %s43 = sshll.u32 [#allocation5], 4
      %s44 = int_to_ptr.vmem [resolvable:$true] %s43
      %49 = dma.hbm_to_vmem [thread:$0]  %s4, 16384, %s44, [#allocation6], 512, 512, 32
    $region21: #{netz_forward.1} parent=1 // pred_fallthru
      _
    // Predicated region
    $region22: #{netz_forward.1} parent=1 // pred_check
      _
    $region23: #{netz_forward.1} parent=1 // pred_check_branch
      %51 = sbr.rel (0) target = $region25
    $region24: #{netz_forward.1} parent=1 // pred_region
      _
    $region25: #{netz_forward.1} parent=1 // pred_fallthru
      _
    // Predicated region
    $region26: #{netz_forward.1} parent=1 // pred_check
      _
    $region27: #{netz_forward.1} parent=1 // pred_check_branch
      %53 = sbr.rel (0) target = $region29
    $region28: #{netz_forward.1} parent=1 // pred_region
      %s55 = ssub.s32 2048, 2048
      %56 = vsyncadd [#allocation6], %s55
      %s57 = sshll.u32 [#allocation7], 4
      %s58 = int_to_ptr.vmem [resolvable:$true] %s57
      %63 = dma.hbm_to_vmem [thread:$0]  %s6, 2048, %s58, [#allocation6], 128, 128, 8
    $region29: #{netz_forward.1} parent=1 // pred_fallthru
      _
    // Predicated region
    $region30: #{netz_forward.1} parent=1 // pred_check
      _
    $region31: #{netz_forward.1} parent=1 // pred_check_branch
      %65 = sbr.rel (0) target = $region33
    $region32: #{netz_forward.1} parent=1 // pred_region
      _
    $region33: #{netz_forward.1} parent=1 // pred_fallthru
      _
    // Predicated region
    $region34: #{netz_forward.1} parent=1 // pred_check
      _
    $region35: #{netz_forward.1} parent=1 // pred_check_branch
      %67 = sbr.rel (0) target = $region37
    $region36: #{netz_forward.1} parent=1 // pred_region
      %s69 = ssub.s32 2048, 2048
      %70 = vsyncadd [#allocation9], %s69
      %s71 = sshll.u32 [#allocation8], 4
      %s72 = int_to_ptr.vmem [resolvable:$true] %s71
      %77 = dma.hbm_to_vmem [thread:$0]  %s8, 2048, %s72, [#allocation9], 128, 128, 8
    $region37: #{netz_forward.1} parent=1 // pred_fallthru
      _
    // Predicated region
    $region38: #{netz_forward.1} parent=1 // pred_check
      _
    $region39: #{netz_forward.1} parent=1 // pred_check_branch
      %79 = sbr.rel (0) target = $region41
    $region40: #{netz_forward.1} parent=1 // pred_region
      _
    $region41: #{netz_forward.1} parent=1 // pred_fallthru
      _
    // Predicated region
    $region42: #{netz_forward.1} parent=1 // pred_check
      _
    $region43: #{netz_forward.1} parent=1 // pred_check_branch
      %81 = sbr.rel (0) target = $region45
    $region44: #{netz_forward.1} parent=1 // pred_region
      %82 = dma.done [#allocation4], 8192
    $region45: #{netz_forward.1} parent=1 // pred_fallthru
      _
    // Predicated region
    $region46: #{netz_forward.1} parent=1 // pred_check
      _
    $region47: #{netz_forward.1} parent=1 // pred_check_branch
      %84 = sbr.rel (0) target = $region49
    $region48: #{netz_forward.1} parent=1 // pred_region
      %85 = dma.done [#allocation6], 16384
    $region49: #{netz_forward.1} parent=1 // pred_fallthru
      _
    // Predicated region
    $region50: #{netz_forward.1} parent=1 // pred_check
      _
    $region51: #{netz_forward.1} parent=1 // pred_check_branch
      %87 = sbr.rel (0) target = $region53
    $region52: #{netz_forward.1} parent=1 // pred_region
      %88 = dma.done [#allocation6], 2048
    $region53: #{netz_forward.1} parent=1 // pred_fallthru
      _
    // Predicated region
    $region54: #{netz_forward.1} parent=1 // pred_check
      _
    $region55: #{netz_forward.1} parent=1 // pred_check_branch
      %90 = sbr.rel (0) target = $region57
    $region56: #{netz_forward.1} parent=1 // pred_region
      %91 = dma.done [#allocation9], 2048
    $region57: #{netz_forward.1} parent=1 // pred_fallthru
      _
    %v92 = vld [vmem:[%s0] sm:$0xff]
    %v93 = vld [vmem:[%s0 + $0x8] sm:$0xff]
    %v94 = vld [vmem:[%s0 + $0x10] sm:$0xff]
    %v95 = vld [vmem:[%s0 + $0x18] sm:$0xff]
    %v96 = vld [vmem:[%s0 + $0x20] sm:$0xff]
    %v97 = vld [vmem:[%s0 + $0x28] sm:$0xff]
    %v98 = vld [vmem:[%s0 + $0x30] sm:$0xff]
    %v99 = vld [vmem:[%s0 + $0x38] sm:$0xff]
    %v100 = vld [vmem:[%s1] sm:$0xff]
    %v101 = vld [vmem:[%s1 + $0x8] sm:$0xff]
    %v102 = vld [vmem:[%s3] sm:$0xf]
    %v104 = vlaneseq
    %v105 = vshrl.u32 %v104, 7
    %v106 = vsub.s32 0, %v105
    %v107 = vrot.slane %v102, %v106
    %v108 = vlaneseq
    %v109 = vshrl.u32 %v108, 7
    %v110 = vsub.s32 1, %v109
    %v111 = vrot.slane %v102, %v110
    %v112 = vlaneseq
    %v113 = vshrl.u32 %v112, 7
    %v114 = vsub.s32 2, %v113
    %v115 = vrot.slane %v102, %v114
    %v116 = vlaneseq
    %v117 = vshrl.u32 %v116, 7
    %v118 = vsub.s32 3, %v117
    %v119 = vrot.slane %v102, %v118
    %v126 = vcombine.high %v100, %v100
    %v127 = vcombine.high %v101, %v101
    %vm128 = vcmask 31744
    %v130 = vsel %vm128, %v92, 0
    %v133 = vsel %vm128, %v93, 0
    %v136 = vsel %vm128, %v94, 0
    %v139 = vsel %vm128, %v95, 0
    %v142 = vsel %vm128, %v96, 0
    %v145 = vsel %vm128, %v97, 0
    %v148 = vsel %vm128, %v98, 0
    %v151 = vsel %vm128, %v99, 0
    %vm153 = vcmask 1043456
    %v154 = vsel %vm153, %v100, 0
    %v156 = vsel %vm153, %v126, 0
    %v158 = vsel %vm153, %v101, 0
    %v160 = vsel %vm153, %v127, 0
    %162 = vmatprep.subr.mxu0 0.0
    %163 = vmatpush1.msra.mxu0 0.0
    %164 = vmatprep.subr.mxu0 0.0
    %165 = vmatpush1.msra.mxu0 0.0
    %166 = vmatprep.subr.mxu0 0.0
    %167 = vmatpush1.msra.mxu0 0.0
    %168 = vmatprep.subr.mxu0 0.0
    %169 = vmatpush1.msra.mxu0 0.0
    %170 = vmatprep.subr.mxu0 0.0
    %171 = vmatpush1.msra.mxu0 0.0
    %172 = vmatprep.subr.mxu0 0.0
    %173 = vmatpush1.msra.mxu0 0.0
    %174 = vmatprep.subr.mxu0 0.0
    %175 = vmatpush1.msra.mxu0 0.0
    %176 = vmatprep.subr.mxu0 0.0
    %177 = vmatpush1.msra.mxu0 0.0
    %178 = vmatprep.subr.mxu0 0.0
    %179 = vmatpush1.msra.mxu0 0.0
    %180 = vmatprep.subr.mxu0 0.0
    %181 = vmatpush1.msra.mxu0 0.0
    %182 = vmatprep.subr.mxu0 0.0
    %183 = vmatpush1.msra.mxu0 0.0
    %184 = vmatprep.subr.mxu0 0.0
    %185 = vmatpush1.msra.mxu0 0.0
    %186 = vmatprep.subr.mxu0 0.0
    %187 = vmatpush1.msra.mxu0 0.0
    %188 = vmatprep.subr.mxu0 0.0
    %189 = vmatpush1.msra.mxu0 0.0
    %190 = vmatprep.subr.mxu0 0.0
    %191 = vmatpush1.msra.mxu0 0.0
    %192 = vmatprep.subr.mxu0 %v156
    %193 = vmatpush1.msra.mxu0 %v154
    %194 = vmatprep.subr.mxu0 0.0
    %195 = vmatpush2.msra.mxu0 0.0
    %196 = vmatprep.subr.mxu0 0.0
    %197 = vmatpush2.msra.mxu0 0.0
    %198 = vmatprep.subr.mxu0 0.0
    %199 = vmatpush2.msra.mxu0 0.0
    %200 = vmatprep.subr.mxu0 0.0
    %201 = vmatpush2.msra.mxu0 0.0
    %202 = vmatprep.subr.mxu0 0.0
    %203 = vmatpush2.msra.mxu0 0.0
    %204 = vmatprep.subr.mxu0 0.0
    %205 = vmatpush2.msra.mxu0 0.0
    %206 = vmatprep.subr.mxu0 0.0
    %207 = vmatpush2.msra.mxu0 0.0
    %208 = vmatprep.subr.mxu0 0.0
    %209 = vmatpush2.msra.mxu0 0.0
    %210 = vmatprep.subr.mxu0 0.0
    %211 = vmatpush2.msra.mxu0 0.0
    %212 = vmatprep.subr.mxu0 0.0
    %213 = vmatpush2.msra.mxu0 0.0
    %214 = vmatprep.subr.mxu0 0.0
    %215 = vmatpush2.msra.mxu0 0.0
    %216 = vmatprep.subr.mxu0 0.0
    %217 = vmatpush2.msra.mxu0 0.0
    %218 = vmatprep.subr.mxu0 0.0
    %219 = vmatpush2.msra.mxu0 0.0
    %220 = vmatprep.subr.mxu0 0.0
    %221 = vmatpush2.msra.mxu0 0.0
    %222 = vmatprep.subr.mxu0 0.0
    %223 = vmatpush2.msra.mxu0 0.0
    %224 = vmatprep.subr.mxu0 0.0
    %225 = vmatpush2.msra.mxu0 0.0
    %226 = vmatprep.mubr.f32.mxu0 0.0
    %227 = vmatmul.mubr.f32.gmra.mxu0 %v130
    %v228 = vpop.f32.mrf.mxu0
    %v229 = vadd.f32 %v107, %v228
    %v230 = vpop.f32.mrf.mxu0
    %v231 = vadd.f32 %v111, %v230
    %232 = vmatprep.mubr.f32.mxu0 0.0
    %233 = vmatmul.mubr.f32.gmra.mxu0 %v133
    %v234 = vpop.f32.mrf.mxu0
    %v235 = vadd.f32 %v107, %v234
    %v236 = vpop.f32.mrf.mxu0
    %v237 = vadd.f32 %v111, %v236
    %238 = vmatprep.mubr.f32.mxu0 0.0
    %239 = vmatmul.mubr.f32.gmra.mxu0 %v136
    %v240 = vpop.f32.mrf.mxu0
    %v241 = vadd.f32 %v107, %v240
    %v242 = vpop.f32.mrf.mxu0
    %v243 = vadd.f32 %v111, %v242
    %244 = vmatprep.mubr.f32.mxu0 0.0
    %245 = vmatmul.mubr.f32.gmra.mxu0 %v139
    %v246 = vpop.f32.mrf.mxu0
    %v247 = vadd.f32 %v107, %v246
    %v248 = vpop.f32.mrf.mxu0
    %v249 = vadd.f32 %v111, %v248
    %250 = vmatprep.mubr.f32.mxu0 0.0
    %251 = vmatmul.mubr.f32.gmra.mxu0 %v142
    %v252 = vpop.f32.mrf.mxu0
    %v253 = vadd.f32 %v107, %v252
    %v254 = vpop.f32.mrf.mxu0
    %v255 = vadd.f32 %v111, %v254
    %256 = vmatprep.mubr.f32.mxu0 0.0
    %257 = vmatmul.mubr.f32.gmra.mxu0 %v145
    %v258 = vpop.f32.mrf.mxu0
    %v259 = vadd.f32 %v107, %v258
    %v260 = vpop.f32.mrf.mxu0
    %v261 = vadd.f32 %v111, %v260
    %262 = vmatprep.mubr.f32.mxu0 0.0
    %263 = vmatmul.mubr.f32.gmra.mxu0 %v148
    %v264 = vpop.f32.mrf.mxu0
    %v265 = vadd.f32 %v107, %v264
    %v266 = vpop.f32.mrf.mxu0
    %v267 = vadd.f32 %v111, %v266
    %268 = vmatprep.mubr.f32.mxu0 0.0
    %269 = vmatmul.mubr.f32.gmra.mxu0 %v151
    %v270 = vpop.f32.mrf.mxu0
    %v271 = vadd.f32 %v107, %v270
    %v272 = vpop.f32.mrf.mxu0
    %v273 = vadd.f32 %v111, %v272
    %274 = vdwg.mxu0
    %275 = vmatprep.subr.mxu0 0.0
    %276 = vmatpush1.msra.mxu0 0.0
    %277 = vmatprep.subr.mxu0 0.0
    %278 = vmatpush1.msra.mxu0 0.0
    %279 = vmatprep.subr.mxu0 0.0
    %280 = vmatpush1.msra.mxu0 0.0
    %281 = vmatprep.subr.mxu0 0.0
    %282 = vmatpush1.msra.mxu0 0.0
    %283 = vmatprep.subr.mxu0 0.0
    %284 = vmatpush1.msra.mxu0 0.0
    %285 = vmatprep.subr.mxu0 0.0
    %286 = vmatpush1.msra.mxu0 0.0
    %287 = vmatprep.subr.mxu0 0.0
    %288 = vmatpush1.msra.mxu0 0.0
    %289 = vmatprep.subr.mxu0 0.0
    %290 = vmatpush1.msra.mxu0 0.0
    %291 = vmatprep.subr.mxu0 0.0
    %292 = vmatpush1.msra.mxu0 0.0
    %293 = vmatprep.subr.mxu0 0.0
    %294 = vmatpush1.msra.mxu0 0.0
    %295 = vmatprep.subr.mxu0 0.0
    %296 = vmatpush1.msra.mxu0 0.0
    %297 = vmatprep.subr.mxu0 0.0
    %298 = vmatpush1.msra.mxu0 0.0
    %299 = vmatprep.subr.mxu0 0.0
    %300 = vmatpush1.msra.mxu0 0.0
    %301 = vmatprep.subr.mxu0 0.0
    %302 = vmatpush1.msra.mxu0 0.0
    %303 = vmatprep.subr.mxu0 0.0
    %304 = vmatpush1.msra.mxu0 0.0
    %305 = vmatprep.subr.mxu0 %v160
    %306 = vmatpush1.msra.mxu0 %v158
    %307 = vmatprep.subr.mxu0 0.0
    %308 = vmatpush2.msra.mxu0 0.0
    %309 = vmatprep.subr.mxu0 0.0
    %310 = vmatpush2.msra.mxu0 0.0
    %311 = vmatprep.subr.mxu0 0.0
    %312 = vmatpush2.msra.mxu0 0.0
    %313 = vmatprep.subr.mxu0 0.0
    %314 = vmatpush2.msra.mxu0 0.0
    %315 = vmatprep.subr.mxu0 0.0
    %316 = vmatpush2.msra.mxu0 0.0
    %317 = vmatprep.subr.mxu0 0.0
    %318 = vmatpush2.msra.mxu0 0.0
    %319 = vmatprep.subr.mxu0 0.0
    %320 = vmatpush2.msra.mxu0 0.0
    %321 = vmatprep.subr.mxu0 0.0
    %322 = vmatpush2.msra.mxu0 0.0
    %323 = vmatprep.subr.mxu0 0.0
    %324 = vmatpush2.msra.mxu0 0.0
    %325 = vmatprep.subr.mxu0 0.0
    %326 = vmatpush2.msra.mxu0 0.0
    %327 = vmatprep.subr.mxu0 0.0
    %328 = vmatpush2.msra.mxu0 0.0
    %329 = vmatprep.subr.mxu0 0.0
    %330 = vmatpush2.msra.mxu0 0.0
    %331 = vmatprep.subr.mxu0 0.0
    %332 = vmatpush2.msra.mxu0 0.0
    %333 = vmatprep.subr.mxu0 0.0
    %334 = vmatpush2.msra.mxu0 0.0
    %335 = vmatprep.subr.mxu0 0.0
    %336 = vmatpush2.msra.mxu0 0.0
    %337 = vmatprep.subr.mxu0 0.0
    %338 = vmatpush2.msra.mxu0 0.0
    %339 = vmatprep.mubr.f32.mxu0 0.0
    %340 = vmatmul.mubr.f32.gmra.mxu0 %v130
    %v341 = vpop.f32.mrf.mxu0
    %v342 = vadd.f32 %v115, %v341
    %v343 = vpop.f32.mrf.mxu0
    %v344 = vadd.f32 %v119, %v343
    %345 = vmatprep.mubr.f32.mxu0 0.0
    %346 = vmatmul.mubr.f32.gmra.mxu0 %v133
    %v347 = vpop.f32.mrf.mxu0
    %v348 = vadd.f32 %v115, %v347
    %v349 = vpop.f32.mrf.mxu0
    %v350 = vadd.f32 %v119, %v349
    %351 = vmatprep.mubr.f32.mxu0 0.0
    %352 = vmatmul.mubr.f32.gmra.mxu0 %v136
    %v353 = vpop.f32.mrf.mxu0
    %v354 = vadd.f32 %v115, %v353
    %v355 = vpop.f32.mrf.mxu0
    %v356 = vadd.f32 %v119, %v355
    %357 = vmatprep.mubr.f32.mxu0 0.0
    %358 = vmatmul.mubr.f32.gmra.mxu0 %v139
    %v359 = vpop.f32.mrf.mxu0
    %v360 = vadd.f32 %v115, %v359
    %v361 = vpop.f32.mrf.mxu0
    %v362 = vadd.f32 %v119, %v361
    %363 = vmatprep.mubr.f32.mxu0 0.0
    %364 = vmatmul.mubr.f32.gmra.mxu0 %v142
    %v365 = vpop.f32.mrf.mxu0
    %v366 = vadd.f32 %v115, %v365
    %v367 = vpop.f32.mrf.mxu0
    %v368 = vadd.f32 %v119, %v367
    %369 = vmatprep.mubr.f32.mxu0 0.0
    %370 = vmatmul.mubr.f32.gmra.mxu0 %v145
    %v371 = vpop.f32.mrf.mxu0
    %v372 = vadd.f32 %v115, %v371
    %v373 = vpop.f32.mrf.mxu0
    %v374 = vadd.f32 %v119, %v373
    %375 = vmatprep.mubr.f32.mxu0 0.0
    %376 = vmatmul.mubr.f32.gmra.mxu0 %v148
    %v377 = vpop.f32.mrf.mxu0
    %v378 = vadd.f32 %v115, %v377
    %v379 = vpop.f32.mrf.mxu0
    %v380 = vadd.f32 %v119, %v379
    %381 = vmatprep.mubr.f32.mxu0 0.0
    %382 = vmatmul.mubr.f32.gmra.mxu0 %v151
    %v383 = vpop.f32.mrf.mxu0
    %v384 = vadd.f32 %v115, %v383
    %v385 = vpop.f32.mrf.mxu0
    %v386 = vadd.f32 %v119, %v385
    %387 = vdwg.mxu0
    %v388 = vld [vmem:[#allocation3] sm:$0xff]
    %v389 = vld [vmem:[#allocation3 + $0x8] sm:$0xff]
    %v390 = vld [vmem:[#allocation3 + $0x10] sm:$0xff]
    %v391 = vld [vmem:[#allocation3 + $0x18] sm:$0xff]
    %v392 = vld [vmem:[#allocation3 + $0x20] sm:$0xff]
    %v393 = vld [vmem:[#allocation3 + $0x28] sm:$0xff]
    %v394 = vld [vmem:[#allocation3 + $0x30] sm:$0xff]
    %v395 = vld [vmem:[#allocation3 + $0x38] sm:$0xff]
    %v396 = vld [vmem:[#allocation3 + $0x40] sm:$0xff]
    %v397 = vld [vmem:[#allocation3 + $0x48] sm:$0xff]
    %v398 = vld [vmem:[#allocation3 + $0x50] sm:$0xff]
    %v399 = vld [vmem:[#allocation3 + $0x58] sm:$0xff]
    %v400 = vld [vmem:[#allocation3 + $0x60] sm:$0xff]
    %v401 = vld [vmem:[#allocation3 + $0x68] sm:$0xff]
    %v402 = vld [vmem:[#allocation3 + $0x70] sm:$0xff]
    %v403 = vld [vmem:[#allocation3 + $0x78] sm:$0xff]
    %v404 = vld [vmem:[#allocation3 + $0x80] sm:$0xff]
    %v405 = vld [vmem:[#allocation3 + $0x88] sm:$0xff]
    %v406 = vld [vmem:[#allocation3 + $0x90] sm:$0xff]
    %v407 = vld [vmem:[#allocation3 + $0x98] sm:$0xff]
    %v408 = vld [vmem:[#allocation3 + $0xa0] sm:$0xff]
    %v409 = vld [vmem:[#allocation3 + $0xa8] sm:$0xff]
    %v410 = vld [vmem:[#allocation3 + $0xb0] sm:$0xff]
    %v411 = vld [vmem:[#allocation3 + $0xb8] sm:$0xff]
    %v412 = vld [vmem:[#allocation3 + $0xc0] sm:$0xff]
    %v413 = vld [vmem:[#allocation3 + $0xc8] sm:$0xff]
    %v414 = vld [vmem:[#allocation3 + $0xd0] sm:$0xff]
    %v415 = vld [vmem:[#allocation3 + $0xd8] sm:$0xff]
    %v416 = vld [vmem:[#allocation3 + $0xe0] sm:$0xff]
    %v417 = vld [vmem:[#allocation3 + $0xe8] sm:$0xff]
    %v418 = vld [vmem:[#allocation3 + $0xf0] sm:$0xff]
    %v419 = vld [vmem:[#allocation3 + $0xf8] sm:$0xff]
    %v420 = vld [vmem:[#allocation3 + $0x100] sm:$0xff]
    %v421 = vld [vmem:[#allocation3 + $0x108] sm:$0xff]
    %v422 = vld [vmem:[#allocation3 + $0x110] sm:$0xff]
    %v423 = vld [vmem:[#allocation3 + $0x118] sm:$0xff]
    %v424 = vld [vmem:[#allocation3 + $0x120] sm:$0xff]
    %v425 = vld [vmem:[#allocation3 + $0x128] sm:$0xff]
    %v426 = vld [vmem:[#allocation3 + $0x130] sm:$0xff]
    %v427 = vld [vmem:[#allocation3 + $0x138] sm:$0xff]
    %v428 = vld [vmem:[#allocation3 + $0x140] sm:$0xff]
    %v429 = vld [vmem:[#allocation3 + $0x148] sm:$0xff]
    %v430 = vld [vmem:[#allocation3 + $0x150] sm:$0xff]
    %v431 = vld [vmem:[#allocation3 + $0x158] sm:$0xff]
    %v432 = vld [vmem:[#allocation3 + $0x160] sm:$0xff]
    %v433 = vld [vmem:[#allocation3 + $0x168] sm:$0xff]
    %v434 = vld [vmem:[#allocation3 + $0x170] sm:$0xff]
    %v435 = vld [vmem:[#allocation3 + $0x178] sm:$0xff]
    %v436 = vld [vmem:[#allocation3 + $0x180] sm:$0xff]
    %v437 = vld [vmem:[#allocation3 + $0x188] sm:$0xff]
    %v438 = vld [vmem:[#allocation3 + $0x190] sm:$0xff]
    %v439 = vld [vmem:[#allocation3 + $0x198] sm:$0xff]
    %v440 = vld [vmem:[#allocation3 + $0x1a0] sm:$0xff]
    %v441 = vld [vmem:[#allocation3 + $0x1a8] sm:$0xff]
    %v442 = vld [vmem:[#allocation3 + $0x1b0] sm:$0xff]
    %v443 = vld [vmem:[#allocation3 + $0x1b8] sm:$0xff]
    %v444 = vld [vmem:[#allocation3 + $0x1c0] sm:$0xff]
    %v445 = vld [vmem:[#allocation3 + $0x1c8] sm:$0xff]
    %v446 = vld [vmem:[#allocation3 + $0x1d0] sm:$0xff]
    %v447 = vld [vmem:[#allocation3 + $0x1d8] sm:$0xff]
    %v448 = vld [vmem:[#allocation3 + $0x1e0] sm:$0xff]
    %v449 = vld [vmem:[#allocation3 + $0x1e8] sm:$0xff]
    %v450 = vld [vmem:[#allocation3 + $0x1f0] sm:$0xff]
    %v451 = vld [vmem:[#allocation3 + $0x1f8] sm:$0xff]
    %v452 = vld [vmem:[#allocation5] sm:$0xff]
    %v453 = vld [vmem:[#allocation5 + $0x8] sm:$0xff]
    %v454 = vld [vmem:[#allocation5 + $0x10] sm:$0xff]
    %v455 = vld [vmem:[#allocation5 + $0x18] sm:$0xff]
    %v456 = vld [vmem:[#allocation5 + $0x20] sm:$0xff]
    %v457 = vld [vmem:[#allocation5 + $0x28] sm:$0xff]
    %v458 = vld [vmem:[#allocation5 + $0x30] sm:$0xff]
    %v459 = vld [vmem:[#allocation5 + $0x38] sm:$0xff]
    %v460 = vld [vmem:[#allocation5 + $0x40] sm:$0xff]
    %v461 = vld [vmem:[#allocation5 + $0x48] sm:$0xff]
    %v462 = vld [vmem:[#allocation5 + $0x50] sm:$0xff]
    %v463 = vld [vmem:[#allocation5 + $0x58] sm:$0xff]
    %v464 = vld [vmem:[#allocation5 + $0x60] sm:$0xff]
    %v465 = vld [vmem:[#allocation5 + $0x68] sm:$0xff]
    %v466 = vld [vmem:[#allocation5 + $0x70] sm:$0xff]
    %v467 = vld [vmem:[#allocation5 + $0x78] sm:$0xff]
    %v468 = vld [vmem:[#allocation5 + $0x80] sm:$0xff]
    %v469 = vld [vmem:[#allocation5 + $0x88] sm:$0xff]
    %v470 = vld [vmem:[#allocation5 + $0x90] sm:$0xff]
    %v471 = vld [vmem:[#allocation5 + $0x98] sm:$0xff]
    %v472 = vld [vmem:[#allocation5 + $0xa0] sm:$0xff]
    %v473 = vld [vmem:[#allocation5 + $0xa8] sm:$0xff]
    %v474 = vld [vmem:[#allocation5 + $0xb0] sm:$0xff]
    %v475 = vld [vmem:[#allocation5 + $0xb8] sm:$0xff]
    %v476 = vld [vmem:[#allocation5 + $0xc0] sm:$0xff]
    %v477 = vld [vmem:[#allocation5 + $0xc8] sm:$0xff]
    %v478 = vld [vmem:[#allocation5 + $0xd0] sm:$0xff]
    %v479 = vld [vmem:[#allocation5 + $0xd8] sm:$0xff]
    %v480 = vld [vmem:[#allocation5 + $0xe0] sm:$0xff]
    %v481 = vld [vmem:[#allocation5 + $0xe8] sm:$0xff]
    %v482 = vld [vmem:[#allocation5 + $0xf0] sm:$0xff]
    %v483 = vld [vmem:[#allocation5 + $0xf8] sm:$0xff]
    %v484 = vld [vmem:[#allocation5 + $0x100] sm:$0xff]
    %v485 = vld [vmem:[#allocation5 + $0x108] sm:$0xff]
    %v486 = vld [vmem:[#allocation5 + $0x110] sm:$0xff]
    %v487 = vld [vmem:[#allocation5 + $0x118] sm:$0xff]
    %v488 = vld [vmem:[#allocation5 + $0x120] sm:$0xff]
    %v489 = vld [vmem:[#allocation5 + $0x128] sm:$0xff]
    %v490 = vld [vmem:[#allocation5 + $0x130] sm:$0xff]
    %v491 = vld [vmem:[#allocation5 + $0x138] sm:$0xff]
    %v492 = vld [vmem:[#allocation5 + $0x140] sm:$0xff]
    %v493 = vld [vmem:[#allocation5 + $0x148] sm:$0xff]
    %v494 = vld [vmem:[#allocation5 + $0x150] sm:$0xff]
    %v495 = vld [vmem:[#allocation5 + $0x158] sm:$0xff]
    %v496 = vld [vmem:[#allocation5 + $0x160] sm:$0xff]
    %v497 = vld [vmem:[#allocation5 + $0x168] sm:$0xff]
    %v498 = vld [vmem:[#allocation5 + $0x170] sm:$0xff]
    %v499 = vld [vmem:[#allocation5 + $0x178] sm:$0xff]
    %v500 = vld [vmem:[#allocation5 + $0x180] sm:$0xff]
    %v501 = vld [vmem:[#allocation5 + $0x188] sm:$0xff]
    %v502 = vld [vmem:[#allocation5 + $0x190] sm:$0xff]
    %v503 = vld [vmem:[#allocation5 + $0x198] sm:$0xff]
    %v504 = vld [vmem:[#allocation5 + $0x1a0] sm:$0xff]
    %v505 = vld [vmem:[#allocation5 + $0x1a8] sm:$0xff]
    %v506 = vld [vmem:[#allocation5 + $0x1b0] sm:$0xff]
    %v507 = vld [vmem:[#allocation5 + $0x1b8] sm:$0xff]
    %v508 = vld [vmem:[#allocation5 + $0x1c0] sm:$0xff]
    %v509 = vld [vmem:[#allocation5 + $0x1c8] sm:$0xff]
    %v510 = vld [vmem:[#allocation5 + $0x1d0] sm:$0xff]
    %v511 = vld [vmem:[#allocation5 + $0x1d8] sm:$0xff]
    %v512 = vld [vmem:[#allocation5 + $0x1e0] sm:$0xff]
    %v513 = vld [vmem:[#allocation5 + $0x1e8] sm:$0xff]
    %v514 = vld [vmem:[#allocation5 + $0x1f0] sm:$0xff]
    %v515 = vld [vmem:[#allocation5 + $0x1f8] sm:$0xff]
    %v516 = vld [vmem:[#allocation5 + $0x200] sm:$0xff]
    %v517 = vld [vmem:[#allocation5 + $0x208] sm:$0xff]
    %v518 = vld [vmem:[#allocation5 + $0x210] sm:$0xff]
    %v519 = vld [vmem:[#allocation5 + $0x218] sm:$0xff]
    %v520 = vld [vmem:[#allocation5 + $0x220] sm:$0xff]
    %v521 = vld [vmem:[#allocation5 + $0x228] sm:$0xff]
    %v522 = vld [vmem:[#allocation5 + $0x230] sm:$0xff]
    %v523 = vld [vmem:[#allocation5 + $0x238] sm:$0xff]
    %v524 = vld [vmem:[#allocation5 + $0x240] sm:$0xff]
    %v525 = vld [vmem:[#allocation5 + $0x248] sm:$0xff]
    %v526 = vld [vmem:[#allocation5 + $0x250] sm:$0xff]
    %v527 = vld [vmem:[#allocation5 + $0x258] sm:$0xff]
    %v528 = vld [vmem:[#allocation5 + $0x260] sm:$0xff]
    %v529 = vld [vmem:[#allocation5 + $0x268] sm:$0xff]
    %v530 = vld [vmem:[#allocation5 + $0x270] sm:$0xff]
    %v531 = vld [vmem:[#allocation5 + $0x278] sm:$0xff]
    %v532 = vld [vmem:[#allocation5 + $0x280] sm:$0xff]
    %v533 = vld [vmem:[#allocation5 + $0x288] sm:$0xff]
    %v534 = vld [vmem:[#allocation5 + $0x290] sm:$0xff]
    %v535 = vld [vmem:[#allocation5 + $0x298] sm:$0xff]
    %v536 = vld [vmem:[#allocation5 + $0x2a0] sm:$0xff]
    %v537 = vld [vmem:[#allocation5 + $0x2a8] sm:$0xff]
    %v538 = vld [vmem:[#allocation5 + $0x2b0] sm:$0xff]
    %v539 = vld [vmem:[#allocation5 + $0x2b8] sm:$0xff]
    %v540 = vld [vmem:[#allocation5 + $0x2c0] sm:$0xff]
    %v541 = vld [vmem:[#allocation5 + $0x2c8] sm:$0xff]
    %v542 = vld [vmem:[#allocation5 + $0x2d0] sm:$0xff]
    %v543 = vld [vmem:[#allocation5 + $0x2d8] sm:$0xff]
    %v544 = vld [vmem:[#allocation5 + $0x2e0] sm:$0xff]
    %v545 = vld [vmem:[#allocation5 + $0x2e8] sm:$0xff]
    %v546 = vld [vmem:[#allocation5 + $0x2f0] sm:$0xff]
    %v547 = vld [vmem:[#allocation5 + $0x2f8] sm:$0xff]
    %v548 = vld [vmem:[#allocation5 + $0x300] sm:$0xff]
    %v549 = vld [vmem:[#allocation5 + $0x308] sm:$0xff]
    %v550 = vld [vmem:[#allocation5 + $0x310] sm:$0xff]
    %v551 = vld [vmem:[#allocation5 + $0x318] sm:$0xff]
    %v552 = vld [vmem:[#allocation5 + $0x320] sm:$0xff]
    %v553 = vld [vmem:[#allocation5 + $0x328] sm:$0xff]
    %v554 = vld [vmem:[#allocation5 + $0x330] sm:$0xff]
    %v555 = vld [vmem:[#allocation5 + $0x338] sm:$0xff]
    %v556 = vld [vmem:[#allocation5 + $0x340] sm:$0xff]
    %v557 = vld [vmem:[#allocation5 + $0x348] sm:$0xff]
    %v558 = vld [vmem:[#allocation5 + $0x350] sm:$0xff]
    %v559 = vld [vmem:[#allocation5 + $0x358] sm:$0xff]
    %v560 = vld [vmem:[#allocation5 + $0x360] sm:$0xff]
    %v561 = vld [vmem:[#allocation5 + $0x368] sm:$0xff]
    %v562 = vld [vmem:[#allocation5 + $0x370] sm:$0xff]
    %v563 = vld [vmem:[#allocation5 + $0x378] sm:$0xff]
    %v564 = vld [vmem:[#allocation5 + $0x380] sm:$0xff]
    %v565 = vld [vmem:[#allocation5 + $0x388] sm:$0xff]
    %v566 = vld [vmem:[#allocation5 + $0x390] sm:$0xff]
    %v567 = vld [vmem:[#allocation5 + $0x398] sm:$0xff]
    %v568 = vld [vmem:[#allocation5 + $0x3a0] sm:$0xff]
    %v569 = vld [vmem:[#allocation5 + $0x3a8] sm:$0xff]
    %v570 = vld [vmem:[#allocation5 + $0x3b0] sm:$0xff]
    %v571 = vld [vmem:[#allocation5 + $0x3b8] sm:$0xff]
    %v572 = vld [vmem:[#allocation5 + $0x3c0] sm:$0xff]
    %v573 = vld [vmem:[#allocation5 + $0x3c8] sm:$0xff]
    %v574 = vld [vmem:[#allocation5 + $0x3d0] sm:$0xff]
    %v575 = vld [vmem:[#allocation5 + $0x3d8] sm:$0xff]
    %v576 = vld [vmem:[#allocation5 + $0x3e0] sm:$0xff]
    %v577 = vld [vmem:[#allocation5 + $0x3e8] sm:$0xff]
    %v578 = vld [vmem:[#allocation5 + $0x3f0] sm:$0xff]
    %v579 = vld [vmem:[#allocation5 + $0x3f8] sm:$0xff]
    %v580 = vld [vmem:[%s5] sm:$0xf]
    %v582 = vlaneseq
    %v583 = vshrl.u32 %v582, 7
    %v584 = vsub.s32 0, %v583
    %v585 = vrot.slane %v580, %v584
    %v586 = vlaneseq
    %v587 = vshrl.u32 %v586, 7
    %v588 = vsub.s32 1, %v587
    %v589 = vrot.slane %v580, %v588
    %v590 = vlaneseq
    %v591 = vshrl.u32 %v590, 7
    %v592 = vsub.s32 2, %v591
    %v593 = vrot.slane %v580, %v592
    %v594 = vlaneseq
    %v595 = vshrl.u32 %v594, 7
    %v596 = vsub.s32 3, %v595
    %v597 = vrot.slane %v580, %v596
    %602 = vmatprep.subr.mxu0 %v449
    %603 = vmatpush1.msra.mxu0 %v448
    %604 = vmatprep.subr.mxu0 %v445
    %605 = vmatpush1.msra.mxu0 %v444
    %606 = vmatprep.subr.mxu0 %v441
    %607 = vmatpush1.msra.mxu0 %v440
    %608 = vmatprep.subr.mxu0 %v437
    %609 = vmatpush1.msra.mxu0 %v436
    %610 = vmatprep.subr.mxu0 %v433
    %611 = vmatpush1.msra.mxu0 %v432
    %612 = vmatprep.subr.mxu0 %v429
    %613 = vmatpush1.msra.mxu0 %v428
    %614 = vmatprep.subr.mxu0 %v425
    %615 = vmatpush1.msra.mxu0 %v424
    %616 = vmatprep.subr.mxu0 %v421
    %617 = vmatpush1.msra.mxu0 %v420
    %618 = vmatprep.subr.mxu0 %v417
    %619 = vmatpush1.msra.mxu0 %v416
    %620 = vmatprep.subr.mxu0 %v413
    %621 = vmatpush1.msra.mxu0 %v412
    %622 = vmatprep.subr.mxu0 %v409
    %623 = vmatpush1.msra.mxu0 %v408
    %624 = vmatprep.subr.mxu0 %v405
    %625 = vmatpush1.msra.mxu0 %v404
    %626 = vmatprep.subr.mxu0 %v401
    %627 = vmatpush1.msra.mxu0 %v400
    %628 = vmatprep.subr.mxu0 %v397
    %629 = vmatpush1.msra.mxu0 %v396
    %630 = vmatprep.subr.mxu0 %v393
    %631 = vmatpush1.msra.mxu0 %v392
    %632 = vmatprep.subr.mxu0 %v389
    %633 = vmatpush1.msra.mxu0 %v388
    %634 = vmatprep.subr.mxu0 0.0
    %635 = vmatpush2.msra.mxu0 0.0
    %636 = vmatprep.subr.mxu0 0.0
    %637 = vmatpush2.msra.mxu0 0.0
    %638 = vmatprep.subr.mxu0 0.0
    %639 = vmatpush2.msra.mxu0 0.0
    %640 = vmatprep.subr.mxu0 0.0
    %641 = vmatpush2.msra.mxu0 0.0
    %642 = vmatprep.subr.mxu0 0.0
    %643 = vmatpush2.msra.mxu0 0.0
    %644 = vmatprep.subr.mxu0 0.0
    %645 = vmatpush2.msra.mxu0 0.0
    %646 = vmatprep.subr.mxu0 0.0
    %647 = vmatpush2.msra.mxu0 0.0
    %648 = vmatprep.subr.mxu0 0.0
    %649 = vmatpush2.msra.mxu0 0.0
    %650 = vmatprep.subr.mxu0 0.0
    %651 = vmatpush2.msra.mxu0 0.0
    %652 = vmatprep.subr.mxu0 0.0
    %653 = vmatpush2.msra.mxu0 0.0
    %654 = vmatprep.subr.mxu0 0.0
    %655 = vmatpush2.msra.mxu0 0.0
    %656 = vmatprep.subr.mxu0 0.0
    %657 = vmatpush2.msra.mxu0 0.0
    %658 = vmatprep.subr.mxu0 0.0
    %659 = vmatpush2.msra.mxu0 0.0
    %660 = vmatprep.subr.mxu0 0.0
    %661 = vmatpush2.msra.mxu0 0.0
    %662 = vmatprep.subr.mxu0 0.0
    %663 = vmatpush2.msra.mxu0 0.0
    %664 = vmatprep.subr.mxu0 0.0
    %665 = vmatpush2.msra.mxu0 0.0
    %666 = vmatprep.mubr.f32.mxu0 0.0
    %667 = vmatmul.mubr.f32.gmra.mxu0 0.0
    %v668 = vpop.f32.mrf.mxu0
    %v669 = vadd.f32 0.0, %v668
    %v670 = vpop.f32.mrf.mxu0
    %v671 = vadd.f32 0.0, %v670
    %672 = vdwg.mxu0
    %673 = vmatprep.subr.mxu0 %v451
    %674 = vmatpush1.msra.mxu0 %v450
    %675 = vmatprep.subr.mxu0 %v447
    %676 = vmatpush1.msra.mxu0 %v446
    %677 = vmatprep.subr.mxu0 %v443
    %678 = vmatpush1.msra.mxu0 %v442
    %679 = vmatprep.subr.mxu0 %v439
    %680 = vmatpush1.msra.mxu0 %v438
    %681 = vmatprep.subr.mxu0 %v435
    %682 = vmatpush1.msra.mxu0 %v434
    %683 = vmatprep.subr.mxu0 %v431
    %684 = vmatpush1.msra.mxu0 %v430
    %685 = vmatprep.subr.mxu0 %v427
    %686 = vmatpush1.msra.mxu0 %v426
    %687 = vmatprep.subr.mxu0 %v423
    %688 = vmatpush1.msra.mxu0 %v422
    %689 = vmatprep.subr.mxu0 %v419
    %690 = vmatpush1.msra.mxu0 %v418
    %691 = vmatprep.subr.mxu0 %v415
    %692 = vmatpush1.msra.mxu0 %v414
    %693 = vmatprep.subr.mxu0 %v411
    %694 = vmatpush1.msra.mxu0 %v410
    %695 = vmatprep.subr.mxu0 %v407
    %696 = vmatpush1.msra.mxu0 %v406
    %697 = vmatprep.subr.mxu0 %v403
    %698 = vmatpush1.msra.mxu0 %v402
    %699 = vmatprep.subr.mxu0 %v399
    %700 = vmatpush1.msra.mxu0 %v398
    %701 = vmatprep.subr.mxu0 %v395
    %702 = vmatpush1.msra.mxu0 %v394
    %703 = vmatprep.subr.mxu0 %v391
    %704 = vmatpush1.msra.mxu0 %v390
    %705 = vmatprep.subr.mxu0 0.0
    %706 = vmatpush2.msra.mxu0 0.0
    %707 = vmatprep.subr.mxu0 0.0
    %708 = vmatpush2.msra.mxu0 0.0
    %709 = vmatprep.subr.mxu0 0.0
    %710 = vmatpush2.msra.mxu0 0.0
    %711 = vmatprep.subr.mxu0 0.0
    %712 = vmatpush2.msra.mxu0 0.0
    %713 = vmatprep.subr.mxu0 0.0
    %714 = vmatpush2.msra.mxu0 0.0
    %715 = vmatprep.subr.mxu0 0.0
    %716 = vmatpush2.msra.mxu0 0.0
    %717 = vmatprep.subr.mxu0 0.0
    %718 = vmatpush2.msra.mxu0 0.0
    %719 = vmatprep.subr.mxu0 0.0
    %720 = vmatpush2.msra.mxu0 0.0
    %721 = vmatprep.subr.mxu0 0.0
    %722 = vmatpush2.msra.mxu0 0.0
    %723 = vmatprep.subr.mxu0 0.0
    %724 = vmatpush2.msra.mxu0 0.0
    %725 = vmatprep.subr.mxu0 0.0
    %726 = vmatpush2.msra.mxu0 0.0
    %727 = vmatprep.subr.mxu0 0.0
    %728 = vmatpush2.msra.mxu0 0.0
    %729 = vmatprep.subr.mxu0 0.0
    %730 = vmatpush2.msra.mxu0 0.0
    %731 = vmatprep.subr.mxu0 0.0
    %732 = vmatpush2.msra.mxu0 0.0
    %733 = vmatprep.subr.mxu0 0.0
    %734 = vmatpush2.msra.mxu0 0.0
    %735 = vmatprep.subr.mxu0 0.0
    %736 = vmatpush2.msra.mxu0 0.0
    %737 = vmatprep.mubr.f32.mxu0 0.0
    %738 = vmatmul.mubr.f32.gmra.mxu0 0.0
    %v739 = vpop.f32.mrf.mxu0
    %v740 = vadd.f32 0.0, %v739
    %v741 = vpop.f32.mrf.mxu0
    %v742 = vadd.f32 0.0, %v741
    %743 = vdwg.mxu0
    %v744 = vadd.f32 %v229, %v669
    %v745 = vadd.f32 %v231, %v671
    %v746 = vadd.f32 %v342, %v740
    %v747 = vadd.f32 %v344, %v742
    %v748 = vxor.u32 %v744, 2147483648
    %v749 = vxor.u32 %v745, 2147483648
    %v750 = vxor.u32 %v746, 2147483648
    %v751 = vmul.f32 %v748, 1.442695
    %v752 = vpow.pop %v751
    %v753 = vmul.f32 %v749, 1.442695
    %v754 = vpow.pop %v753
    %v755 = vmul.f32 %v750, 1.442695
    %v756 = vpow.pop %v755
    %v757 = vadd.f32 %v752, 1.0
    %v758 = vadd.f32 %v754, 1.0
    %v759 = vadd.f32 %v756, 1.0
    %v760 = vrcp.pop %v757
    %v761 = vmul.f32 1.0, %v760
    %v762 = vrcp.pop %v758
    %v763 = vmul.f32 1.0, %v762
    %v764 = vrcp.pop %v759
    %v765 = vmul.f32 1.0, %v764
    %v766 = vtanh.pop %v747
    %v767 = vmul.f32 %v763, 0.0
    %v768 = vmul.f32 %v761, %v766
    %v769 = vadd.f32 %v767, %v768
    %v770 = vtanh.pop %v769
    %v771 = vmul.f32 %v765, %v770
    %772 = vmatprep.subr.mxu0 %v449
    %773 = vmatpush1.msra.mxu0 %v448
    %774 = vmatprep.subr.mxu0 %v445
    %775 = vmatpush1.msra.mxu0 %v444
    %776 = vmatprep.subr.mxu0 %v441
    %777 = vmatpush1.msra.mxu0 %v440
    %778 = vmatprep.subr.mxu0 %v437
    %779 = vmatpush1.msra.mxu0 %v436
    %780 = vmatprep.subr.mxu0 %v433
    %781 = vmatpush1.msra.mxu0 %v432
    %782 = vmatprep.subr.mxu0 %v429
    %783 = vmatpush1.msra.mxu0 %v428
    %784 = vmatprep.subr.mxu0 %v425
    %785 = vmatpush1.msra.mxu0 %v424
    %786 = vmatprep.subr.mxu0 %v421
    %787 = vmatpush1.msra.mxu0 %v420
    %788 = vmatprep.subr.mxu0 %v417
    %789 = vmatpush1.msra.mxu0 %v416
    %790 = vmatprep.subr.mxu0 %v413
    %791 = vmatpush1.msra.mxu0 %v412
    %792 = vmatprep.subr.mxu0 %v409
    %793 = vmatpush1.msra.mxu0 %v408
    %794 = vmatprep.subr.mxu0 %v405
    %795 = vmatpush1.msra.mxu0 %v404
    %796 = vmatprep.subr.mxu0 %v401
    %797 = vmatpush1.msra.mxu0 %v400
    %798 = vmatprep.subr.mxu0 %v397
    %799 = vmatpush1.msra.mxu0 %v396
    %800 = vmatprep.subr.mxu0 %v393
    %801 = vmatpush1.msra.mxu0 %v392
    %802 = vmatprep.subr.mxu0 %v389
    %803 = vmatpush1.msra.mxu0 %v388
    %804 = vmatprep.subr.mxu0 0.0
    %805 = vmatpush2.msra.mxu0 0.0
    %806 = vmatprep.subr.mxu0 0.0
    %807 = vmatpush2.msra.mxu0 0.0
    %808 = vmatprep.subr.mxu0 0.0
    %809 = vmatpush2.msra.mxu0 0.0
    %810 = vmatprep.subr.mxu0 0.0
    %811 = vmatpush2.msra.mxu0 0.0
    %812 = vmatprep.subr.mxu0 0.0
    %813 = vmatpush2.msra.mxu0 0.0
    %814 = vmatprep.subr.mxu0 0.0
    %815 = vmatpush2.msra.mxu0 0.0
    %816 = vmatprep.subr.mxu0 0.0
    %817 = vmatpush2.msra.mxu0 0.0
    %818 = vmatprep.subr.mxu0 0.0
    %819 = vmatpush2.msra.mxu0 0.0
    %820 = vmatprep.subr.mxu0 0.0
    %821 = vmatpush2.msra.mxu0 0.0
    %822 = vmatprep.subr.mxu0 0.0
    %823 = vmatpush2.msra.mxu0 0.0
    %824 = vmatprep.subr.mxu0 0.0
    %825 = vmatpush2.msra.mxu0 0.0
    %826 = vmatprep.subr.mxu0 0.0
    %827 = vmatpush2.msra.mxu0 0.0
    %828 = vmatprep.subr.mxu0 0.0
    %829 = vmatpush2.msra.mxu0 0.0
    %830 = vmatprep.subr.mxu0 0.0
    %831 = vmatpush2.msra.mxu0 0.0
    %832 = vmatprep.subr.mxu0 0.0
    %833 = vmatpush2.msra.mxu0 0.0
    %834 = vmatprep.subr.mxu0 0.0
    %835 = vmatpush2.msra.mxu0 0.0
    %836 = vmatprep.mubr.f32.mxu0 0.0
    %837 = vmatmul.mubr.f32.gmra.mxu0 %v771
    %v838 = vpop.f32.mrf.mxu0
    %v839 = vadd.f32 0.0, %v838
    %v840 = vpop.f32.mrf.mxu0
    %v841 = vadd.f32 0.0, %v840
    %842 = vdwg.mxu0
    %843 = vmatprep.subr.mxu0 %v451
    %844 = vmatpush1.msra.mxu0 %v450
    %845 = vmatprep.subr.mxu0 %v447
    %846 = vmatpush1.msra.mxu0 %v446
    %847 = vmatprep.subr.mxu0 %v443
    %848 = vmatpush1.msra.mxu0 %v442
    %849 = vmatprep.subr.mxu0 %v439
    %850 = vmatpush1.msra.mxu0 %v438
    %851 = vmatprep.subr.mxu0 %v435
    %852 = vmatpush1.msra.mxu0 %v434
    %853 = vmatprep.subr.mxu0 %v431
    %854 = vmatpush1.msra.mxu0 %v430
    %855 = vmatprep.subr.mxu0 %v427
    %856 = vmatpush1.msra.mxu0 %v426
    %857 = vmatprep.subr.mxu0 %v423
    %858 = vmatpush1.msra.mxu0 %v422
    %859 = vmatprep.subr.mxu0 %v419
    %860 = vmatpush1.msra.mxu0 %v418
    %861 = vmatprep.subr.mxu0 %v415
    %862 = vmatpush1.msra.mxu0 %v414
    %863 = vmatprep.subr.mxu0 %v411
    %864 = vmatpush1.msra.mxu0 %v410
    %865 = vmatprep.subr.mxu0 %v407
    %866 = vmatpush1.msra.mxu0 %v406
    %867 = vmatprep.subr.mxu0 %v403
    %868 = vmatpush1.msra.mxu0 %v402
    %869 = vmatprep.subr.mxu0 %v399
    %870 = vmatpush1.msra.mxu0 %v398
    %871 = vmatprep.subr.mxu0 %v395
    %872 = vmatpush1.msra.mxu0 %v394
    %873 = vmatprep.subr.mxu0 %v391
    %874 = vmatpush1.msra.mxu0 %v390
    %875 = vmatprep.subr.mxu0 0.0
    %876 = vmatpush2.msra.mxu0 0.0
    %877 = vmatprep.subr.mxu0 0.0
    %878 = vmatpush2.msra.mxu0 0.0
    %879 = vmatprep.subr.mxu0 0.0
    %880 = vmatpush2.msra.mxu0 0.0
    %881 = vmatprep.subr.mxu0 0.0
    %882 = vmatpush2.msra.mxu0 0.0
    %883 = vmatprep.subr.mxu0 0.0
    %884 = vmatpush2.msra.mxu0 0.0
    %885 = vmatprep.subr.mxu0 0.0
    %886 = vmatpush2.msra.mxu0 0.0
    %887 = vmatprep.subr.mxu0 0.0
    %888 = vmatpush2.msra.mxu0 0.0
    %889 = vmatprep.subr.mxu0 0.0
    %890 = vmatpush2.msra.mxu0 0.0
    %891 = vmatprep.subr.mxu0 0.0
    %892 = vmatpush2.msra.mxu0 0.0
    %893 = vmatprep.subr.mxu0 0.0
    %894 = vmatpush2.msra.mxu0 0.0
    %895 = vmatprep.subr.mxu0 0.0
    %896 = vmatpush2.msra.mxu0 0.0
    %897 = vmatprep.subr.mxu0 0.0
    %898 = vmatpush2.msra.mxu0 0.0
    %899 = vmatprep.subr.mxu0 0.0
    %900 = vmatpush2.msra.mxu0 0.0
    %901 = vmatprep.subr.mxu0 0.0
    %902 = vmatpush2.msra.mxu0 0.0
    %903 = vmatprep.subr.mxu0 0.0
    %904 = vmatpush2.msra.mxu0 0.0
    %905 = vmatprep.subr.mxu0 0.0
    %906 = vmatpush2.msra.mxu0 0.0
    %907 = vmatprep.mubr.f32.mxu0 0.0
    %908 = vmatmul.mubr.f32.gmra.mxu0 %v771
    %v909 = vpop.f32.mrf.mxu0
    %v910 = vadd.f32 0.0, %v909
    %v911 = vpop.f32.mrf.mxu0
    %v912 = vadd.f32 0.0, %v911
    %913 = vdwg.mxu0
    %v914 = vadd.f32 %v235, %v839
    %v915 = vadd.f32 %v237, %v841
    %v916 = vadd.f32 %v348, %v910
    %v917 = vadd.f32 %v350, %v912
    %v918 = vxor.u32 %v914, 2147483648
    %v919 = vxor.u32 %v915, 2147483648
    %v920 = vxor.u32 %v916, 2147483648
    %v921 = vmul.f32 %v918, 1.442695
    %v922 = vpow.pop %v921
    %v923 = vmul.f32 %v919, 1.442695
    %v924 = vpow.pop %v923
    %v925 = vmul.f32 %v920, 1.442695
    %v926 = vpow.pop %v925
    %v927 = vadd.f32 %v922, 1.0
    %v928 = vadd.f32 %v924, 1.0
    %v929 = vadd.f32 %v926, 1.0
    %v930 = vrcp.pop %v927
    %v931 = vmul.f32 1.0, %v930
    %v932 = vrcp.pop %v928
    %v933 = vmul.f32 1.0, %v932
    %v934 = vrcp.pop %v929
    %v935 = vmul.f32 1.0, %v934
    %v936 = vtanh.pop %v917
    %v937 = vmul.f32 %v933, %v769
    %v938 = vmul.f32 %v931, %v936
    %v939 = vadd.f32 %v937, %v938
    %v940 = vtanh.pop %v939
    %v941 = vmul.f32 %v935, %v940
    %942 = vmatprep.subr.mxu0 %v513
    %943 = vmatpush1.msra.mxu0 %v512
    %944 = vmatprep.subr.mxu0 %v509
    %945 = vmatpush1.msra.mxu0 %v508
    %946 = vmatprep.subr.mxu0 %v505
    %947 = vmatpush1.msra.mxu0 %v504
    %948 = vmatprep.subr.mxu0 %v501
    %949 = vmatpush1.msra.mxu0 %v500
    %950 = vmatprep.subr.mxu0 %v497
    %951 = vmatpush1.msra.mxu0 %v496
    %952 = vmatprep.subr.mxu0 %v493
    %953 = vmatpush1.msra.mxu0 %v492
    %954 = vmatprep.subr.mxu0 %v489
    %955 = vmatpush1.msra.mxu0 %v488
    %956 = vmatprep.subr.mxu0 %v485
    %957 = vmatpush1.msra.mxu0 %v484
    %958 = vmatprep.subr.mxu0 %v481
    %959 = vmatpush1.msra.mxu0 %v480
    %960 = vmatprep.subr.mxu0 %v477
    %961 = vmatpush1.msra.mxu0 %v476
    %962 = vmatprep.subr.mxu0 %v473
    %963 = vmatpush1.msra.mxu0 %v472
    %964 = vmatprep.subr.mxu0 %v469
    %965 = vmatpush1.msra.mxu0 %v468
    %966 = vmatprep.subr.mxu0 %v465
    %967 = vmatpush1.msra.mxu0 %v464
    %968 = vmatprep.subr.mxu0 %v461
    %969 = vmatpush1.msra.mxu0 %v460
    %970 = vmatprep.subr.mxu0 %v457
    %971 = vmatpush1.msra.mxu0 %v456
    %972 = vmatprep.subr.mxu0 %v453
    %973 = vmatpush1.msra.mxu0 %v452
    %974 = vmatprep.subr.mxu0 %v577
    %975 = vmatpush2.msra.mxu0 %v576
    %976 = vmatprep.subr.mxu0 %v573
    %977 = vmatpush2.msra.mxu0 %v572
    %978 = vmatprep.subr.mxu0 %v569
    %979 = vmatpush2.msra.mxu0 %v568
    %980 = vmatprep.subr.mxu0 %v565
    %981 = vmatpush2.msra.mxu0 %v564
    %982 = vmatprep.subr.mxu0 %v561
    %983 = vmatpush2.msra.mxu0 %v560
    %984 = vmatprep.subr.mxu0 %v557
    %985 = vmatpush2.msra.mxu0 %v556
    %986 = vmatprep.subr.mxu0 %v553
    %987 = vmatpush2.msra.mxu0 %v552
    %988 = vmatprep.subr.mxu0 %v549
    %989 = vmatpush2.msra.mxu0 %v548
    %990 = vmatprep.subr.mxu0 %v545
    %991 = vmatpush2.msra.mxu0 %v544
    %992 = vmatprep.subr.mxu0 %v541
    %993 = vmatpush2.msra.mxu0 %v540
    %994 = vmatprep.subr.mxu0 %v537
    %995 = vmatpush2.msra.mxu0 %v536
    %996 = vmatprep.subr.mxu0 %v533
    %997 = vmatpush2.msra.mxu0 %v532
    %998 = vmatprep.subr.mxu0 %v529
    %999 = vmatpush2.msra.mxu0 %v528
    %1000 = vmatprep.subr.mxu0 %v525
    %1001 = vmatpush2.msra.mxu0 %v524
    %1002 = vmatprep.subr.mxu0 %v521
    %1003 = vmatpush2.msra.mxu0 %v520
    %1004 = vmatprep.subr.mxu0 %v517
    %1005 = vmatpush2.msra.mxu0 %v516
    %1006 = vmatprep.mubr.f32.mxu0 0.0
    %1007 = vmatmul.mubr.f32.gmra.mxu0 %v771
    %v1008 = vpop.f32.mrf.mxu0
    %v1009 = vadd.f32 %v585, %v1008
    %v1010 = vpop.f32.mrf.mxu0
    %v1011 = vadd.f32 %v589, %v1010
    %1012 = vdwg.mxu0
    %1013 = vmatprep.subr.mxu0 %v515
    %1014 = vmatpush1.msra.mxu0 %v514
    %1015 = vmatprep.subr.mxu0 %v511
    %1016 = vmatpush1.msra.mxu0 %v510
    %1017 = vmatprep.subr.mxu0 %v507
    %1018 = vmatpush1.msra.mxu0 %v506
    %1019 = vmatprep.subr.mxu0 %v503
    %1020 = vmatpush1.msra.mxu0 %v502
    %1021 = vmatprep.subr.mxu0 %v499
    %1022 = vmatpush1.msra.mxu0 %v498
    %1023 = vmatprep.subr.mxu0 %v495
    %1024 = vmatpush1.msra.mxu0 %v494
    %1025 = vmatprep.subr.mxu0 %v491
    %1026 = vmatpush1.msra.mxu0 %v490
    %1027 = vmatprep.subr.mxu0 %v487
    %1028 = vmatpush1.msra.mxu0 %v486
    %1029 = vmatprep.subr.mxu0 %v483
    %1030 = vmatpush1.msra.mxu0 %v482
    %1031 = vmatprep.subr.mxu0 %v479
    %1032 = vmatpush1.msra.mxu0 %v478
    %1033 = vmatprep.subr.mxu0 %v475
    %1034 = vmatpush1.msra.mxu0 %v474
    %1035 = vmatprep.subr.mxu0 %v471
    %1036 = vmatpush1.msra.mxu0 %v470
    %1037 = vmatprep.subr.mxu0 %v467
    %1038 = vmatpush1.msra.mxu0 %v466
    %1039 = vmatprep.subr.mxu0 %v463
    %1040 = vmatpush1.msra.mxu0 %v462
    %1041 = vmatprep.subr.mxu0 %v459
    %1042 = vmatpush1.msra.mxu0 %v458
    %1043 = vmatprep.subr.mxu0 %v455
    %1044 = vmatpush1.msra.mxu0 %v454
    %1045 = vmatprep.subr.mxu0 %v579
    %1046 = vmatpush2.msra.mxu0 %v578
    %1047 = vmatprep.subr.mxu0 %v575
    %1048 = vmatpush2.msra.mxu0 %v574
    %1049 = vmatprep.subr.mxu0 %v571
    %1050 = vmatpush2.msra.mxu0 %v570
    %1051 = vmatprep.subr.mxu0 %v567
    %1052 = vmatpush2.msra.mxu0 %v566
    %1053 = vmatprep.subr.mxu0 %v563
    %1054 = vmatpush2.msra.mxu0 %v562
    %1055 = vmatprep.subr.mxu0 %v559
    %1056 = vmatpush2.msra.mxu0 %v558
    %1057 = vmatprep.subr.mxu0 %v555
    %1058 = vmatpush2.msra.mxu0 %v554
    %1059 = vmatprep.subr.mxu0 %v551
    %1060 = vmatpush2.msra.mxu0 %v550
    %1061 = vmatprep.subr.mxu0 %v547
    %1062 = vmatpush2.msra.mxu0 %v546
    %1063 = vmatprep.subr.mxu0 %v543
    %1064 = vmatpush2.msra.mxu0 %v542
    %1065 = vmatprep.subr.mxu0 %v539
    %1066 = vmatpush2.msra.mxu0 %v538
    %1067 = vmatprep.subr.mxu0 %v535
    %1068 = vmatpush2.msra.mxu0 %v534
    %1069 = vmatprep.subr.mxu0 %v531
    %1070 = vmatpush2.msra.mxu0 %v530
    %1071 = vmatprep.subr.mxu0 %v527
    %1072 = vmatpush2.msra.mxu0 %v526
    %1073 = vmatprep.subr.mxu0 %v523
    %1074 = vmatpush2.msra.mxu0 %v522
    %1075 = vmatprep.subr.mxu0 %v519
    %1076 = vmatpush2.msra.mxu0 %v518
    %1077 = vmatprep.mubr.f32.mxu0 0.0
    %1078 = vmatmul.mubr.f32.gmra.mxu0 %v771
    %v1079 = vpop.f32.mrf.mxu0
    %v1080 = vadd.f32 %v593, %v1079
    %v1081 = vpop.f32.mrf.mxu0
    %v1082 = vadd.f32 %v597, %v1081
    %1083 = vdwg.mxu0
    %v1084 = vxor.u32 %v1009, 2147483648
    %v1085 = vxor.u32 %v1011, 2147483648
    %v1086 = vxor.u32 %v1080, 2147483648
    %v1087 = vmul.f32 %v1084, 1.442695
    %v1088 = vpow.pop %v1087
    %v1089 = vmul.f32 %v1085, 1.442695
    %v1090 = vpow.pop %v1089
    %v1091 = vmul.f32 %v1086, 1.442695
    %v1092 = vpow.pop %v1091
    %v1093 = vadd.f32 %v1088, 1.0
    %v1094 = vadd.f32 %v1090, 1.0
    %v1095 = vadd.f32 %v1092, 1.0
    %v1096 = vrcp.pop %v1093
    %v1097 = vmul.f32 1.0, %v1096
    %v1098 = vrcp.pop %v1094
    %v1099 = vmul.f32 1.0, %v1098
    %v1100 = vrcp.pop %v1095
    %v1101 = vmul.f32 1.0, %v1100
    %v1102 = vtanh.pop %v1082
    %v1103 = vmul.f32 %v1099, 0.0
    %v1104 = vmul.f32 %v1097, %v1102
    %v1105 = vadd.f32 %v1103, %v1104
    %v1106 = vtanh.pop %v1105
    %v1107 = vmul.f32 %v1101, %v1106
    %1108 = vmatprep.subr.mxu0 %v449
    %1109 = vmatpush1.msra.mxu0 %v448
    %1110 = vmatprep.subr.mxu0 %v445
    %1111 = vmatpush1.msra.mxu0 %v444
    %1112 = vmatprep.subr.mxu0 %v441
    %1113 = vmatpush1.msra.mxu0 %v440
    %1114 = vmatprep.subr.mxu0 %v437
    %1115 = vmatpush1.msra.mxu0 %v436
    %1116 = vmatprep.subr.mxu0 %v433
    %1117 = vmatpush1.msra.mxu0 %v432
    %1118 = vmatprep.subr.mxu0 %v429
    %1119 = vmatpush1.msra.mxu0 %v428
    %1120 = vmatprep.subr.mxu0 %v425
    %1121 = vmatpush1.msra.mxu0 %v424
    %1122 = vmatprep.subr.mxu0 %v421
    %1123 = vmatpush1.msra.mxu0 %v420
    %1124 = vmatprep.subr.mxu0 %v417
    %1125 = vmatpush1.msra.mxu0 %v416
    %1126 = vmatprep.subr.mxu0 %v413
    %1127 = vmatpush1.msra.mxu0 %v412
    %1128 = vmatprep.subr.mxu0 %v409
    %1129 = vmatpush1.msra.mxu0 %v408
    %1130 = vmatprep.subr.mxu0 %v405
    %1131 = vmatpush1.msra.mxu0 %v404
    %1132 = vmatprep.subr.mxu0 %v401
    %1133 = vmatpush1.msra.mxu0 %v400
    %1134 = vmatprep.subr.mxu0 %v397
    %1135 = vmatpush1.msra.mxu0 %v396
    %1136 = vmatprep.subr.mxu0 %v393
    %1137 = vmatpush1.msra.mxu0 %v392
    %1138 = vmatprep.subr.mxu0 %v389
    %1139 = vmatpush1.msra.mxu0 %v388
    %1140 = vmatprep.subr.mxu0 0.0
    %1141 = vmatpush2.msra.mxu0 0.0
    %1142 = vmatprep.subr.mxu0 0.0
    %1143 = vmatpush2.msra.mxu0 0.0
    %1144 = vmatprep.subr.mxu0 0.0
    %1145 = vmatpush2.msra.mxu0 0.0
    %1146 = vmatprep.subr.mxu0 0.0
    %1147 = vmatpush2.msra.mxu0 0.0
    %1148 = vmatprep.subr.mxu0 0.0
    %1149 = vmatpush2.msra.mxu0 0.0
    %1150 = vmatprep.subr.mxu0 0.0
    %1151 = vmatpush2.msra.mxu0 0.0
    %1152 = vmatprep.subr.mxu0 0.0
    %1153 = vmatpush2.msra.mxu0 0.0
    %1154 = vmatprep.subr.mxu0 0.0
    %1155 = vmatpush2.msra.mxu0 0.0
    %1156 = vmatprep.subr.mxu0 0.0
    %1157 = vmatpush2.msra.mxu0 0.0
    %1158 = vmatprep.subr.mxu0 0.0
    %1159 = vmatpush2.msra.mxu0 0.0
    %1160 = vmatprep.subr.mxu0 0.0
    %1161 = vmatpush2.msra.mxu0 0.0
    %1162 = vmatprep.subr.mxu0 0.0
    %1163 = vmatpush2.msra.mxu0 0.0
    %1164 = vmatprep.subr.mxu0 0.0
    %1165 = vmatpush2.msra.mxu0 0.0
    %1166 = vmatprep.subr.mxu0 0.0
    %1167 = vmatpush2.msra.mxu0 0.0
    %1168 = vmatprep.subr.mxu0 0.0
    %1169 = vmatpush2.msra.mxu0 0.0
    %1170 = vmatprep.subr.mxu0 0.0
    %1171 = vmatpush2.msra.mxu0 0.0
    %1172 = vmatprep.mubr.f32.mxu0 0.0
    %1173 = vmatmul.mubr.f32.gmra.mxu0 %v941
    %v1174 = vpop.f32.mrf.mxu0
    %v1175 = vadd.f32 0.0, %v1174
    %v1176 = vpop.f32.mrf.mxu0
    %v1177 = vadd.f32 0.0, %v1176
    %1178 = vdwg.mxu0
    %1179 = vmatprep.subr.mxu0 %v451
    %1180 = vmatpush1.msra.mxu0 %v450
    %1181 = vmatprep.subr.mxu0 %v447
    %1182 = vmatpush1.msra.mxu0 %v446
    %1183 = vmatprep.subr.mxu0 %v443
    %1184 = vmatpush1.msra.mxu0 %v442
    %1185 = vmatprep.subr.mxu0 %v439
    %1186 = vmatpush1.msra.mxu0 %v438
    %1187 = vmatprep.subr.mxu0 %v435
    %1188 = vmatpush1.msra.mxu0 %v434
    %1189 = vmatprep.subr.mxu0 %v431
    %1190 = vmatpush1.msra.mxu0 %v430
    %1191 = vmatprep.subr.mxu0 %v427
    %1192 = vmatpush1.msra.mxu0 %v426
    %1193 = vmatprep.subr.mxu0 %v423
    %1194 = vmatpush1.msra.mxu0 %v422
    %1195 = vmatprep.subr.mxu0 %v419
    %1196 = vmatpush1.msra.mxu0 %v418
    %1197 = vmatprep.subr.mxu0 %v415
    %1198 = vmatpush1.msra.mxu0 %v414
    %1199 = vmatprep.subr.mxu0 %v411
    %1200 = vmatpush1.msra.mxu0 %v410
    %1201 = vmatprep.subr.mxu0 %v407
    %1202 = vmatpush1.msra.mxu0 %v406
    %1203 = vmatprep.subr.mxu0 %v403
    %1204 = vmatpush1.msra.mxu0 %v402
    %1205 = vmatprep.subr.mxu0 %v399
    %1206 = vmatpush1.msra.mxu0 %v398
    %1207 = vmatprep.subr.mxu0 %v395
    %1208 = vmatpush1.msra.mxu0 %v394
    %1209 = vmatprep.subr.mxu0 %v391
    %1210 = vmatpush1.msra.mxu0 %v390
    %1211 = vmatprep.subr.mxu0 0.0
    %1212 = vmatpush2.msra.mxu0 0.0
    %1213 = vmatprep.subr.mxu0 0.0
    %1214 = vmatpush2.msra.mxu0 0.0
    %1215 = vmatprep.subr.mxu0 0.0
    %1216 = vmatpush2.msra.mxu0 0.0
    %1217 = vmatprep.subr.mxu0 0.0
    %1218 = vmatpush2.msra.mxu0 0.0
    %1219 = vmatprep.subr.mxu0 0.0
    %1220 = vmatpush2.msra.mxu0 0.0
    %1221 = vmatprep.subr.mxu0 0.0
    %1222 = vmatpush2.msra.mxu0 0.0
    %1223 = vmatprep.subr.mxu0 0.0
    %1224 = vmatpush2.msra.mxu0 0.0
    %1225 = vmatprep.subr.mxu0 0.0
    %1226 = vmatpush2.msra.mxu0 0.0
    %1227 = vmatprep.subr.mxu0 0.0
    %1228 = vmatpush2.msra.mxu0 0.0
    %1229 = vmatprep.subr.mxu0 0.0
    %1230 = vmatpush2.msra.mxu0 0.0
    %1231 = vmatprep.subr.mxu0 0.0
    %1232 = vmatpush2.msra.mxu0 0.0
    %1233 = vmatprep.subr.mxu0 0.0
    %1234 = vmatpush2.msra.mxu0 0.0
    %1235 = vmatprep.subr.mxu0 0.0
    %1236 = vmatpush2.msra.mxu0 0.0
    %1237 = vmatprep.subr.mxu0 0.0
    %1238 = vmatpush2.msra.mxu0 0.0
    %1239 = vmatprep.subr.mxu0 0.0
    %1240 = vmatpush2.msra.mxu0 0.0
    %1241 = vmatprep.subr.mxu0 0.0
    %1242 = vmatpush2.msra.mxu0 0.0
    %1243 = vmatprep.mubr.f32.mxu0 0.0
    %1244 = vmatmul.mubr.f32.gmra.mxu0 %v941
    %v1245 = vpop.f32.mrf.mxu0
    %v1246 = vadd.f32 0.0, %v1245
    %v1247 = vpop.f32.mrf.mxu0
    %v1248 = vadd.f32 0.0, %v1247
    %1249 = vdwg.mxu0
    %v1250 = vadd.f32 %v241, %v1175
    %v1251 = vadd.f32 %v243, %v1177
    %v1252 = vadd.f32 %v354, %v1246
    %v1253 = vadd.f32 %v356, %v1248
    %v1254 = vxor.u32 %v1250, 2147483648
    %v1255 = vxor.u32 %v1251, 2147483648
    %v1256 = vxor.u32 %v1252, 2147483648
    %v1257 = vmul.f32 %v1254, 1.442695
    %v1258 = vpow.pop %v1257
    %v1259 = vmul.f32 %v1255, 1.442695
    %v1260 = vpow.pop %v1259
    %v1261 = vmul.f32 %v1256, 1.442695
    %v1262 = vpow.pop %v1261
    %v1263 = vadd.f32 %v1258, 1.0
    %v1264 = vadd.f32 %v1260, 1.0
    %v1265 = vadd.f32 %v1262, 1.0
    %v1266 = vrcp.pop %v1263
    %v1267 = vmul.f32 1.0, %v1266
    %v1268 = vrcp.pop %v1264
    %v1269 = vmul.f32 1.0, %v1268
    %v1270 = vrcp.pop %v1265
    %v1271 = vmul.f32 1.0, %v1270
    %v1272 = vtanh.pop %v1253
    %v1273 = vmul.f32 %v1269, %v939
    %v1274 = vmul.f32 %v1267, %v1272
    %v1275 = vadd.f32 %v1273, %v1274
    %v1276 = vtanh.pop %v1275
    %v1277 = vmul.f32 %v1271, %v1276
    %1278 = vmatprep.subr.mxu0 %v513
    %1279 = vmatpush1.msra.mxu0 %v512
    %1280 = vmatprep.subr.mxu0 %v509
    %1281 = vmatpush1.msra.mxu0 %v508
    %1282 = vmatprep.subr.mxu0 %v505
    %1283 = vmatpush1.msra.mxu0 %v504
    %1284 = vmatprep.subr.mxu0 %v501
    %1285 = vmatpush1.msra.mxu0 %v500
    %1286 = vmatprep.subr.mxu0 %v497
    %1287 = vmatpush1.msra.mxu0 %v496
    %1288 = vmatprep.subr.mxu0 %v493
    %1289 = vmatpush1.msra.mxu0 %v492
    %1290 = vmatprep.subr.mxu0 %v489
    %1291 = vmatpush1.msra.mxu0 %v488
    %1292 = vmatprep.subr.mxu0 %v485
    %1293 = vmatpush1.msra.mxu0 %v484
    %1294 = vmatprep.subr.mxu0 %v481
    %1295 = vmatpush1.msra.mxu0 %v480
    %1296 = vmatprep.subr.mxu0 %v477
    %1297 = vmatpush1.msra.mxu0 %v476
    %1298 = vmatprep.subr.mxu0 %v473
    %1299 = vmatpush1.msra.mxu0 %v472
    %1300 = vmatprep.subr.mxu0 %v469
    %1301 = vmatpush1.msra.mxu0 %v468
    %1302 = vmatprep.subr.mxu0 %v465
    %1303 = vmatpush1.msra.mxu0 %v464
    %1304 = vmatprep.subr.mxu0 %v461
    %1305 = vmatpush1.msra.mxu0 %v460
    %1306 = vmatprep.subr.mxu0 %v457
    %1307 = vmatpush1.msra.mxu0 %v456
    %1308 = vmatprep.subr.mxu0 %v453
    %1309 = vmatpush1.msra.mxu0 %v452
    %1310 = vmatprep.subr.mxu0 %v577
    %1311 = vmatpush2.msra.mxu0 %v576
    %1312 = vmatprep.subr.mxu0 %v573
    %1313 = vmatpush2.msra.mxu0 %v572
    %1314 = vmatprep.subr.mxu0 %v569
    %1315 = vmatpush2.msra.mxu0 %v568
    %1316 = vmatprep.subr.mxu0 %v565
    %1317 = vmatpush2.msra.mxu0 %v564
    %1318 = vmatprep.subr.mxu0 %v561
    %1319 = vmatpush2.msra.mxu0 %v560
    %1320 = vmatprep.subr.mxu0 %v557
    %1321 = vmatpush2.msra.mxu0 %v556
    %1322 = vmatprep.subr.mxu0 %v553
    %1323 = vmatpush2.msra.mxu0 %v552
    %1324 = vmatprep.subr.mxu0 %v549
    %1325 = vmatpush2.msra.mxu0 %v548
    %1326 = vmatprep.subr.mxu0 %v545
    %1327 = vmatpush2.msra.mxu0 %v544
    %1328 = vmatprep.subr.mxu0 %v541
    %1329 = vmatpush2.msra.mxu0 %v540
    %1330 = vmatprep.subr.mxu0 %v537
    %1331 = vmatpush2.msra.mxu0 %v536
    %1332 = vmatprep.subr.mxu0 %v533
    %1333 = vmatpush2.msra.mxu0 %v532
    %1334 = vmatprep.subr.mxu0 %v529
    %1335 = vmatpush2.msra.mxu0 %v528
    %1336 = vmatprep.subr.mxu0 %v525
    %1337 = vmatpush2.msra.mxu0 %v524
    %1338 = vmatprep.subr.mxu0 %v521
    %1339 = vmatpush2.msra.mxu0 %v520
    %1340 = vmatprep.subr.mxu0 %v517
    %1341 = vmatpush2.msra.mxu0 %v516
    %1342 = vmatprep.mubr.f32.mxu0 %v1107
    %1343 = vmatmul.mubr.f32.gmra.mxu0 %v941
    %v1344 = vpop.f32.mrf.mxu0
    %v1345 = vadd.f32 %v585, %v1344
    %v1346 = vpop.f32.mrf.mxu0
    %v1347 = vadd.f32 %v589, %v1346
    %1348 = vdwg.mxu0
    %1349 = vmatprep.subr.mxu0 %v515
    %1350 = vmatpush1.msra.mxu0 %v514
    %1351 = vmatprep.subr.mxu0 %v511
    %1352 = vmatpush1.msra.mxu0 %v510
    %1353 = vmatprep.subr.mxu0 %v507
    %1354 = vmatpush1.msra.mxu0 %v506
    %1355 = vmatprep.subr.mxu0 %v503
    %1356 = vmatpush1.msra.mxu0 %v502
    %1357 = vmatprep.subr.mxu0 %v499
    %1358 = vmatpush1.msra.mxu0 %v498
    %1359 = vmatprep.subr.mxu0 %v495
    %1360 = vmatpush1.msra.mxu0 %v494
    %1361 = vmatprep.subr.mxu0 %v491
    %1362 = vmatpush1.msra.mxu0 %v490
    %1363 = vmatprep.subr.mxu0 %v487
    %1364 = vmatpush1.msra.mxu0 %v486
    %1365 = vmatprep.subr.mxu0 %v483
    %1366 = vmatpush1.msra.mxu0 %v482
    %1367 = vmatprep.subr.mxu0 %v479
    %1368 = vmatpush1.msra.mxu0 %v478
    %1369 = vmatprep.subr.mxu0 %v475
    %1370 = vmatpush1.msra.mxu0 %v474
    %1371 = vmatprep.subr.mxu0 %v471
    %1372 = vmatpush1.msra.mxu0 %v470
    %1373 = vmatprep.subr.mxu0 %v467
    %1374 = vmatpush1.msra.mxu0 %v466
    %1375 = vmatprep.subr.mxu0 %v463
    %1376 = vmatpush1.msra.mxu0 %v462
    %1377 = vmatprep.subr.mxu0 %v459
    %1378 = vmatpush1.msra.mxu0 %v458
    %1379 = vmatprep.subr.mxu0 %v455
    %1380 = vmatpush1.msra.mxu0 %v454
    %1381 = vmatprep.subr.mxu0 %v579
    %1382 = vmatpush2.msra.mxu0 %v578
    %1383 = vmatprep.subr.mxu0 %v575
    %1384 = vmatpush2.msra.mxu0 %v574
    %1385 = vmatprep.subr.mxu0 %v571
    %1386 = vmatpush2.msra.mxu0 %v570
    %1387 = vmatprep.subr.mxu0 %v567
    %1388 = vmatpush2.msra.mxu0 %v566
    %1389 = vmatprep.subr.mxu0 %v563
    %1390 = vmatpush2.msra.mxu0 %v562
    %1391 = vmatprep.subr.mxu0 %v559
    %1392 = vmatpush2.msra.mxu0 %v558
    %1393 = vmatprep.subr.mxu0 %v555
    %1394 = vmatpush2.msra.mxu0 %v554
    %1395 = vmatprep.subr.mxu0 %v551
    %1396 = vmatpush2.msra.mxu0 %v550
    %1397 = vmatprep.subr.mxu0 %v547
    %1398 = vmatpush2.msra.mxu0 %v546
    %1399 = vmatprep.subr.mxu0 %v543
    %1400 = vmatpush2.msra.mxu0 %v542
    %1401 = vmatprep.subr.mxu0 %v539
    %1402 = vmatpush2.msra.mxu0 %v538
    %1403 = vmatprep.subr.mxu0 %v535
    %1404 = vmatpush2.msra.mxu0 %v534
    %1405 = vmatprep.subr.mxu0 %v531
    %1406 = vmatpush2.msra.mxu0 %v530
    %1407 = vmatprep.subr.mxu0 %v527
    %1408 = vmatpush2.msra.mxu0 %v526
    %1409 = vmatprep.subr.mxu0 %v523
    %1410 = vmatpush2.msra.mxu0 %v522
    %1411 = vmatprep.subr.mxu0 %v519
    %1412 = vmatpush2.msra.mxu0 %v518
    %1413 = vmatprep.mubr.f32.mxu0 %v1107
    %1414 = vmatmul.mubr.f32.gmra.mxu0 %v941
    %v1415 = vpop.f32.mrf.mxu0
    %v1416 = vadd.f32 %v593, %v1415
    %v1417 = vpop.f32.mrf.mxu0
    %v1418 = vadd.f32 %v597, %v1417
    %1419 = vdwg.mxu0
    %v1420 = vxor.u32 %v1345, 2147483648
    %v1421 = vxor.u32 %v1347, 2147483648
    %v1422 = vxor.u32 %v1416, 2147483648
    %v1423 = vmul.f32 %v1420, 1.442695
    %v1424 = vpow.pop %v1423
    %v1425 = vmul.f32 %v1421, 1.442695
    %v1426 = vpow.pop %v1425
    %v1427 = vmul.f32 %v1422, 1.442695
    %v1428 = vpow.pop %v1427
    %v1429 = vadd.f32 %v1424, 1.0
    %v1430 = vadd.f32 %v1426, 1.0
    %v1431 = vadd.f32 %v1428, 1.0
    %v1432 = vrcp.pop %v1429
    %v1433 = vmul.f32 1.0, %v1432
    %v1434 = vrcp.pop %v1430
    %v1435 = vmul.f32 1.0, %v1434
    %v1436 = vrcp.pop %v1431
    %v1437 = vmul.f32 1.0, %v1436
    %v1438 = vtanh.pop %v1418
    %v1439 = vmul.f32 %v1435, %v1105
    %v1440 = vmul.f32 %v1433, %v1438
    %v1441 = vadd.f32 %v1439, %v1440
    %v1442 = vtanh.pop %v1441
    %v1443 = vmul.f32 %v1437, %v1442
    %1444 = vmatprep.subr.mxu0 %v449
    %1445 = vmatpush1.msra.mxu0 %v448
    %1446 = vmatprep.subr.mxu0 %v445
    %1447 = vmatpush1.msra.mxu0 %v444
    %1448 = vmatprep.subr.mxu0 %v441
    %1449 = vmatpush1.msra.mxu0 %v440
    %1450 = vmatprep.subr.mxu0 %v437
    %1451 = vmatpush1.msra.mxu0 %v436
    %1452 = vmatprep.subr.mxu0 %v433
    %1453 = vmatpush1.msra.mxu0 %v432
    %1454 = vmatprep.subr.mxu0 %v429
    %1455 = vmatpush1.msra.mxu0 %v428
    %1456 = vmatprep.subr.mxu0 %v425
    %1457 = vmatpush1.msra.mxu0 %v424
    %1458 = vmatprep.subr.mxu0 %v421
    %1459 = vmatpush1.msra.mxu0 %v420
    %1460 = vmatprep.subr.mxu0 %v417
    %1461 = vmatpush1.msra.mxu0 %v416
    %1462 = vmatprep.subr.mxu0 %v413
    %1463 = vmatpush1.msra.mxu0 %v412
    %1464 = vmatprep.subr.mxu0 %v409
    %1465 = vmatpush1.msra.mxu0 %v408
    %1466 = vmatprep.subr.mxu0 %v405
    %1467 = vmatpush1.msra.mxu0 %v404
    %1468 = vmatprep.subr.mxu0 %v401
    %1469 = vmatpush1.msra.mxu0 %v400
    %1470 = vmatprep.subr.mxu0 %v397
    %1471 = vmatpush1.msra.mxu0 %v396
    %1472 = vmatprep.subr.mxu0 %v393
    %1473 = vmatpush1.msra.mxu0 %v392
    %1474 = vmatprep.subr.mxu0 %v389
    %1475 = vmatpush1.msra.mxu0 %v388
    %1476 = vmatprep.subr.mxu0 0.0
    %1477 = vmatpush2.msra.mxu0 0.0
    %1478 = vmatprep.subr.mxu0 0.0
    %1479 = vmatpush2.msra.mxu0 0.0
    %1480 = vmatprep.subr.mxu0 0.0
    %1481 = vmatpush2.msra.mxu0 0.0
    %1482 = vmatprep.subr.mxu0 0.0
    %1483 = vmatpush2.msra.mxu0 0.0
    %1484 = vmatprep.subr.mxu0 0.0
    %1485 = vmatpush2.msra.mxu0 0.0
    %1486 = vmatprep.subr.mxu0 0.0
    %1487 = vmatpush2.msra.mxu0 0.0
    %1488 = vmatprep.subr.mxu0 0.0
    %1489 = vmatpush2.msra.mxu0 0.0
    %1490 = vmatprep.subr.mxu0 0.0
    %1491 = vmatpush2.msra.mxu0 0.0
    %1492 = vmatprep.subr.mxu0 0.0
    %1493 = vmatpush2.msra.mxu0 0.0
    %1494 = vmatprep.subr.mxu0 0.0
    %1495 = vmatpush2.msra.mxu0 0.0
    %1496 = vmatprep.subr.mxu0 0.0
    %1497 = vmatpush2.msra.mxu0 0.0
    %1498 = vmatprep.subr.mxu0 0.0
    %1499 = vmatpush2.msra.mxu0 0.0
    %1500 = vmatprep.subr.mxu0 0.0
    %1501 = vmatpush2.msra.mxu0 0.0
    %1502 = vmatprep.subr.mxu0 0.0
    %1503 = vmatpush2.msra.mxu0 0.0
    %1504 = vmatprep.subr.mxu0 0.0
    %1505 = vmatpush2.msra.mxu0 0.0
    %1506 = vmatprep.subr.mxu0 0.0
    %1507 = vmatpush2.msra.mxu0 0.0
    %1508 = vmatprep.mubr.f32.mxu0 0.0
    %1509 = vmatmul.mubr.f32.gmra.mxu0 %v1277
    %v1510 = vpop.f32.mrf.mxu0
    %v1511 = vadd.f32 0.0, %v1510
    %v1512 = vpop.f32.mrf.mxu0
    %v1513 = vadd.f32 0.0, %v1512
    %1514 = vdwg.mxu0
    %1515 = vmatprep.subr.mxu0 %v451
    %1516 = vmatpush1.msra.mxu0 %v450
    %1517 = vmatprep.subr.mxu0 %v447
    %1518 = vmatpush1.msra.mxu0 %v446
    %1519 = vmatprep.subr.mxu0 %v443
    %1520 = vmatpush1.msra.mxu0 %v442
    %1521 = vmatprep.subr.mxu0 %v439
    %1522 = vmatpush1.msra.mxu0 %v438
    %1523 = vmatprep.subr.mxu0 %v435
    %1524 = vmatpush1.msra.mxu0 %v434
    %1525 = vmatprep.subr.mxu0 %v431
    %1526 = vmatpush1.msra.mxu0 %v430
    %1527 = vmatprep.subr.mxu0 %v427
    %1528 = vmatpush1.msra.mxu0 %v426
    %1529 = vmatprep.subr.mxu0 %v423
    %1530 = vmatpush1.msra.mxu0 %v422
    %1531 = vmatprep.subr.mxu0 %v419
    %1532 = vmatpush1.msra.mxu0 %v418
    %1533 = vmatprep.subr.mxu0 %v415
    %1534 = vmatpush1.msra.mxu0 %v414
    %1535 = vmatprep.subr.mxu0 %v411
    %1536 = vmatpush1.msra.mxu0 %v410
    %1537 = vmatprep.subr.mxu0 %v407
    %1538 = vmatpush1.msra.mxu0 %v406
    %1539 = vmatprep.subr.mxu0 %v403
    %1540 = vmatpush1.msra.mxu0 %v402
    %1541 = vmatprep.subr.mxu0 %v399
    %1542 = vmatpush1.msra.mxu0 %v398
    %1543 = vmatprep.subr.mxu0 %v395
    %1544 = vmatpush1.msra.mxu0 %v394
    %1545 = vmatprep.subr.mxu0 %v391
    %1546 = vmatpush1.msra.mxu0 %v390
    %1547 = vmatprep.subr.mxu0 0.0
    %1548 = vmatpush2.msra.mxu0 0.0
    %1549 = vmatprep.subr.mxu0 0.0
    %1550 = vmatpush2.msra.mxu0 0.0
    %1551 = vmatprep.subr.mxu0 0.0
    %1552 = vmatpush2.msra.mxu0 0.0
    %1553 = vmatprep.subr.mxu0 0.0
    %1554 = vmatpush2.msra.mxu0 0.0
    %1555 = vmatprep.subr.mxu0 0.0
    %1556 = vmatpush2.msra.mxu0 0.0
    %1557 = vmatprep.subr.mxu0 0.0
    %1558 = vmatpush2.msra.mxu0 0.0
    %1559 = vmatprep.subr.mxu0 0.0
    %1560 = vmatpush2.msra.mxu0 0.0
    %1561 = vmatprep.subr.mxu0 0.0
    %1562 = vmatpush2.msra.mxu0 0.0
    %1563 = vmatprep.subr.mxu0 0.0
    %1564 = vmatpush2.msra.mxu0 0.0
    %1565 = vmatprep.subr.mxu0 0.0
    %1566 = vmatpush2.msra.mxu0 0.0
    %1567 = vmatprep.subr.mxu0 0.0
    %1568 = vmatpush2.msra.mxu0 0.0
    %1569 = vmatprep.subr.mxu0 0.0
    %1570 = vmatpush2.msra.mxu0 0.0
    %1571 = vmatprep.subr.mxu0 0.0
    %1572 = vmatpush2.msra.mxu0 0.0
    %1573 = vmatprep.subr.mxu0 0.0
    %1574 = vmatpush2.msra.mxu0 0.0
    %1575 = vmatprep.subr.mxu0 0.0
    %1576 = vmatpush2.msra.mxu0 0.0
    %1577 = vmatprep.subr.mxu0 0.0
    %1578 = vmatpush2.msra.mxu0 0.0
    %1579 = vmatprep.mubr.f32.mxu0 0.0
    %1580 = vmatmul.mubr.f32.gmra.mxu0 %v1277
    %v1581 = vpop.f32.mrf.mxu0
    %v1582 = vadd.f32 0.0, %v1581
    %v1583 = vpop.f32.mrf.mxu0
    %v1584 = vadd.f32 0.0, %v1583
    %1585 = vdwg.mxu0
    %v1586 = vadd.f32 %v247, %v1511
    %v1587 = vadd.f32 %v249, %v1513
    %v1588 = vadd.f32 %v360, %v1582
    %v1589 = vadd.f32 %v362, %v1584
    %v1590 = vxor.u32 %v1586, 2147483648
    %v1591 = vxor.u32 %v1587, 2147483648
    %v1592 = vxor.u32 %v1588, 2147483648
    %v1593 = vmul.f32 %v1590, 1.442695
    %v1594 = vpow.pop %v1593
    %v1595 = vmul.f32 %v1591, 1.442695
    %v1596 = vpow.pop %v1595
    %v1597 = vmul.f32 %v1592, 1.442695
    %v1598 = vpow.pop %v1597
    %v1599 = vadd.f32 %v1594, 1.0
    %v1600 = vadd.f32 %v1596, 1.0
    %v1601 = vadd.f32 %v1598, 1.0
    %v1602 = vrcp.pop %v1599
    %v1603 = vmul.f32 1.0, %v1602
    %v1604 = vrcp.pop %v1600
    %v1605 = vmul.f32 1.0, %v1604
    %v1606 = vrcp.pop %v1601
    %v1607 = vmul.f32 1.0, %v1606
    %v1608 = vtanh.pop %v1589
    %v1609 = vmul.f32 %v1605, %v1275
    %v1610 = vmul.f32 %v1603, %v1608
    %v1611 = vadd.f32 %v1609, %v1610
    %v1612 = vtanh.pop %v1611
    %v1613 = vmul.f32 %v1607, %v1612
    %1614 = vmatprep.subr.mxu0 %v513
    %1615 = vmatpush1.msra.mxu0 %v512
    %1616 = vmatprep.subr.mxu0 %v509
    %1617 = vmatpush1.msra.mxu0 %v508
    %1618 = vmatprep.subr.mxu0 %v505
    %1619 = vmatpush1.msra.mxu0 %v504
    %1620 = vmatprep.subr.mxu0 %v501
    %1621 = vmatpush1.msra.mxu0 %v500
    %1622 = vmatprep.subr.mxu0 %v497
    %1623 = vmatpush1.msra.mxu0 %v496
    %1624 = vmatprep.subr.mxu0 %v493
    %1625 = vmatpush1.msra.mxu0 %v492
    %1626 = vmatprep.subr.mxu0 %v489
    %1627 = vmatpush1.msra.mxu0 %v488
    %1628 = vmatprep.subr.mxu0 %v485
    %1629 = vmatpush1.msra.mxu0 %v484
    %1630 = vmatprep.subr.mxu0 %v481
    %1631 = vmatpush1.msra.mxu0 %v480
    %1632 = vmatprep.subr.mxu0 %v477
    %1633 = vmatpush1.msra.mxu0 %v476
    %1634 = vmatprep.subr.mxu0 %v473
    %1635 = vmatpush1.msra.mxu0 %v472
    %1636 = vmatprep.subr.mxu0 %v469
    %1637 = vmatpush1.msra.mxu0 %v468
    %1638 = vmatprep.subr.mxu0 %v465
    %1639 = vmatpush1.msra.mxu0 %v464
    %1640 = vmatprep.subr.mxu0 %v461
    %1641 = vmatpush1.msra.mxu0 %v460
    %1642 = vmatprep.subr.mxu0 %v457
    %1643 = vmatpush1.msra.mxu0 %v456
    %1644 = vmatprep.subr.mxu0 %v453
    %1645 = vmatpush1.msra.mxu0 %v452
    %1646 = vmatprep.subr.mxu0 %v577
    %1647 = vmatpush2.msra.mxu0 %v576
    %1648 = vmatprep.subr.mxu0 %v573
    %1649 = vmatpush2.msra.mxu0 %v572
    %1650 = vmatprep.subr.mxu0 %v569
    %1651 = vmatpush2.msra.mxu0 %v568
    %1652 = vmatprep.subr.mxu0 %v565
    %1653 = vmatpush2.msra.mxu0 %v564
    %1654 = vmatprep.subr.mxu0 %v561
    %1655 = vmatpush2.msra.mxu0 %v560
    %1656 = vmatprep.subr.mxu0 %v557
    %1657 = vmatpush2.msra.mxu0 %v556
    %1658 = vmatprep.subr.mxu0 %v553
    %1659 = vmatpush2.msra.mxu0 %v552
    %1660 = vmatprep.subr.mxu0 %v549
    %1661 = vmatpush2.msra.mxu0 %v548
    %1662 = vmatprep.subr.mxu0 %v545
    %1663 = vmatpush2.msra.mxu0 %v544
    %1664 = vmatprep.subr.mxu0 %v541
    %1665 = vmatpush2.msra.mxu0 %v540
    %1666 = vmatprep.subr.mxu0 %v537
    %1667 = vmatpush2.msra.mxu0 %v536
    %1668 = vmatprep.subr.mxu0 %v533
    %1669 = vmatpush2.msra.mxu0 %v532
    %1670 = vmatprep.subr.mxu0 %v529
    %1671 = vmatpush2.msra.mxu0 %v528
    %1672 = vmatprep.subr.mxu0 %v525
    %1673 = vmatpush2.msra.mxu0 %v524
    %1674 = vmatprep.subr.mxu0 %v521
    %1675 = vmatpush2.msra.mxu0 %v520
    %1676 = vmatprep.subr.mxu0 %v517
    %1677 = vmatpush2.msra.mxu0 %v516
    %1678 = vmatprep.mubr.f32.mxu0 %v1443
    %1679 = vmatmul.mubr.f32.gmra.mxu0 %v1277
    %v1680 = vpop.f32.mrf.mxu0
    %v1681 = vadd.f32 %v585, %v1680
    %v1682 = vpop.f32.mrf.mxu0
    %v1683 = vadd.f32 %v589, %v1682
    %1684 = vdwg.mxu0
    %1685 = vmatprep.subr.mxu0 %v515
    %1686 = vmatpush1.msra.mxu0 %v514
    %1687 = vmatprep.subr.mxu0 %v511
    %1688 = vmatpush1.msra.mxu0 %v510
    %1689 = vmatprep.subr.mxu0 %v507
    %1690 = vmatpush1.msra.mxu0 %v506
    %1691 = vmatprep.subr.mxu0 %v503
    %1692 = vmatpush1.msra.mxu0 %v502
    %1693 = vmatprep.subr.mxu0 %v499
    %1694 = vmatpush1.msra.mxu0 %v498
    %1695 = vmatprep.subr.mxu0 %v495
    %1696 = vmatpush1.msra.mxu0 %v494
    %1697 = vmatprep.subr.mxu0 %v491
    %1698 = vmatpush1.msra.mxu0 %v490
    %1699 = vmatprep.subr.mxu0 %v487
    %1700 = vmatpush1.msra.mxu0 %v486
    %1701 = vmatprep.subr.mxu0 %v483
    %1702 = vmatpush1.msra.mxu0 %v482
    %1703 = vmatprep.subr.mxu0 %v479
    %1704 = vmatpush1.msra.mxu0 %v478
    %1705 = vmatprep.subr.mxu0 %v475
    %1706 = vmatpush1.msra.mxu0 %v474
    %1707 = vmatprep.subr.mxu0 %v471
    %1708 = vmatpush1.msra.mxu0 %v470
    %1709 = vmatprep.subr.mxu0 %v467
    %1710 = vmatpush1.msra.mxu0 %v466
    %1711 = vmatprep.subr.mxu0 %v463
    %1712 = vmatpush1.msra.mxu0 %v462
    %1713 = vmatprep.subr.mxu0 %v459
    %1714 = vmatpush1.msra.mxu0 %v458
    %1715 = vmatprep.subr.mxu0 %v455
    %1716 = vmatpush1.msra.mxu0 %v454
    %1717 = vmatprep.subr.mxu0 %v579
    %1718 = vmatpush2.msra.mxu0 %v578
    %1719 = vmatprep.subr.mxu0 %v575
    %1720 = vmatpush2.msra.mxu0 %v574
    %1721 = vmatprep.subr.mxu0 %v571
    %1722 = vmatpush2.msra.mxu0 %v570
    %1723 = vmatprep.subr.mxu0 %v567
    %1724 = vmatpush2.msra.mxu0 %v566
    %1725 = vmatprep.subr.mxu0 %v563
    %1726 = vmatpush2.msra.mxu0 %v562
    %1727 = vmatprep.subr.mxu0 %v559
    %1728 = vmatpush2.msra.mxu0 %v558
    %1729 = vmatprep.subr.mxu0 %v555
    %1730 = vmatpush2.msra.mxu0 %v554
    %1731 = vmatprep.subr.mxu0 %v551
    %1732 = vmatpush2.msra.mxu0 %v550
    %1733 = vmatprep.subr.mxu0 %v547
    %1734 = vmatpush2.msra.mxu0 %v546
    %1735 = vmatprep.subr.mxu0 %v543
    %1736 = vmatpush2.msra.mxu0 %v542
    %1737 = vmatprep.subr.mxu0 %v539
    %1738 = vmatpush2.msra.mxu0 %v538
    %1739 = vmatprep.subr.mxu0 %v535
    %1740 = vmatpush2.msra.mxu0 %v534
    %1741 = vmatprep.subr.mxu0 %v531
    %1742 = vmatpush2.msra.mxu0 %v530
    %1743 = vmatprep.subr.mxu0 %v527
    %1744 = vmatpush2.msra.mxu0 %v526
    %1745 = vmatprep.subr.mxu0 %v523
    %1746 = vmatpush2.msra.mxu0 %v522
    %1747 = vmatprep.subr.mxu0 %v519
    %1748 = vmatpush2.msra.mxu0 %v518
    %1749 = vmatprep.mubr.f32.mxu0 %v1443
    %1750 = vmatmul.mubr.f32.gmra.mxu0 %v1277
    %v1751 = vpop.f32.mrf.mxu0
    %v1752 = vadd.f32 %v593, %v1751
    %v1753 = vpop.f32.mrf.mxu0
    %v1754 = vadd.f32 %v597, %v1753
    %1755 = vdwg.mxu0
    %v1756 = vxor.u32 %v1681, 2147483648
    %v1757 = vxor.u32 %v1683, 2147483648
    %v1758 = vxor.u32 %v1752, 2147483648
    %v1759 = vmul.f32 %v1756, 1.442695
    %v1760 = vpow.pop %v1759
    %v1761 = vmul.f32 %v1757, 1.442695
    %v1762 = vpow.pop %v1761
    %v1763 = vmul.f32 %v1758, 1.442695
    %v1764 = vpow.pop %v1763
    %v1765 = vadd.f32 %v1760, 1.0
    %v1766 = vadd.f32 %v1762, 1.0
    %v1767 = vadd.f32 %v1764, 1.0
    %v1768 = vrcp.pop %v1765
    %v1769 = vmul.f32 1.0, %v1768
    %v1770 = vrcp.pop %v1766
    %v1771 = vmul.f32 1.0, %v1770
    %v1772 = vrcp.pop %v1767
    %v1773 = vmul.f32 1.0, %v1772
    %v1774 = vtanh.pop %v1754
    %v1775 = vmul.f32 %v1771, %v1441
    %v1776 = vmul.f32 %v1769, %v1774
    %v1777 = vadd.f32 %v1775, %v1776
    %v1778 = vtanh.pop %v1777
    %v1779 = vmul.f32 %v1773, %v1778
    %1780 = vmatprep.subr.mxu0 %v449
    %1781 = vmatpush1.msra.mxu0 %v448
    %1782 = vmatprep.subr.mxu0 %v445
    %1783 = vmatpush1.msra.mxu0 %v444
    %1784 = vmatprep.subr.mxu0 %v441
    %1785 = vmatpush1.msra.mxu0 %v440
    %1786 = vmatprep.subr.mxu0 %v437
    %1787 = vmatpush1.msra.mxu0 %v436
    %1788 = vmatprep.subr.mxu0 %v433
    %1789 = vmatpush1.msra.mxu0 %v432
    %1790 = vmatprep.subr.mxu0 %v429
    %1791 = vmatpush1.msra.mxu0 %v428
    %1792 = vmatprep.subr.mxu0 %v425
    %1793 = vmatpush1.msra.mxu0 %v424
    %1794 = vmatprep.subr.mxu0 %v421
    %1795 = vmatpush1.msra.mxu0 %v420
    %1796 = vmatprep.subr.mxu0 %v417
    %1797 = vmatpush1.msra.mxu0 %v416
    %1798 = vmatprep.subr.mxu0 %v413
    %1799 = vmatpush1.msra.mxu0 %v412
    %1800 = vmatprep.subr.mxu0 %v409
    %1801 = vmatpush1.msra.mxu0 %v408
    %1802 = vmatprep.subr.mxu0 %v405
    %1803 = vmatpush1.msra.mxu0 %v404
    %1804 = vmatprep.subr.mxu0 %v401
    %1805 = vmatpush1.msra.mxu0 %v400
    %1806 = vmatprep.subr.mxu0 %v397
    %1807 = vmatpush1.msra.mxu0 %v396
    %1808 = vmatprep.subr.mxu0 %v393
    %1809 = vmatpush1.msra.mxu0 %v392
    %1810 = vmatprep.subr.mxu0 %v389
    %1811 = vmatpush1.msra.mxu0 %v388
    %1812 = vmatprep.subr.mxu0 0.0
    %1813 = vmatpush2.msra.mxu0 0.0
    %1814 = vmatprep.subr.mxu0 0.0
    %1815 = vmatpush2.msra.mxu0 0.0
    %1816 = vmatprep.subr.mxu0 0.0
    %1817 = vmatpush2.msra.mxu0 0.0
    %1818 = vmatprep.subr.mxu0 0.0
    %1819 = vmatpush2.msra.mxu0 0.0
    %1820 = vmatprep.subr.mxu0 0.0
    %1821 = vmatpush2.msra.mxu0 0.0
    %1822 = vmatprep.subr.mxu0 0.0
    %1823 = vmatpush2.msra.mxu0 0.0
    %1824 = vmatprep.subr.mxu0 0.0
    %1825 = vmatpush2.msra.mxu0 0.0
    %1826 = vmatprep.subr.mxu0 0.0
    %1827 = vmatpush2.msra.mxu0 0.0
    %1828 = vmatprep.subr.mxu0 0.0
    %1829 = vmatpush2.msra.mxu0 0.0
    %1830 = vmatprep.subr.mxu0 0.0
    %1831 = vmatpush2.msra.mxu0 0.0
    %1832 = vmatprep.subr.mxu0 0.0
    %1833 = vmatpush2.msra.mxu0 0.0
    %1834 = vmatprep.subr.mxu0 0.0
    %1835 = vmatpush2.msra.mxu0 0.0
    %1836 = vmatprep.subr.mxu0 0.0
    %1837 = vmatpush2.msra.mxu0 0.0
    %1838 = vmatprep.subr.mxu0 0.0
    %1839 = vmatpush2.msra.mxu0 0.0
    %1840 = vmatprep.subr.mxu0 0.0
    %1841 = vmatpush2.msra.mxu0 0.0
    %1842 = vmatprep.subr.mxu0 0.0
    %1843 = vmatpush2.msra.mxu0 0.0
    %1844 = vmatprep.mubr.f32.mxu0 0.0
    %1845 = vmatmul.mubr.f32.gmra.mxu0 %v1613
    %v1846 = vpop.f32.mrf.mxu0
    %v1847 = vadd.f32 0.0, %v1846
    %v1848 = vpop.f32.mrf.mxu0
    %v1849 = vadd.f32 0.0, %v1848
    %1850 = vdwg.mxu0
    %1851 = vmatprep.subr.mxu0 %v451
    %1852 = vmatpush1.msra.mxu0 %v450
    %1853 = vmatprep.subr.mxu0 %v447
    %1854 = vmatpush1.msra.mxu0 %v446
    %1855 = vmatprep.subr.mxu0 %v443
    %1856 = vmatpush1.msra.mxu0 %v442
    %1857 = vmatprep.subr.mxu0 %v439
    %1858 = vmatpush1.msra.mxu0 %v438
    %1859 = vmatprep.subr.mxu0 %v435
    %1860 = vmatpush1.msra.mxu0 %v434
    %1861 = vmatprep.subr.mxu0 %v431
    %1862 = vmatpush1.msra.mxu0 %v430
    %1863 = vmatprep.subr.mxu0 %v427
    %1864 = vmatpush1.msra.mxu0 %v426
    %1865 = vmatprep.subr.mxu0 %v423
    %1866 = vmatpush1.msra.mxu0 %v422
    %1867 = vmatprep.subr.mxu0 %v419
    %1868 = vmatpush1.msra.mxu0 %v418
    %1869 = vmatprep.subr.mxu0 %v415
    %1870 = vmatpush1.msra.mxu0 %v414
    %1871 = vmatprep.subr.mxu0 %v411
    %1872 = vmatpush1.msra.mxu0 %v410
    %1873 = vmatprep.subr.mxu0 %v407
    %1874 = vmatpush1.msra.mxu0 %v406
    %1875 = vmatprep.subr.mxu0 %v403
    %1876 = vmatpush1.msra.mxu0 %v402
    %1877 = vmatprep.subr.mxu0 %v399
    %1878 = vmatpush1.msra.mxu0 %v398
    %1879 = vmatprep.subr.mxu0 %v395
    %1880 = vmatpush1.msra.mxu0 %v394
    %1881 = vmatprep.subr.mxu0 %v391
    %1882 = vmatpush1.msra.mxu0 %v390
    %1883 = vmatprep.subr.mxu0 0.0
    %1884 = vmatpush2.msra.mxu0 0.0
    %1885 = vmatprep.subr.mxu0 0.0
    %1886 = vmatpush2.msra.mxu0 0.0
    %1887 = vmatprep.subr.mxu0 0.0
    %1888 = vmatpush2.msra.mxu0 0.0
    %1889 = vmatprep.subr.mxu0 0.0
    %1890 = vmatpush2.msra.mxu0 0.0
    %1891 = vmatprep.subr.mxu0 0.0
    %1892 = vmatpush2.msra.mxu0 0.0
    %1893 = vmatprep.subr.mxu0 0.0
    %1894 = vmatpush2.msra.mxu0 0.0
    %1895 = vmatprep.subr.mxu0 0.0
    %1896 = vmatpush2.msra.mxu0 0.0
    %1897 = vmatprep.subr.mxu0 0.0
    %1898 = vmatpush2.msra.mxu0 0.0
    %1899 = vmatprep.subr.mxu0 0.0
    %1900 = vmatpush2.msra.mxu0 0.0
    %1901 = vmatprep.subr.mxu0 0.0
    %1902 = vmatpush2.msra.mxu0 0.0
    %1903 = vmatprep.subr.mxu0 0.0
    %1904 = vmatpush2.msra.mxu0 0.0
    %1905 = vmatprep.subr.mxu0 0.0
    %1906 = vmatpush2.msra.mxu0 0.0
    %1907 = vmatprep.subr.mxu0 0.0
    %1908 = vmatpush2.msra.mxu0 0.0
    %1909 = vmatprep.subr.mxu0 0.0
    %1910 = vmatpush2.msra.mxu0 0.0
    %1911 = vmatprep.subr.mxu0 0.0
    %1912 = vmatpush2.msra.mxu0 0.0
    %1913 = vmatprep.subr.mxu0 0.0
    %1914 = vmatpush2.msra.mxu0 0.0
    %1915 = vmatprep.mubr.f32.mxu0 0.0
    %1916 = vmatmul.mubr.f32.gmra.mxu0 %v1613
    %v1917 = vpop.f32.mrf.mxu0
    %v1918 = vadd.f32 0.0, %v1917
    %v1919 = vpop.f32.mrf.mxu0
    %v1920 = vadd.f32 0.0, %v1919
    %1921 = vdwg.mxu0
    %v1922 = vadd.f32 %v253, %v1847
    %v1923 = vadd.f32 %v255, %v1849
    %v1924 = vadd.f32 %v366, %v1918
    %v1925 = vadd.f32 %v368, %v1920
    %v1926 = vxor.u32 %v1922, 2147483648
    %v1927 = vxor.u32 %v1923, 2147483648
    %v1928 = vxor.u32 %v1924, 2147483648
    %v1929 = vmul.f32 %v1926, 1.442695
    %v1930 = vpow.pop %v1929
    %v1931 = vmul.f32 %v1927, 1.442695
    %v1932 = vpow.pop %v1931
    %v1933 = vmul.f32 %v1928, 1.442695
    %v1934 = vpow.pop %v1933
    %v1935 = vadd.f32 %v1930, 1.0
    %v1936 = vadd.f32 %v1932, 1.0
    %v1937 = vadd.f32 %v1934, 1.0
    %v1938 = vrcp.pop %v1935
    %v1939 = vmul.f32 1.0, %v1938
    %v1940 = vrcp.pop %v1936
    %v1941 = vmul.f32 1.0, %v1940
    %v1942 = vrcp.pop %v1937
    %v1943 = vmul.f32 1.0, %v1942
    %v1944 = vtanh.pop %v1925
    %v1945 = vmul.f32 %v1941, %v1611
    %v1946 = vmul.f32 %v1939, %v1944
    %v1947 = vadd.f32 %v1945, %v1946
    %v1948 = vtanh.pop %v1947
    %v1949 = vmul.f32 %v1943, %v1948
    %1950 = vmatprep.subr.mxu0 %v513
    %1951 = vmatpush1.msra.mxu0 %v512
    %1952 = vmatprep.subr.mxu0 %v509
    %1953 = vmatpush1.msra.mxu0 %v508
    %1954 = vmatprep.subr.mxu0 %v505
    %1955 = vmatpush1.msra.mxu0 %v504
    %1956 = vmatprep.subr.mxu0 %v501
    %1957 = vmatpush1.msra.mxu0 %v500
    %1958 = vmatprep.subr.mxu0 %v497
    %1959 = vmatpush1.msra.mxu0 %v496
    %1960 = vmatprep.subr.mxu0 %v493
    %1961 = vmatpush1.msra.mxu0 %v492
    %1962 = vmatprep.subr.mxu0 %v489
    %1963 = vmatpush1.msra.mxu0 %v488
    %1964 = vmatprep.subr.mxu0 %v485
    %1965 = vmatpush1.msra.mxu0 %v484
    %1966 = vmatprep.subr.mxu0 %v481
    %1967 = vmatpush1.msra.mxu0 %v480
    %1968 = vmatprep.subr.mxu0 %v477
    %1969 = vmatpush1.msra.mxu0 %v476
    %1970 = vmatprep.subr.mxu0 %v473
    %1971 = vmatpush1.msra.mxu0 %v472
    %1972 = vmatprep.subr.mxu0 %v469
    %1973 = vmatpush1.msra.mxu0 %v468
    %1974 = vmatprep.subr.mxu0 %v465
    %1975 = vmatpush1.msra.mxu0 %v464
    %1976 = vmatprep.subr.mxu0 %v461
    %1977 = vmatpush1.msra.mxu0 %v460
    %1978 = vmatprep.subr.mxu0 %v457
    %1979 = vmatpush1.msra.mxu0 %v456
    %1980 = vmatprep.subr.mxu0 %v453
    %1981 = vmatpush1.msra.mxu0 %v452
    %1982 = vmatprep.subr.mxu0 %v577
    %1983 = vmatpush2.msra.mxu0 %v576
    %1984 = vmatprep.subr.mxu0 %v573
    %1985 = vmatpush2.msra.mxu0 %v572
    %1986 = vmatprep.subr.mxu0 %v569
    %1987 = vmatpush2.msra.mxu0 %v568
    %1988 = vmatprep.subr.mxu0 %v565
    %1989 = vmatpush2.msra.mxu0 %v564
    %1990 = vmatprep.subr.mxu0 %v561
    %1991 = vmatpush2.msra.mxu0 %v560
    %1992 = vmatprep.subr.mxu0 %v557
    %1993 = vmatpush2.msra.mxu0 %v556
    %1994 = vmatprep.subr.mxu0 %v553
    %1995 = vmatpush2.msra.mxu0 %v552
    %1996 = vmatprep.subr.mxu0 %v549
    %1997 = vmatpush2.msra.mxu0 %v548
    %1998 = vmatprep.subr.mxu0 %v545
    %1999 = vmatpush2.msra.mxu0 %v544
    %2000 = vmatprep.subr.mxu0 %v541
    %2001 = vmatpush2.msra.mxu0 %v540
    %2002 = vmatprep.subr.mxu0 %v537
    %2003 = vmatpush2.msra.mxu0 %v536
    %2004 = vmatprep.subr.mxu0 %v533
    %2005 = vmatpush2.msra.mxu0 %v532
    %2006 = vmatprep.subr.mxu0 %v529
    %2007 = vmatpush2.msra.mxu0 %v528
    %2008 = vmatprep.subr.mxu0 %v525
    %2009 = vmatpush2.msra.mxu0 %v524
    %2010 = vmatprep.subr.mxu0 %v521
    %2011 = vmatpush2.msra.mxu0 %v520
    %2012 = vmatprep.subr.mxu0 %v517
    %2013 = vmatpush2.msra.mxu0 %v516
    %2014 = vmatprep.mubr.f32.mxu0 %v1779
    %2015 = vmatmul.mubr.f32.gmra.mxu0 %v1613
    %v2016 = vpop.f32.mrf.mxu0
    %v2017 = vadd.f32 %v585, %v2016
    %v2018 = vpop.f32.mrf.mxu0
    %v2019 = vadd.f32 %v589, %v2018
    %2020 = vdwg.mxu0
    %2021 = vmatprep.subr.mxu0 %v515
    %2022 = vmatpush1.msra.mxu0 %v514
    %2023 = vmatprep.subr.mxu0 %v511
    %2024 = vmatpush1.msra.mxu0 %v510
    %2025 = vmatprep.subr.mxu0 %v507
    %2026 = vmatpush1.msra.mxu0 %v506
    %2027 = vmatprep.subr.mxu0 %v503
    %2028 = vmatpush1.msra.mxu0 %v502
    %2029 = vmatprep.subr.mxu0 %v499
    %2030 = vmatpush1.msra.mxu0 %v498
    %2031 = vmatprep.subr.mxu0 %v495
    %2032 = vmatpush1.msra.mxu0 %v494
    %2033 = vmatprep.subr.mxu0 %v491
    %2034 = vmatpush1.msra.mxu0 %v490
    %2035 = vmatprep.subr.mxu0 %v487
    %2036 = vmatpush1.msra.mxu0 %v486
    %2037 = vmatprep.subr.mxu0 %v483
    %2038 = vmatpush1.msra.mxu0 %v482
    %2039 = vmatprep.subr.mxu0 %v479
    %2040 = vmatpush1.msra.mxu0 %v478
    %2041 = vmatprep.subr.mxu0 %v475
    %2042 = vmatpush1.msra.mxu0 %v474
    %2043 = vmatprep.subr.mxu0 %v471
    %2044 = vmatpush1.msra.mxu0 %v470
    %2045 = vmatprep.subr.mxu0 %v467
    %2046 = vmatpush1.msra.mxu0 %v466
    %2047 = vmatprep.subr.mxu0 %v463
    %2048 = vmatpush1.msra.mxu0 %v462
    %2049 = vmatprep.subr.mxu0 %v459
    %2050 = vmatpush1.msra.mxu0 %v458
    %2051 = vmatprep.subr.mxu0 %v455
    %2052 = vmatpush1.msra.mxu0 %v454
    %2053 = vmatprep.subr.mxu0 %v579
    %2054 = vmatpush2.msra.mxu0 %v578
    %2055 = vmatprep.subr.mxu0 %v575
    %2056 = vmatpush2.msra.mxu0 %v574
    %2057 = vmatprep.subr.mxu0 %v571
    %2058 = vmatpush2.msra.mxu0 %v570
    %2059 = vmatprep.subr.mxu0 %v567
    %2060 = vmatpush2.msra.mxu0 %v566
    %2061 = vmatprep.subr.mxu0 %v563
    %2062 = vmatpush2.msra.mxu0 %v562
    %2063 = vmatprep.subr.mxu0 %v559
    %2064 = vmatpush2.msra.mxu0 %v558
    %2065 = vmatprep.subr.mxu0 %v555
    %2066 = vmatpush2.msra.mxu0 %v554
    %2067 = vmatprep.subr.mxu0 %v551
    %2068 = vmatpush2.msra.mxu0 %v550
    %2069 = vmatprep.subr.mxu0 %v547
    %2070 = vmatpush2.msra.mxu0 %v546
    %2071 = vmatprep.subr.mxu0 %v543
    %2072 = vmatpush2.msra.mxu0 %v542
    %2073 = vmatprep.subr.mxu0 %v539
    %2074 = vmatpush2.msra.mxu0 %v538
    %2075 = vmatprep.subr.mxu0 %v535
    %2076 = vmatpush2.msra.mxu0 %v534
    %2077 = vmatprep.subr.mxu0 %v531
    %2078 = vmatpush2.msra.mxu0 %v530
    %2079 = vmatprep.subr.mxu0 %v527
    %2080 = vmatpush2.msra.mxu0 %v526
    %2081 = vmatprep.subr.mxu0 %v523
    %2082 = vmatpush2.msra.mxu0 %v522
    %2083 = vmatprep.subr.mxu0 %v519
    %2084 = vmatpush2.msra.mxu0 %v518
    %2085 = vmatprep.mubr.f32.mxu0 %v1779
    %2086 = vmatmul.mubr.f32.gmra.mxu0 %v1613
    %v2087 = vpop.f32.mrf.mxu0
    %v2088 = vadd.f32 %v593, %v2087
    %v2089 = vpop.f32.mrf.mxu0
    %v2090 = vadd.f32 %v597, %v2089
    %2091 = vdwg.mxu0
    %v2092 = vxor.u32 %v2017, 2147483648
    %v2093 = vxor.u32 %v2019, 2147483648
    %v2094 = vxor.u32 %v2088, 2147483648
    %v2095 = vmul.f32 %v2092, 1.442695
    %v2096 = vpow.pop %v2095
    %v2097 = vmul.f32 %v2093, 1.442695
    %v2098 = vpow.pop %v2097
    %v2099 = vmul.f32 %v2094, 1.442695
    %v2100 = vpow.pop %v2099
    %v2101 = vadd.f32 %v2096, 1.0
    %v2102 = vadd.f32 %v2098, 1.0
    %v2103 = vadd.f32 %v2100, 1.0
    %v2104 = vrcp.pop %v2101
    %v2105 = vmul.f32 1.0, %v2104
    %v2106 = vrcp.pop %v2102
    %v2107 = vmul.f32 1.0, %v2106
    %v2108 = vrcp.pop %v2103
    %v2109 = vmul.f32 1.0, %v2108
    %v2110 = vtanh.pop %v2090
    %v2111 = vmul.f32 %v2107, %v1777
    %v2112 = vmul.f32 %v2105, %v2110
    %v2113 = vadd.f32 %v2111, %v2112
    %v2114 = vtanh.pop %v2113
    %v2115 = vmul.f32 %v2109, %v2114
    %2116 = vmatprep.subr.mxu0 %v449
    %2117 = vmatpush1.msra.mxu0 %v448
    %2118 = vmatprep.subr.mxu0 %v445
    %2119 = vmatpush1.msra.mxu0 %v444
    %2120 = vmatprep.subr.mxu0 %v441
    %2121 = vmatpush1.msra.mxu0 %v440
    %2122 = vmatprep.subr.mxu0 %v437
    %2123 = vmatpush1.msra.mxu0 %v436
    %2124 = vmatprep.subr.mxu0 %v433
    %2125 = vmatpush1.msra.mxu0 %v432
    %2126 = vmatprep.subr.mxu0 %v429
    %2127 = vmatpush1.msra.mxu0 %v428
    %2128 = vmatprep.subr.mxu0 %v425
    %2129 = vmatpush1.msra.mxu0 %v424
    %2130 = vmatprep.subr.mxu0 %v421
    %2131 = vmatpush1.msra.mxu0 %v420
    %2132 = vmatprep.subr.mxu0 %v417
    %2133 = vmatpush1.msra.mxu0 %v416
    %2134 = vmatprep.subr.mxu0 %v413
    %2135 = vmatpush1.msra.mxu0 %v412
    %2136 = vmatprep.subr.mxu0 %v409
    %2137 = vmatpush1.msra.mxu0 %v408
    %2138 = vmatprep.subr.mxu0 %v405
    %2139 = vmatpush1.msra.mxu0 %v404
    %2140 = vmatprep.subr.mxu0 %v401
    %2141 = vmatpush1.msra.mxu0 %v400
    %2142 = vmatprep.subr.mxu0 %v397
    %2143 = vmatpush1.msra.mxu0 %v396
    %2144 = vmatprep.subr.mxu0 %v393
    %2145 = vmatpush1.msra.mxu0 %v392
    %2146 = vmatprep.subr.mxu0 %v389
    %2147 = vmatpush1.msra.mxu0 %v388
    %2148 = vmatprep.subr.mxu0 0.0
    %2149 = vmatpush2.msra.mxu0 0.0
    %2150 = vmatprep.subr.mxu0 0.0
    %2151 = vmatpush2.msra.mxu0 0.0
    %2152 = vmatprep.subr.mxu0 0.0
    %2153 = vmatpush2.msra.mxu0 0.0
    %2154 = vmatprep.subr.mxu0 0.0
    %2155 = vmatpush2.msra.mxu0 0.0
    %2156 = vmatprep.subr.mxu0 0.0
    %2157 = vmatpush2.msra.mxu0 0.0
    %2158 = vmatprep.subr.mxu0 0.0
    %2159 = vmatpush2.msra.mxu0 0.0
    %2160 = vmatprep.subr.mxu0 0.0
    %2161 = vmatpush2.msra.mxu0 0.0
    %2162 = vmatprep.subr.mxu0 0.0
    %2163 = vmatpush2.msra.mxu0 0.0
    %2164 = vmatprep.subr.mxu0 0.0
    %2165 = vmatpush2.msra.mxu0 0.0
    %2166 = vmatprep.subr.mxu0 0.0
    %2167 = vmatpush2.msra.mxu0 0.0
    %2168 = vmatprep.subr.mxu0 0.0
    %2169 = vmatpush2.msra.mxu0 0.0
    %2170 = vmatprep.subr.mxu0 0.0
    %2171 = vmatpush2.msra.mxu0 0.0
    %2172 = vmatprep.subr.mxu0 0.0
    %2173 = vmatpush2.msra.mxu0 0.0
    %2174 = vmatprep.subr.mxu0 0.0
    %2175 = vmatpush2.msra.mxu0 0.0
    %2176 = vmatprep.subr.mxu0 0.0
    %2177 = vmatpush2.msra.mxu0 0.0
    %2178 = vmatprep.subr.mxu0 0.0
    %2179 = vmatpush2.msra.mxu0 0.0
    %2180 = vmatprep.mubr.f32.mxu0 0.0
    %2181 = vmatmul.mubr.f32.gmra.mxu0 %v1949
    %v2182 = vpop.f32.mrf.mxu0
    %v2183 = vadd.f32 0.0, %v2182
    %v2184 = vpop.f32.mrf.mxu0
    %v2185 = vadd.f32 0.0, %v2184
    %2186 = vdwg.mxu0
    %2187 = vmatprep.subr.mxu0 %v451
    %2188 = vmatpush1.msra.mxu0 %v450
    %2189 = vmatprep.subr.mxu0 %v447
    %2190 = vmatpush1.msra.mxu0 %v446
    %2191 = vmatprep.subr.mxu0 %v443
    %2192 = vmatpush1.msra.mxu0 %v442
    %2193 = vmatprep.subr.mxu0 %v439
    %2194 = vmatpush1.msra.mxu0 %v438
    %2195 = vmatprep.subr.mxu0 %v435
    %2196 = vmatpush1.msra.mxu0 %v434
    %2197 = vmatprep.subr.mxu0 %v431
    %2198 = vmatpush1.msra.mxu0 %v430
    %2199 = vmatprep.subr.mxu0 %v427
    %2200 = vmatpush1.msra.mxu0 %v426
    %2201 = vmatprep.subr.mxu0 %v423
    %2202 = vmatpush1.msra.mxu0 %v422
    %2203 = vmatprep.subr.mxu0 %v419
    %2204 = vmatpush1.msra.mxu0 %v418
    %2205 = vmatprep.subr.mxu0 %v415
    %2206 = vmatpush1.msra.mxu0 %v414
    %2207 = vmatprep.subr.mxu0 %v411
    %2208 = vmatpush1.msra.mxu0 %v410
    %2209 = vmatprep.subr.mxu0 %v407
    %2210 = vmatpush1.msra.mxu0 %v406
    %2211 = vmatprep.subr.mxu0 %v403
    %2212 = vmatpush1.msra.mxu0 %v402
    %2213 = vmatprep.subr.mxu0 %v399
    %2214 = vmatpush1.msra.mxu0 %v398
    %2215 = vmatprep.subr.mxu0 %v395
    %2216 = vmatpush1.msra.mxu0 %v394
    %2217 = vmatprep.subr.mxu0 %v391
    %2218 = vmatpush1.msra.mxu0 %v390
    %2219 = vmatprep.subr.mxu0 0.0
    %2220 = vmatpush2.msra.mxu0 0.0
    %2221 = vmatprep.subr.mxu0 0.0
    %2222 = vmatpush2.msra.mxu0 0.0
    %2223 = vmatprep.subr.mxu0 0.0
    %2224 = vmatpush2.msra.mxu0 0.0
    %2225 = vmatprep.subr.mxu0 0.0
    %2226 = vmatpush2.msra.mxu0 0.0
    %2227 = vmatprep.subr.mxu0 0.0
    %2228 = vmatpush2.msra.mxu0 0.0
    %2229 = vmatprep.subr.mxu0 0.0
    %2230 = vmatpush2.msra.mxu0 0.0
    %2231 = vmatprep.subr.mxu0 0.0
    %2232 = vmatpush2.msra.mxu0 0.0
    %2233 = vmatprep.subr.mxu0 0.0
    %2234 = vmatpush2.msra.mxu0 0.0
    %2235 = vmatprep.subr.mxu0 0.0
    %2236 = vmatpush2.msra.mxu0 0.0
    %2237 = vmatprep.subr.mxu0 0.0
    %2238 = vmatpush2.msra.mxu0 0.0
    %2239 = vmatprep.subr.mxu0 0.0
    %2240 = vmatpush2.msra.mxu0 0.0
    %2241 = vmatprep.subr.mxu0 0.0
    %2242 = vmatpush2.msra.mxu0 0.0
    %2243 = vmatprep.subr.mxu0 0.0
    %2244 = vmatpush2.msra.mxu0 0.0
    %2245 = vmatprep.subr.mxu0 0.0
    %2246 = vmatpush2.msra.mxu0 0.0
    %2247 = vmatprep.subr.mxu0 0.0
    %2248 = vmatpush2.msra.mxu0 0.0
    %2249 = vmatprep.subr.mxu0 0.0
    %2250 = vmatpush2.msra.mxu0 0.0
    %2251 = vmatprep.mubr.f32.mxu0 0.0
    %2252 = vmatmul.mubr.f32.gmra.mxu0 %v1949
    %v2253 = vpop.f32.mrf.mxu0
    %v2254 = vadd.f32 0.0, %v2253
    %v2255 = vpop.f32.mrf.mxu0
    %v2256 = vadd.f32 0.0, %v2255
    %2257 = vdwg.mxu0
    %v2258 = vadd.f32 %v259, %v2183
    %v2259 = vadd.f32 %v261, %v2185
    %v2260 = vadd.f32 %v372, %v2254
    %v2261 = vadd.f32 %v374, %v2256
    %v2262 = vxor.u32 %v2258, 2147483648
    %v2263 = vxor.u32 %v2259, 2147483648
    %v2264 = vxor.u32 %v2260, 2147483648
    %v2265 = vmul.f32 %v2262, 1.442695
    %v2266 = vpow.pop %v2265
    %v2267 = vmul.f32 %v2263, 1.442695
    %v2268 = vpow.pop %v2267
    %v2269 = vmul.f32 %v2264, 1.442695
    %v2270 = vpow.pop %v2269
    %v2271 = vadd.f32 %v2266, 1.0
    %v2272 = vadd.f32 %v2268, 1.0
    %v2273 = vadd.f32 %v2270, 1.0
    %v2274 = vrcp.pop %v2271
    %v2275 = vmul.f32 1.0, %v2274
    %v2276 = vrcp.pop %v2272
    %v2277 = vmul.f32 1.0, %v2276
    %v2278 = vrcp.pop %v2273
    %v2279 = vmul.f32 1.0, %v2278
    %v2280 = vtanh.pop %v2261
    %v2281 = vmul.f32 %v2277, %v1947
    %v2282 = vmul.f32 %v2275, %v2280
    %v2283 = vadd.f32 %v2281, %v2282
    %v2284 = vtanh.pop %v2283
    %v2285 = vmul.f32 %v2279, %v2284
    %2286 = vmatprep.subr.mxu0 %v513
    %2287 = vmatpush1.msra.mxu0 %v512
    %2288 = vmatprep.subr.mxu0 %v509
    %2289 = vmatpush1.msra.mxu0 %v508
    %2290 = vmatprep.subr.mxu0 %v505
    %2291 = vmatpush1.msra.mxu0 %v504
    %2292 = vmatprep.subr.mxu0 %v501
    %2293 = vmatpush1.msra.mxu0 %v500
    %2294 = vmatprep.subr.mxu0 %v497
    %2295 = vmatpush1.msra.mxu0 %v496
    %2296 = vmatprep.subr.mxu0 %v493
    %2297 = vmatpush1.msra.mxu0 %v492
    %2298 = vmatprep.subr.mxu0 %v489
    %2299 = vmatpush1.msra.mxu0 %v488
    %2300 = vmatprep.subr.mxu0 %v485
    %2301 = vmatpush1.msra.mxu0 %v484
    %2302 = vmatprep.subr.mxu0 %v481
    %2303 = vmatpush1.msra.mxu0 %v480
    %2304 = vmatprep.subr.mxu0 %v477
    %2305 = vmatpush1.msra.mxu0 %v476
    %2306 = vmatprep.subr.mxu0 %v473
    %2307 = vmatpush1.msra.mxu0 %v472
    %2308 = vmatprep.subr.mxu0 %v469
    %2309 = vmatpush1.msra.mxu0 %v468
    %2310 = vmatprep.subr.mxu0 %v465
    %2311 = vmatpush1.msra.mxu0 %v464
    %2312 = vmatprep.subr.mxu0 %v461
    %2313 = vmatpush1.msra.mxu0 %v460
    %2314 = vmatprep.subr.mxu0 %v457
    %2315 = vmatpush1.msra.mxu0 %v456
    %2316 = vmatprep.subr.mxu0 %v453
    %2317 = vmatpush1.msra.mxu0 %v452
    %2318 = vmatprep.subr.mxu0 %v577
    %2319 = vmatpush2.msra.mxu0 %v576
    %2320 = vmatprep.subr.mxu0 %v573
    %2321 = vmatpush2.msra.mxu0 %v572
    %2322 = vmatprep.subr.mxu0 %v569
    %2323 = vmatpush2.msra.mxu0 %v568
    %2324 = vmatprep.subr.mxu0 %v565
    %2325 = vmatpush2.msra.mxu0 %v564
    %2326 = vmatprep.subr.mxu0 %v561
    %2327 = vmatpush2.msra.mxu0 %v560
    %2328 = vmatprep.subr.mxu0 %v557
    %2329 = vmatpush2.msra.mxu0 %v556
    %2330 = vmatprep.subr.mxu0 %v553
    %2331 = vmatpush2.msra.mxu0 %v552
    %2332 = vmatprep.subr.mxu0 %v549
    %2333 = vmatpush2.msra.mxu0 %v548
    %2334 = vmatprep.subr.mxu0 %v545
    %2335 = vmatpush2.msra.mxu0 %v544
    %2336 = vmatprep.subr.mxu0 %v541
    %2337 = vmatpush2.msra.mxu0 %v540
    %2338 = vmatprep.subr.mxu0 %v537
    %2339 = vmatpush2.msra.mxu0 %v536
    %2340 = vmatprep.subr.mxu0 %v533
    %2341 = vmatpush2.msra.mxu0 %v532
    %2342 = vmatprep.subr.mxu0 %v529
    %2343 = vmatpush2.msra.mxu0 %v528
    %2344 = vmatprep.subr.mxu0 %v525
    %2345 = vmatpush2.msra.mxu0 %v524
    %2346 = vmatprep.subr.mxu0 %v521
    %2347 = vmatpush2.msra.mxu0 %v520
    %2348 = vmatprep.subr.mxu0 %v517
    %2349 = vmatpush2.msra.mxu0 %v516
    %2350 = vmatprep.mubr.f32.mxu0 %v2115
    %2351 = vmatmul.mubr.f32.gmra.mxu0 %v1949
    %v2352 = vpop.f32.mrf.mxu0
    %v2353 = vadd.f32 %v585, %v2352
    %v2354 = vpop.f32.mrf.mxu0
    %v2355 = vadd.f32 %v589, %v2354
    %2356 = vdwg.mxu0
    %2357 = vmatprep.subr.mxu0 %v515
    %2358 = vmatpush1.msra.mxu0 %v514
    %2359 = vmatprep.subr.mxu0 %v511
    %2360 = vmatpush1.msra.mxu0 %v510
    %2361 = vmatprep.subr.mxu0 %v507
    %2362 = vmatpush1.msra.mxu0 %v506
    %2363 = vmatprep.subr.mxu0 %v503
    %2364 = vmatpush1.msra.mxu0 %v502
    %2365 = vmatprep.subr.mxu0 %v499
    %2366 = vmatpush1.msra.mxu0 %v498
    %2367 = vmatprep.subr.mxu0 %v495
    %2368 = vmatpush1.msra.mxu0 %v494
    %2369 = vmatprep.subr.mxu0 %v491
    %2370 = vmatpush1.msra.mxu0 %v490
    %2371 = vmatprep.subr.mxu0 %v487
    %2372 = vmatpush1.msra.mxu0 %v486
    %2373 = vmatprep.subr.mxu0 %v483
    %2374 = vmatpush1.msra.mxu0 %v482
    %2375 = vmatprep.subr.mxu0 %v479
    %2376 = vmatpush1.msra.mxu0 %v478
    %2377 = vmatprep.subr.mxu0 %v475
    %2378 = vmatpush1.msra.mxu0 %v474
    %2379 = vmatprep.subr.mxu0 %v471
    %2380 = vmatpush1.msra.mxu0 %v470
    %2381 = vmatprep.subr.mxu0 %v467
    %2382 = vmatpush1.msra.mxu0 %v466
    %2383 = vmatprep.subr.mxu0 %v463
    %2384 = vmatpush1.msra.mxu0 %v462
    %2385 = vmatprep.subr.mxu0 %v459
    %2386 = vmatpush1.msra.mxu0 %v458
    %2387 = vmatprep.subr.mxu0 %v455
    %2388 = vmatpush1.msra.mxu0 %v454
    %2389 = vmatprep.subr.mxu0 %v579
    %2390 = vmatpush2.msra.mxu0 %v578
    %2391 = vmatprep.subr.mxu0 %v575
    %2392 = vmatpush2.msra.mxu0 %v574
    %2393 = vmatprep.subr.mxu0 %v571
    %2394 = vmatpush2.msra.mxu0 %v570
    %2395 = vmatprep.subr.mxu0 %v567
    %2396 = vmatpush2.msra.mxu0 %v566
    %2397 = vmatprep.subr.mxu0 %v563
    %2398 = vmatpush2.msra.mxu0 %v562
    %2399 = vmatprep.subr.mxu0 %v559
    %2400 = vmatpush2.msra.mxu0 %v558
    %2401 = vmatprep.subr.mxu0 %v555
    %2402 = vmatpush2.msra.mxu0 %v554
    %2403 = vmatprep.subr.mxu0 %v551
    %2404 = vmatpush2.msra.mxu0 %v550
    %2405 = vmatprep.subr.mxu0 %v547
    %2406 = vmatpush2.msra.mxu0 %v546
    %2407 = vmatprep.subr.mxu0 %v543
    %2408 = vmatpush2.msra.mxu0 %v542
    %2409 = vmatprep.subr.mxu0 %v539
    %2410 = vmatpush2.msra.mxu0 %v538
    %2411 = vmatprep.subr.mxu0 %v535
    %2412 = vmatpush2.msra.mxu0 %v534
    %2413 = vmatprep.subr.mxu0 %v531
    %2414 = vmatpush2.msra.mxu0 %v530
    %2415 = vmatprep.subr.mxu0 %v527
    %2416 = vmatpush2.msra.mxu0 %v526
    %2417 = vmatprep.subr.mxu0 %v523
    %2418 = vmatpush2.msra.mxu0 %v522
    %2419 = vmatprep.subr.mxu0 %v519
    %2420 = vmatpush2.msra.mxu0 %v518
    %2421 = vmatprep.mubr.f32.mxu0 %v2115
    %2422 = vmatmul.mubr.f32.gmra.mxu0 %v1949
    %v2423 = vpop.f32.mrf.mxu0
    %v2424 = vadd.f32 %v593, %v2423
    %v2425 = vpop.f32.mrf.mxu0
    %v2426 = vadd.f32 %v597, %v2425
    %2427 = vdwg.mxu0
    %v2428 = vxor.u32 %v2353, 2147483648
    %v2429 = vxor.u32 %v2355, 2147483648
    %v2430 = vxor.u32 %v2424, 2147483648
    %v2431 = vmul.f32 %v2428, 1.442695
    %v2432 = vpow.pop %v2431
    %v2433 = vmul.f32 %v2429, 1.442695
    %v2434 = vpow.pop %v2433
    %v2435 = vmul.f32 %v2430, 1.442695
    %v2436 = vpow.pop %v2435
    %v2437 = vadd.f32 %v2432, 1.0
    %v2438 = vadd.f32 %v2434, 1.0
    %v2439 = vadd.f32 %v2436, 1.0
    %v2440 = vrcp.pop %v2437
    %v2441 = vmul.f32 1.0, %v2440
    %v2442 = vrcp.pop %v2438
    %v2443 = vmul.f32 1.0, %v2442
    %v2444 = vrcp.pop %v2439
    %v2445 = vmul.f32 1.0, %v2444
    %v2446 = vtanh.pop %v2426
    %v2447 = vmul.f32 %v2443, %v2113
    %v2448 = vmul.f32 %v2441, %v2446
    %v2449 = vadd.f32 %v2447, %v2448
    %v2450 = vtanh.pop %v2449
    %v2451 = vmul.f32 %v2445, %v2450
    %2452 = vmatprep.subr.mxu0 %v449
    %2453 = vmatpush1.msra.mxu0 %v448
    %2454 = vmatprep.subr.mxu0 %v445
    %2455 = vmatpush1.msra.mxu0 %v444
    %2456 = vmatprep.subr.mxu0 %v441
    %2457 = vmatpush1.msra.mxu0 %v440
    %2458 = vmatprep.subr.mxu0 %v437
    %2459 = vmatpush1.msra.mxu0 %v436
    %2460 = vmatprep.subr.mxu0 %v433
    %2461 = vmatpush1.msra.mxu0 %v432
    %2462 = vmatprep.subr.mxu0 %v429
    %2463 = vmatpush1.msra.mxu0 %v428
    %2464 = vmatprep.subr.mxu0 %v425
    %2465 = vmatpush1.msra.mxu0 %v424
    %2466 = vmatprep.subr.mxu0 %v421
    %2467 = vmatpush1.msra.mxu0 %v420
    %2468 = vmatprep.subr.mxu0 %v417
    %2469 = vmatpush1.msra.mxu0 %v416
    %2470 = vmatprep.subr.mxu0 %v413
    %2471 = vmatpush1.msra.mxu0 %v412
    %2472 = vmatprep.subr.mxu0 %v409
    %2473 = vmatpush1.msra.mxu0 %v408
    %2474 = vmatprep.subr.mxu0 %v405
    %2475 = vmatpush1.msra.mxu0 %v404
    %2476 = vmatprep.subr.mxu0 %v401
    %2477 = vmatpush1.msra.mxu0 %v400
    %2478 = vmatprep.subr.mxu0 %v397
    %2479 = vmatpush1.msra.mxu0 %v396
    %2480 = vmatprep.subr.mxu0 %v393
    %2481 = vmatpush1.msra.mxu0 %v392
    %2482 = vmatprep.subr.mxu0 %v389
    %2483 = vmatpush1.msra.mxu0 %v388
    %2484 = vmatprep.subr.mxu0 0.0
    %2485 = vmatpush2.msra.mxu0 0.0
    %2486 = vmatprep.subr.mxu0 0.0
    %2487 = vmatpush2.msra.mxu0 0.0
    %2488 = vmatprep.subr.mxu0 0.0
    %2489 = vmatpush2.msra.mxu0 0.0
    %2490 = vmatprep.subr.mxu0 0.0
    %2491 = vmatpush2.msra.mxu0 0.0
    %2492 = vmatprep.subr.mxu0 0.0
    %2493 = vmatpush2.msra.mxu0 0.0
    %2494 = vmatprep.subr.mxu0 0.0
    %2495 = vmatpush2.msra.mxu0 0.0
    %2496 = vmatprep.subr.mxu0 0.0
    %2497 = vmatpush2.msra.mxu0 0.0
    %2498 = vmatprep.subr.mxu0 0.0
    %2499 = vmatpush2.msra.mxu0 0.0
    %2500 = vmatprep.subr.mxu0 0.0
    %2501 = vmatpush2.msra.mxu0 0.0
    %2502 = vmatprep.subr.mxu0 0.0
    %2503 = vmatpush2.msra.mxu0 0.0
    %2504 = vmatprep.subr.mxu0 0.0
    %2505 = vmatpush2.msra.mxu0 0.0
    %2506 = vmatprep.subr.mxu0 0.0
    %2507 = vmatpush2.msra.mxu0 0.0
    %2508 = vmatprep.subr.mxu0 0.0
    %2509 = vmatpush2.msra.mxu0 0.0
    %2510 = vmatprep.subr.mxu0 0.0
    %2511 = vmatpush2.msra.mxu0 0.0
    %2512 = vmatprep.subr.mxu0 0.0
    %2513 = vmatpush2.msra.mxu0 0.0
    %2514 = vmatprep.subr.mxu0 0.0
    %2515 = vmatpush2.msra.mxu0 0.0
    %2516 = vmatprep.mubr.f32.mxu0 0.0
    %2517 = vmatmul.mubr.f32.gmra.mxu0 %v2285
    %v2518 = vpop.f32.mrf.mxu0
    %v2519 = vadd.f32 0.0, %v2518
    %v2520 = vpop.f32.mrf.mxu0
    %v2521 = vadd.f32 0.0, %v2520
    %2522 = vdwg.mxu0
    %2523 = vmatprep.subr.mxu0 %v451
    %2524 = vmatpush1.msra.mxu0 %v450
    %2525 = vmatprep.subr.mxu0 %v447
    %2526 = vmatpush1.msra.mxu0 %v446
    %2527 = vmatprep.subr.mxu0 %v443
    %2528 = vmatpush1.msra.mxu0 %v442
    %2529 = vmatprep.subr.mxu0 %v439
    %2530 = vmatpush1.msra.mxu0 %v438
    %2531 = vmatprep.subr.mxu0 %v435
    %2532 = vmatpush1.msra.mxu0 %v434
    %2533 = vmatprep.subr.mxu0 %v431
    %2534 = vmatpush1.msra.mxu0 %v430
    %2535 = vmatprep.subr.mxu0 %v427
    %2536 = vmatpush1.msra.mxu0 %v426
    %2537 = vmatprep.subr.mxu0 %v423
    %2538 = vmatpush1.msra.mxu0 %v422
    %2539 = vmatprep.subr.mxu0 %v419
    %2540 = vmatpush1.msra.mxu0 %v418
    %2541 = vmatprep.subr.mxu0 %v415
    %2542 = vmatpush1.msra.mxu0 %v414
    %2543 = vmatprep.subr.mxu0 %v411
    %2544 = vmatpush1.msra.mxu0 %v410
    %2545 = vmatprep.subr.mxu0 %v407
    %2546 = vmatpush1.msra.mxu0 %v406
    %2547 = vmatprep.subr.mxu0 %v403
    %2548 = vmatpush1.msra.mxu0 %v402
    %2549 = vmatprep.subr.mxu0 %v399
    %2550 = vmatpush1.msra.mxu0 %v398
    %2551 = vmatprep.subr.mxu0 %v395
    %2552 = vmatpush1.msra.mxu0 %v394
    %2553 = vmatprep.subr.mxu0 %v391
    %2554 = vmatpush1.msra.mxu0 %v390
    %2555 = vmatprep.subr.mxu0 0.0
    %2556 = vmatpush2.msra.mxu0 0.0
    %2557 = vmatprep.subr.mxu0 0.0
    %2558 = vmatpush2.msra.mxu0 0.0
    %2559 = vmatprep.subr.mxu0 0.0
    %2560 = vmatpush2.msra.mxu0 0.0
    %2561 = vmatprep.subr.mxu0 0.0
    %2562 = vmatpush2.msra.mxu0 0.0
    %2563 = vmatprep.subr.mxu0 0.0
    %2564 = vmatpush2.msra.mxu0 0.0
    %2565 = vmatprep.subr.mxu0 0.0
    %2566 = vmatpush2.msra.mxu0 0.0
    %2567 = vmatprep.subr.mxu0 0.0
    %2568 = vmatpush2.msra.mxu0 0.0
    %2569 = vmatprep.subr.mxu0 0.0
    %2570 = vmatpush2.msra.mxu0 0.0
    %2571 = vmatprep.subr.mxu0 0.0
    %2572 = vmatpush2.msra.mxu0 0.0
    %2573 = vmatprep.subr.mxu0 0.0
    %2574 = vmatpush2.msra.mxu0 0.0
    %2575 = vmatprep.subr.mxu0 0.0
    %2576 = vmatpush2.msra.mxu0 0.0
    %2577 = vmatprep.subr.mxu0 0.0
    %2578 = vmatpush2.msra.mxu0 0.0
    %2579 = vmatprep.subr.mxu0 0.0
    %2580 = vmatpush2.msra.mxu0 0.0
    %2581 = vmatprep.subr.mxu0 0.0
    %2582 = vmatpush2.msra.mxu0 0.0
    %2583 = vmatprep.subr.mxu0 0.0
    %2584 = vmatpush2.msra.mxu0 0.0
    %2585 = vmatprep.subr.mxu0 0.0
    %2586 = vmatpush2.msra.mxu0 0.0
    %2587 = vmatprep.mubr.f32.mxu0 0.0
    %2588 = vmatmul.mubr.f32.gmra.mxu0 %v2285
    %v2589 = vpop.f32.mrf.mxu0
    %v2590 = vadd.f32 0.0, %v2589
    %v2591 = vpop.f32.mrf.mxu0
    %v2592 = vadd.f32 0.0, %v2591
    %2593 = vdwg.mxu0
    %v2594 = vadd.f32 %v265, %v2519
    %v2595 = vadd.f32 %v267, %v2521
    %v2596 = vadd.f32 %v378, %v2590
    %v2597 = vadd.f32 %v380, %v2592
    %v2598 = vxor.u32 %v2594, 2147483648
    %v2599 = vxor.u32 %v2595, 2147483648
    %v2600 = vxor.u32 %v2596, 2147483648
    %v2601 = vmul.f32 %v2598, 1.442695
    %v2602 = vpow.pop %v2601
    %v2603 = vmul.f32 %v2599, 1.442695
    %v2604 = vpow.pop %v2603
    %v2605 = vmul.f32 %v2600, 1.442695
    %v2606 = vpow.pop %v2605
    %v2607 = vadd.f32 %v2602, 1.0
    %v2608 = vadd.f32 %v2604, 1.0
    %v2609 = vadd.f32 %v2606, 1.0
    %v2610 = vrcp.pop %v2607
    %v2611 = vmul.f32 1.0, %v2610
    %v2612 = vrcp.pop %v2608
    %v2613 = vmul.f32 1.0, %v2612
    %v2614 = vrcp.pop %v2609
    %v2615 = vmul.f32 1.0, %v2614
    %v2616 = vtanh.pop %v2597
    %v2617 = vmul.f32 %v2613, %v2283
    %v2618 = vmul.f32 %v2611, %v2616
    %v2619 = vadd.f32 %v2617, %v2618
    %v2620 = vtanh.pop %v2619
    %v2621 = vmul.f32 %v2615, %v2620
    %2622 = vmatprep.subr.mxu0 %v513
    %2623 = vmatpush1.msra.mxu0 %v512
    %2624 = vmatprep.subr.mxu0 %v509
    %2625 = vmatpush1.msra.mxu0 %v508
    %2626 = vmatprep.subr.mxu0 %v505
    %2627 = vmatpush1.msra.mxu0 %v504
    %2628 = vmatprep.subr.mxu0 %v501
    %2629 = vmatpush1.msra.mxu0 %v500
    %2630 = vmatprep.subr.mxu0 %v497
    %2631 = vmatpush1.msra.mxu0 %v496
    %2632 = vmatprep.subr.mxu0 %v493
    %2633 = vmatpush1.msra.mxu0 %v492
    %2634 = vmatprep.subr.mxu0 %v489
    %2635 = vmatpush1.msra.mxu0 %v488
    %2636 = vmatprep.subr.mxu0 %v485
    %2637 = vmatpush1.msra.mxu0 %v484
    %2638 = vmatprep.subr.mxu0 %v481
    %2639 = vmatpush1.msra.mxu0 %v480
    %2640 = vmatprep.subr.mxu0 %v477
    %2641 = vmatpush1.msra.mxu0 %v476
    %2642 = vmatprep.subr.mxu0 %v473
    %2643 = vmatpush1.msra.mxu0 %v472
    %2644 = vmatprep.subr.mxu0 %v469
    %2645 = vmatpush1.msra.mxu0 %v468
    %2646 = vmatprep.subr.mxu0 %v465
    %2647 = vmatpush1.msra.mxu0 %v464
    %2648 = vmatprep.subr.mxu0 %v461
    %2649 = vmatpush1.msra.mxu0 %v460
    %2650 = vmatprep.subr.mxu0 %v457
    %2651 = vmatpush1.msra.mxu0 %v456
    %2652 = vmatprep.subr.mxu0 %v453
    %2653 = vmatpush1.msra.mxu0 %v452
    %2654 = vmatprep.subr.mxu0 %v577
    %2655 = vmatpush2.msra.mxu0 %v576
    %2656 = vmatprep.subr.mxu0 %v573
    %2657 = vmatpush2.msra.mxu0 %v572
    %2658 = vmatprep.subr.mxu0 %v569
    %2659 = vmatpush2.msra.mxu0 %v568
    %2660 = vmatprep.subr.mxu0 %v565
    %2661 = vmatpush2.msra.mxu0 %v564
    %2662 = vmatprep.subr.mxu0 %v561
    %2663 = vmatpush2.msra.mxu0 %v560
    %2664 = vmatprep.subr.mxu0 %v557
    %2665 = vmatpush2.msra.mxu0 %v556
    %2666 = vmatprep.subr.mxu0 %v553
    %2667 = vmatpush2.msra.mxu0 %v552
    %2668 = vmatprep.subr.mxu0 %v549
    %2669 = vmatpush2.msra.mxu0 %v548
    %2670 = vmatprep.subr.mxu0 %v545
    %2671 = vmatpush2.msra.mxu0 %v544
    %2672 = vmatprep.subr.mxu0 %v541
    %2673 = vmatpush2.msra.mxu0 %v540
    %2674 = vmatprep.subr.mxu0 %v537
    %2675 = vmatpush2.msra.mxu0 %v536
    %2676 = vmatprep.subr.mxu0 %v533
    %2677 = vmatpush2.msra.mxu0 %v532
    %2678 = vmatprep.subr.mxu0 %v529
    %2679 = vmatpush2.msra.mxu0 %v528
    %2680 = vmatprep.subr.mxu0 %v525
    %2681 = vmatpush2.msra.mxu0 %v524
    %2682 = vmatprep.subr.mxu0 %v521
    %2683 = vmatpush2.msra.mxu0 %v520
    %2684 = vmatprep.subr.mxu0 %v517
    %2685 = vmatpush2.msra.mxu0 %v516
    %2686 = vmatprep.mubr.f32.mxu0 %v2451
    %2687 = vmatmul.mubr.f32.gmra.mxu0 %v2285
    %v2688 = vpop.f32.mrf.mxu0
    %v2689 = vadd.f32 %v585, %v2688
    %v2690 = vpop.f32.mrf.mxu0
    %v2691 = vadd.f32 %v589, %v2690
    %2692 = vdwg.mxu0
    %2693 = vmatprep.subr.mxu0 %v515
    %2694 = vmatpush1.msra.mxu0 %v514
    %2695 = vmatprep.subr.mxu0 %v511
    %2696 = vmatpush1.msra.mxu0 %v510
    %2697 = vmatprep.subr.mxu0 %v507
    %2698 = vmatpush1.msra.mxu0 %v506
    %2699 = vmatprep.subr.mxu0 %v503
    %2700 = vmatpush1.msra.mxu0 %v502
    %2701 = vmatprep.subr.mxu0 %v499
    %2702 = vmatpush1.msra.mxu0 %v498
    %2703 = vmatprep.subr.mxu0 %v495
    %2704 = vmatpush1.msra.mxu0 %v494
    %2705 = vmatprep.subr.mxu0 %v491
    %2706 = vmatpush1.msra.mxu0 %v490
    %2707 = vmatprep.subr.mxu0 %v487
    %2708 = vmatpush1.msra.mxu0 %v486
    %2709 = vmatprep.subr.mxu0 %v483
    %2710 = vmatpush1.msra.mxu0 %v482
    %2711 = vmatprep.subr.mxu0 %v479
    %2712 = vmatpush1.msra.mxu0 %v478
    %2713 = vmatprep.subr.mxu0 %v475
    %2714 = vmatpush1.msra.mxu0 %v474
    %2715 = vmatprep.subr.mxu0 %v471
    %2716 = vmatpush1.msra.mxu0 %v470
    %2717 = vmatprep.subr.mxu0 %v467
    %2718 = vmatpush1.msra.mxu0 %v466
    %2719 = vmatprep.subr.mxu0 %v463
    %2720 = vmatpush1.msra.mxu0 %v462
    %2721 = vmatprep.subr.mxu0 %v459
    %2722 = vmatpush1.msra.mxu0 %v458
    %2723 = vmatprep.subr.mxu0 %v455
    %2724 = vmatpush1.msra.mxu0 %v454
    %2725 = vmatprep.subr.mxu0 %v579
    %2726 = vmatpush2.msra.mxu0 %v578
    %2727 = vmatprep.subr.mxu0 %v575
    %2728 = vmatpush2.msra.mxu0 %v574
    %2729 = vmatprep.subr.mxu0 %v571
    %2730 = vmatpush2.msra.mxu0 %v570
    %2731 = vmatprep.subr.mxu0 %v567
    %2732 = vmatpush2.msra.mxu0 %v566
    %2733 = vmatprep.subr.mxu0 %v563
    %2734 = vmatpush2.msra.mxu0 %v562
    %2735 = vmatprep.subr.mxu0 %v559
    %2736 = vmatpush2.msra.mxu0 %v558
    %2737 = vmatprep.subr.mxu0 %v555
    %2738 = vmatpush2.msra.mxu0 %v554
    %2739 = vmatprep.subr.mxu0 %v551
    %2740 = vmatpush2.msra.mxu0 %v550
    %2741 = vmatprep.subr.mxu0 %v547
    %2742 = vmatpush2.msra.mxu0 %v546
    %2743 = vmatprep.subr.mxu0 %v543
    %2744 = vmatpush2.msra.mxu0 %v542
    %2745 = vmatprep.subr.mxu0 %v539
    %2746 = vmatpush2.msra.mxu0 %v538
    %2747 = vmatprep.subr.mxu0 %v535
    %2748 = vmatpush2.msra.mxu0 %v534
    %2749 = vmatprep.subr.mxu0 %v531
    %2750 = vmatpush2.msra.mxu0 %v530
    %2751 = vmatprep.subr.mxu0 %v527
    %2752 = vmatpush2.msra.mxu0 %v526
    %2753 = vmatprep.subr.mxu0 %v523
    %2754 = vmatpush2.msra.mxu0 %v522
    %2755 = vmatprep.subr.mxu0 %v519
    %2756 = vmatpush2.msra.mxu0 %v518
    %2757 = vmatprep.mubr.f32.mxu0 %v2451
    %2758 = vmatmul.mubr.f32.gmra.mxu0 %v2285
    %v2759 = vpop.f32.mrf.mxu0
    %v2760 = vadd.f32 %v593, %v2759
    %v2761 = vpop.f32.mrf.mxu0
    %v2762 = vadd.f32 %v597, %v2761
    %2763 = vdwg.mxu0
    %v2764 = vxor.u32 %v2689, 2147483648
    %v2765 = vxor.u32 %v2691, 2147483648
    %v2766 = vxor.u32 %v2760, 2147483648
    %v2767 = vmul.f32 %v2764, 1.442695
    %v2768 = vpow.pop %v2767
    %v2769 = vmul.f32 %v2765, 1.442695
    %v2770 = vpow.pop %v2769
    %v2771 = vmul.f32 %v2766, 1.442695
    %v2772 = vpow.pop %v2771
    %v2773 = vadd.f32 %v2768, 1.0
    %v2774 = vadd.f32 %v2770, 1.0
    %v2775 = vadd.f32 %v2772, 1.0
    %v2776 = vrcp.pop %v2773
    %v2777 = vmul.f32 1.0, %v2776
    %v2778 = vrcp.pop %v2774
    %v2779 = vmul.f32 1.0, %v2778
    %v2780 = vrcp.pop %v2775
    %v2781 = vmul.f32 1.0, %v2780
    %v2782 = vtanh.pop %v2762
    %v2783 = vmul.f32 %v2779, %v2449
    %v2784 = vmul.f32 %v2777, %v2782
    %v2785 = vadd.f32 %v2783, %v2784
    %v2786 = vtanh.pop %v2785
    %v2787 = vmul.f32 %v2781, %v2786
    %2788 = vmatprep.subr.mxu0 %v449
    %2789 = vmatpush1.msra.mxu0 %v448
    %2790 = vmatprep.subr.mxu0 %v445
    %2791 = vmatpush1.msra.mxu0 %v444
    %2792 = vmatprep.subr.mxu0 %v441
    %2793 = vmatpush1.msra.mxu0 %v440
    %2794 = vmatprep.subr.mxu0 %v437
    %2795 = vmatpush1.msra.mxu0 %v436
    %2796 = vmatprep.subr.mxu0 %v433
    %2797 = vmatpush1.msra.mxu0 %v432
    %2798 = vmatprep.subr.mxu0 %v429
    %2799 = vmatpush1.msra.mxu0 %v428
    %2800 = vmatprep.subr.mxu0 %v425
    %2801 = vmatpush1.msra.mxu0 %v424
    %2802 = vmatprep.subr.mxu0 %v421
    %2803 = vmatpush1.msra.mxu0 %v420
    %2804 = vmatprep.subr.mxu0 %v417
    %2805 = vmatpush1.msra.mxu0 %v416
    %2806 = vmatprep.subr.mxu0 %v413
    %2807 = vmatpush1.msra.mxu0 %v412
    %2808 = vmatprep.subr.mxu0 %v409
    %2809 = vmatpush1.msra.mxu0 %v408
    %2810 = vmatprep.subr.mxu0 %v405
    %2811 = vmatpush1.msra.mxu0 %v404
    %2812 = vmatprep.subr.mxu0 %v401
    %2813 = vmatpush1.msra.mxu0 %v400
    %2814 = vmatprep.subr.mxu0 %v397
    %2815 = vmatpush1.msra.mxu0 %v396
    %2816 = vmatprep.subr.mxu0 %v393
    %2817 = vmatpush1.msra.mxu0 %v392
    %2818 = vmatprep.subr.mxu0 %v389
    %2819 = vmatpush1.msra.mxu0 %v388
    %2820 = vmatprep.subr.mxu0 0.0
    %2821 = vmatpush2.msra.mxu0 0.0
    %2822 = vmatprep.subr.mxu0 0.0
    %2823 = vmatpush2.msra.mxu0 0.0
    %2824 = vmatprep.subr.mxu0 0.0
    %2825 = vmatpush2.msra.mxu0 0.0
    %2826 = vmatprep.subr.mxu0 0.0
    %2827 = vmatpush2.msra.mxu0 0.0
    %2828 = vmatprep.subr.mxu0 0.0
    %2829 = vmatpush2.msra.mxu0 0.0
    %2830 = vmatprep.subr.mxu0 0.0
    %2831 = vmatpush2.msra.mxu0 0.0
    %2832 = vmatprep.subr.mxu0 0.0
    %2833 = vmatpush2.msra.mxu0 0.0
    %2834 = vmatprep.subr.mxu0 0.0
    %2835 = vmatpush2.msra.mxu0 0.0
    %2836 = vmatprep.subr.mxu0 0.0
    %2837 = vmatpush2.msra.mxu0 0.0
    %2838 = vmatprep.subr.mxu0 0.0
    %2839 = vmatpush2.msra.mxu0 0.0
    %2840 = vmatprep.subr.mxu0 0.0
    %2841 = vmatpush2.msra.mxu0 0.0
    %2842 = vmatprep.subr.mxu0 0.0
    %2843 = vmatpush2.msra.mxu0 0.0
    %2844 = vmatprep.subr.mxu0 0.0
    %2845 = vmatpush2.msra.mxu0 0.0
    %2846 = vmatprep.subr.mxu0 0.0
    %2847 = vmatpush2.msra.mxu0 0.0
    %2848 = vmatprep.subr.mxu0 0.0
    %2849 = vmatpush2.msra.mxu0 0.0
    %2850 = vmatprep.subr.mxu0 0.0
    %2851 = vmatpush2.msra.mxu0 0.0
    %2852 = vmatprep.mubr.f32.mxu0 0.0
    %2853 = vmatmul.mubr.f32.gmra.mxu0 %v2621
    %v2854 = vpop.f32.mrf.mxu0
    %v2855 = vadd.f32 0.0, %v2854
    %v2856 = vpop.f32.mrf.mxu0
    %v2857 = vadd.f32 0.0, %v2856
    %2858 = vdwg.mxu0
    %2859 = vmatprep.subr.mxu0 %v451
    %2860 = vmatpush1.msra.mxu0 %v450
    %2861 = vmatprep.subr.mxu0 %v447
    %2862 = vmatpush1.msra.mxu0 %v446
    %2863 = vmatprep.subr.mxu0 %v443
    %2864 = vmatpush1.msra.mxu0 %v442
    %2865 = vmatprep.subr.mxu0 %v439
    %2866 = vmatpush1.msra.mxu0 %v438
    %2867 = vmatprep.subr.mxu0 %v435
    %2868 = vmatpush1.msra.mxu0 %v434
    %2869 = vmatprep.subr.mxu0 %v431
    %2870 = vmatpush1.msra.mxu0 %v430
    %2871 = vmatprep.subr.mxu0 %v427
    %2872 = vmatpush1.msra.mxu0 %v426
    %2873 = vmatprep.subr.mxu0 %v423
    %2874 = vmatpush1.msra.mxu0 %v422
    %2875 = vmatprep.subr.mxu0 %v419
    %2876 = vmatpush1.msra.mxu0 %v418
    %2877 = vmatprep.subr.mxu0 %v415
    %2878 = vmatpush1.msra.mxu0 %v414
    %2879 = vmatprep.subr.mxu0 %v411
    %2880 = vmatpush1.msra.mxu0 %v410
    %2881 = vmatprep.subr.mxu0 %v407
    %2882 = vmatpush1.msra.mxu0 %v406
    %2883 = vmatprep.subr.mxu0 %v403
    %2884 = vmatpush1.msra.mxu0 %v402
    %2885 = vmatprep.subr.mxu0 %v399
    %2886 = vmatpush1.msra.mxu0 %v398
    %2887 = vmatprep.subr.mxu0 %v395
    %2888 = vmatpush1.msra.mxu0 %v394
    %2889 = vmatprep.subr.mxu0 %v391
    %2890 = vmatpush1.msra.mxu0 %v390
    %2891 = vmatprep.subr.mxu0 0.0
    %2892 = vmatpush2.msra.mxu0 0.0
    %2893 = vmatprep.subr.mxu0 0.0
    %2894 = vmatpush2.msra.mxu0 0.0
    %2895 = vmatprep.subr.mxu0 0.0
    %2896 = vmatpush2.msra.mxu0 0.0
    %2897 = vmatprep.subr.mxu0 0.0
    %2898 = vmatpush2.msra.mxu0 0.0
    %2899 = vmatprep.subr.mxu0 0.0
    %2900 = vmatpush2.msra.mxu0 0.0
    %2901 = vmatprep.subr.mxu0 0.0
    %2902 = vmatpush2.msra.mxu0 0.0
    %2903 = vmatprep.subr.mxu0 0.0
    %2904 = vmatpush2.msra.mxu0 0.0
    %2905 = vmatprep.subr.mxu0 0.0
    %2906 = vmatpush2.msra.mxu0 0.0
    %2907 = vmatprep.subr.mxu0 0.0
    %2908 = vmatpush2.msra.mxu0 0.0
    %2909 = vmatprep.subr.mxu0 0.0
    %2910 = vmatpush2.msra.mxu0 0.0
    %2911 = vmatprep.subr.mxu0 0.0
    %2912 = vmatpush2.msra.mxu0 0.0
    %2913 = vmatprep.subr.mxu0 0.0
    %2914 = vmatpush2.msra.mxu0 0.0
    %2915 = vmatprep.subr.mxu0 0.0
    %2916 = vmatpush2.msra.mxu0 0.0
    %2917 = vmatprep.subr.mxu0 0.0
    %2918 = vmatpush2.msra.mxu0 0.0
    %2919 = vmatprep.subr.mxu0 0.0
    %2920 = vmatpush2.msra.mxu0 0.0
    %2921 = vmatprep.subr.mxu0 0.0
    %2922 = vmatpush2.msra.mxu0 0.0
    %2923 = vmatprep.mubr.f32.mxu0 0.0
    %2924 = vmatmul.mubr.f32.gmra.mxu0 %v2621
    %v2925 = vpop.f32.mrf.mxu0
    %v2926 = vadd.f32 0.0, %v2925
    %v2927 = vpop.f32.mrf.mxu0
    %v2928 = vadd.f32 0.0, %v2927
    %2929 = vdwg.mxu0
    %v2930 = vadd.f32 %v271, %v2855
    %v2931 = vadd.f32 %v273, %v2857
    %v2932 = vadd.f32 %v384, %v2926
    %v2933 = vadd.f32 %v386, %v2928
    %v2934 = vxor.u32 %v2930, 2147483648
    %v2935 = vxor.u32 %v2931, 2147483648
    %v2936 = vxor.u32 %v2932, 2147483648
    %v2937 = vmul.f32 %v2934, 1.442695
    %v2938 = vpow.pop %v2937
    %v2939 = vmul.f32 %v2935, 1.442695
    %v2940 = vpow.pop %v2939
    %v2941 = vmul.f32 %v2936, 1.442695
    %v2942 = vpow.pop %v2941
    %v2943 = vadd.f32 %v2938, 1.0
    %v2944 = vadd.f32 %v2940, 1.0
    %v2945 = vadd.f32 %v2942, 1.0
    %v2946 = vrcp.pop %v2943
    %v2947 = vmul.f32 1.0, %v2946
    %v2948 = vrcp.pop %v2944
    %v2949 = vmul.f32 1.0, %v2948
    %v2950 = vrcp.pop %v2945
    %v2951 = vmul.f32 1.0, %v2950
    %v2952 = vtanh.pop %v2933
    %v2953 = vmul.f32 %v2949, %v2619
    %v2954 = vmul.f32 %v2947, %v2952
    %v2955 = vadd.f32 %v2953, %v2954
    %v2956 = vtanh.pop %v2955
    %v2957 = vmul.f32 %v2951, %v2956
    %2958 = vmatprep.subr.mxu0 %v513
    %2959 = vmatpush1.msra.mxu0 %v512
    %2960 = vmatprep.subr.mxu0 %v509
    %2961 = vmatpush1.msra.mxu0 %v508
    %2962 = vmatprep.subr.mxu0 %v505
    %2963 = vmatpush1.msra.mxu0 %v504
    %2964 = vmatprep.subr.mxu0 %v501
    %2965 = vmatpush1.msra.mxu0 %v500
    %2966 = vmatprep.subr.mxu0 %v497
    %2967 = vmatpush1.msra.mxu0 %v496
    %2968 = vmatprep.subr.mxu0 %v493
    %2969 = vmatpush1.msra.mxu0 %v492
    %2970 = vmatprep.subr.mxu0 %v489
    %2971 = vmatpush1.msra.mxu0 %v488
    %2972 = vmatprep.subr.mxu0 %v485
    %2973 = vmatpush1.msra.mxu0 %v484
    %2974 = vmatprep.subr.mxu0 %v481
    %2975 = vmatpush1.msra.mxu0 %v480
    %2976 = vmatprep.subr.mxu0 %v477
    %2977 = vmatpush1.msra.mxu0 %v476
    %2978 = vmatprep.subr.mxu0 %v473
    %2979 = vmatpush1.msra.mxu0 %v472
    %2980 = vmatprep.subr.mxu0 %v469
    %2981 = vmatpush1.msra.mxu0 %v468
    %2982 = vmatprep.subr.mxu0 %v465
    %2983 = vmatpush1.msra.mxu0 %v464
    %2984 = vmatprep.subr.mxu0 %v461
    %2985 = vmatpush1.msra.mxu0 %v460
    %2986 = vmatprep.subr.mxu0 %v457
    %2987 = vmatpush1.msra.mxu0 %v456
    %2988 = vmatprep.subr.mxu0 %v453
    %2989 = vmatpush1.msra.mxu0 %v452
    %2990 = vmatprep.subr.mxu0 %v577
    %2991 = vmatpush2.msra.mxu0 %v576
    %2992 = vmatprep.subr.mxu0 %v573
    %2993 = vmatpush2.msra.mxu0 %v572
    %2994 = vmatprep.subr.mxu0 %v569
    %2995 = vmatpush2.msra.mxu0 %v568
    %2996 = vmatprep.subr.mxu0 %v565
    %2997 = vmatpush2.msra.mxu0 %v564
    %2998 = vmatprep.subr.mxu0 %v561
    %2999 = vmatpush2.msra.mxu0 %v560
    %3000 = vmatprep.subr.mxu0 %v557
    %3001 = vmatpush2.msra.mxu0 %v556
    %3002 = vmatprep.subr.mxu0 %v553
    %3003 = vmatpush2.msra.mxu0 %v552
    %3004 = vmatprep.subr.mxu0 %v549
    %3005 = vmatpush2.msra.mxu0 %v548
    %3006 = vmatprep.subr.mxu0 %v545
    %3007 = vmatpush2.msra.mxu0 %v544
    %3008 = vmatprep.subr.mxu0 %v541
    %3009 = vmatpush2.msra.mxu0 %v540
    %3010 = vmatprep.subr.mxu0 %v537
    %3011 = vmatpush2.msra.mxu0 %v536
    %3012 = vmatprep.subr.mxu0 %v533
    %3013 = vmatpush2.msra.mxu0 %v532
    %3014 = vmatprep.subr.mxu0 %v529
    %3015 = vmatpush2.msra.mxu0 %v528
    %3016 = vmatprep.subr.mxu0 %v525
    %3017 = vmatpush2.msra.mxu0 %v524
    %3018 = vmatprep.subr.mxu0 %v521
    %3019 = vmatpush2.msra.mxu0 %v520
    %3020 = vmatprep.subr.mxu0 %v517
    %3021 = vmatpush2.msra.mxu0 %v516
    %3022 = vmatprep.mubr.f32.mxu0 %v2787
    %3023 = vmatmul.mubr.f32.gmra.mxu0 %v2621
    %v3024 = vpop.f32.mrf.mxu0
    %v3025 = vadd.f32 %v585, %v3024
    %v3026 = vpop.f32.mrf.mxu0
    %v3027 = vadd.f32 %v589, %v3026
    %3028 = vdwg.mxu0
    %3029 = vmatprep.subr.mxu0 %v515
    %3030 = vmatpush1.msra.mxu0 %v514
    %3031 = vmatprep.subr.mxu0 %v511
    %3032 = vmatpush1.msra.mxu0 %v510
    %3033 = vmatprep.subr.mxu0 %v507
    %3034 = vmatpush1.msra.mxu0 %v506
    %3035 = vmatprep.subr.mxu0 %v503
    %3036 = vmatpush1.msra.mxu0 %v502
    %3037 = vmatprep.subr.mxu0 %v499
    %3038 = vmatpush1.msra.mxu0 %v498
    %3039 = vmatprep.subr.mxu0 %v495
    %3040 = vmatpush1.msra.mxu0 %v494
    %3041 = vmatprep.subr.mxu0 %v491
    %3042 = vmatpush1.msra.mxu0 %v490
    %3043 = vmatprep.subr.mxu0 %v487
    %3044 = vmatpush1.msra.mxu0 %v486
    %3045 = vmatprep.subr.mxu0 %v483
    %3046 = vmatpush1.msra.mxu0 %v482
    %3047 = vmatprep.subr.mxu0 %v479
    %3048 = vmatpush1.msra.mxu0 %v478
    %3049 = vmatprep.subr.mxu0 %v475
    %3050 = vmatpush1.msra.mxu0 %v474
    %3051 = vmatprep.subr.mxu0 %v471
    %3052 = vmatpush1.msra.mxu0 %v470
    %3053 = vmatprep.subr.mxu0 %v467
    %3054 = vmatpush1.msra.mxu0 %v466
    %3055 = vmatprep.subr.mxu0 %v463
    %3056 = vmatpush1.msra.mxu0 %v462
    %3057 = vmatprep.subr.mxu0 %v459
    %3058 = vmatpush1.msra.mxu0 %v458
    %3059 = vmatprep.subr.mxu0 %v455
    %3060 = vmatpush1.msra.mxu0 %v454
    %3061 = vmatprep.subr.mxu0 %v579
    %3062 = vmatpush2.msra.mxu0 %v578
    %3063 = vmatprep.subr.mxu0 %v575
    %3064 = vmatpush2.msra.mxu0 %v574
    %3065 = vmatprep.subr.mxu0 %v571
    %3066 = vmatpush2.msra.mxu0 %v570
    %3067 = vmatprep.subr.mxu0 %v567
    %3068 = vmatpush2.msra.mxu0 %v566
    %3069 = vmatprep.subr.mxu0 %v563
    %3070 = vmatpush2.msra.mxu0 %v562
    %3071 = vmatprep.subr.mxu0 %v559
    %3072 = vmatpush2.msra.mxu0 %v558
    %3073 = vmatprep.subr.mxu0 %v555
    %3074 = vmatpush2.msra.mxu0 %v554
    %3075 = vmatprep.subr.mxu0 %v551
    %3076 = vmatpush2.msra.mxu0 %v550
    %3077 = vmatprep.subr.mxu0 %v547
    %3078 = vmatpush2.msra.mxu0 %v546
    %3079 = vmatprep.subr.mxu0 %v543
    %3080 = vmatpush2.msra.mxu0 %v542
    %3081 = vmatprep.subr.mxu0 %v539
    %3082 = vmatpush2.msra.mxu0 %v538
    %3083 = vmatprep.subr.mxu0 %v535
    %3084 = vmatpush2.msra.mxu0 %v534
    %3085 = vmatprep.subr.mxu0 %v531
    %3086 = vmatpush2.msra.mxu0 %v530
    %3087 = vmatprep.subr.mxu0 %v527
    %3088 = vmatpush2.msra.mxu0 %v526
    %3089 = vmatprep.subr.mxu0 %v523
    %3090 = vmatpush2.msra.mxu0 %v522
    %3091 = vmatprep.subr.mxu0 %v519
    %3092 = vmatpush2.msra.mxu0 %v518
    %3093 = vmatprep.mubr.f32.mxu0 %v2787
    %3094 = vmatmul.mubr.f32.gmra.mxu0 %v2621
    %v3095 = vpop.f32.mrf.mxu0
    %v3096 = vadd.f32 %v593, %v3095
    %v3097 = vpop.f32.mrf.mxu0
    %v3098 = vadd.f32 %v597, %v3097
    %3099 = vdwg.mxu0
    %v3100 = vxor.u32 %v3025, 2147483648
    %v3101 = vxor.u32 %v3027, 2147483648
    %v3102 = vxor.u32 %v3096, 2147483648
    %v3103 = vmul.f32 %v3100, 1.442695
    %v3104 = vpow.pop %v3103
    %v3105 = vmul.f32 %v3101, 1.442695
    %v3106 = vpow.pop %v3105
    %v3107 = vmul.f32 %v3102, 1.442695
    %v3108 = vpow.pop %v3107
    %v3109 = vadd.f32 %v3104, 1.0
    %v3110 = vadd.f32 %v3106, 1.0
    %v3111 = vadd.f32 %v3108, 1.0
    %v3112 = vrcp.pop %v3109
    %v3113 = vmul.f32 1.0, %v3112
    %v3114 = vrcp.pop %v3110
    %v3115 = vmul.f32 1.0, %v3114
    %v3116 = vrcp.pop %v3111
    %v3117 = vmul.f32 1.0, %v3116
    %v3118 = vtanh.pop %v3098
    %v3119 = vmul.f32 %v3115, %v2785
    %v3120 = vmul.f32 %v3113, %v3118
    %v3121 = vadd.f32 %v3119, %v3120
    %v3122 = vtanh.pop %v3121
    %v3123 = vmul.f32 %v3117, %v3122
    %3124 = vmatprep.subr.mxu0 %v513
    %3125 = vmatpush1.msra.mxu0 %v512
    %3126 = vmatprep.subr.mxu0 %v509
    %3127 = vmatpush1.msra.mxu0 %v508
    %3128 = vmatprep.subr.mxu0 %v505
    %3129 = vmatpush1.msra.mxu0 %v504
    %3130 = vmatprep.subr.mxu0 %v501
    %3131 = vmatpush1.msra.mxu0 %v500
    %3132 = vmatprep.subr.mxu0 %v497
    %3133 = vmatpush1.msra.mxu0 %v496
    %3134 = vmatprep.subr.mxu0 %v493
    %3135 = vmatpush1.msra.mxu0 %v492
    %3136 = vmatprep.subr.mxu0 %v489
    %3137 = vmatpush1.msra.mxu0 %v488
    %3138 = vmatprep.subr.mxu0 %v485
    %3139 = vmatpush1.msra.mxu0 %v484
    %3140 = vmatprep.subr.mxu0 %v481
    %3141 = vmatpush1.msra.mxu0 %v480
    %3142 = vmatprep.subr.mxu0 %v477
    %3143 = vmatpush1.msra.mxu0 %v476
    %3144 = vmatprep.subr.mxu0 %v473
    %3145 = vmatpush1.msra.mxu0 %v472
    %3146 = vmatprep.subr.mxu0 %v469
    %3147 = vmatpush1.msra.mxu0 %v468
    %3148 = vmatprep.subr.mxu0 %v465
    %3149 = vmatpush1.msra.mxu0 %v464
    %3150 = vmatprep.subr.mxu0 %v461
    %3151 = vmatpush1.msra.mxu0 %v460
    %3152 = vmatprep.subr.mxu0 %v457
    %3153 = vmatpush1.msra.mxu0 %v456
    %3154 = vmatprep.subr.mxu0 %v453
    %3155 = vmatpush1.msra.mxu0 %v452
    %3156 = vmatprep.subr.mxu0 %v577
    %3157 = vmatpush2.msra.mxu0 %v576
    %3158 = vmatprep.subr.mxu0 %v573
    %3159 = vmatpush2.msra.mxu0 %v572
    %3160 = vmatprep.subr.mxu0 %v569
    %3161 = vmatpush2.msra.mxu0 %v568
    %3162 = vmatprep.subr.mxu0 %v565
    %3163 = vmatpush2.msra.mxu0 %v564
    %3164 = vmatprep.subr.mxu0 %v561
    %3165 = vmatpush2.msra.mxu0 %v560
    %3166 = vmatprep.subr.mxu0 %v557
    %3167 = vmatpush2.msra.mxu0 %v556
    %3168 = vmatprep.subr.mxu0 %v553
    %3169 = vmatpush2.msra.mxu0 %v552
    %3170 = vmatprep.subr.mxu0 %v549
    %3171 = vmatpush2.msra.mxu0 %v548
    %3172 = vmatprep.subr.mxu0 %v545
    %3173 = vmatpush2.msra.mxu0 %v544
    %3174 = vmatprep.subr.mxu0 %v541
    %3175 = vmatpush2.msra.mxu0 %v540
    %3176 = vmatprep.subr.mxu0 %v537
    %3177 = vmatpush2.msra.mxu0 %v536
    %3178 = vmatprep.subr.mxu0 %v533
    %3179 = vmatpush2.msra.mxu0 %v532
    %3180 = vmatprep.subr.mxu0 %v529
    %3181 = vmatpush2.msra.mxu0 %v528
    %3182 = vmatprep.subr.mxu0 %v525
    %3183 = vmatpush2.msra.mxu0 %v524
    %3184 = vmatprep.subr.mxu0 %v521
    %3185 = vmatpush2.msra.mxu0 %v520
    %3186 = vmatprep.subr.mxu0 %v517
    %3187 = vmatpush2.msra.mxu0 %v516
    %3188 = vmatprep.mubr.f32.mxu0 %v3123
    %3189 = vmatmul.mubr.f32.gmra.mxu0 %v2957
    %v3190 = vpop.f32.mrf.mxu0
    %v3191 = vadd.f32 %v585, %v3190
    %v3192 = vpop.f32.mrf.mxu0
    %v3193 = vadd.f32 %v589, %v3192
    %3194 = vdwg.mxu0
    %3195 = vmatprep.subr.mxu0 %v515
    %3196 = vmatpush1.msra.mxu0 %v514
    %3197 = vmatprep.subr.mxu0 %v511
    %3198 = vmatpush1.msra.mxu0 %v510
    %3199 = vmatprep.subr.mxu0 %v507
    %3200 = vmatpush1.msra.mxu0 %v506
    %3201 = vmatprep.subr.mxu0 %v503
    %3202 = vmatpush1.msra.mxu0 %v502
    %3203 = vmatprep.subr.mxu0 %v499
    %3204 = vmatpush1.msra.mxu0 %v498
    %3205 = vmatprep.subr.mxu0 %v495
    %3206 = vmatpush1.msra.mxu0 %v494
    %3207 = vmatprep.subr.mxu0 %v491
    %3208 = vmatpush1.msra.mxu0 %v490
    %3209 = vmatprep.subr.mxu0 %v487
    %3210 = vmatpush1.msra.mxu0 %v486
    %3211 = vmatprep.subr.mxu0 %v483
    %3212 = vmatpush1.msra.mxu0 %v482
    %3213 = vmatprep.subr.mxu0 %v479
    %3214 = vmatpush1.msra.mxu0 %v478
    %3215 = vmatprep.subr.mxu0 %v475
    %3216 = vmatpush1.msra.mxu0 %v474
    %3217 = vmatprep.subr.mxu0 %v471
    %3218 = vmatpush1.msra.mxu0 %v470
    %3219 = vmatprep.subr.mxu0 %v467
    %3220 = vmatpush1.msra.mxu0 %v466
    %3221 = vmatprep.subr.mxu0 %v463
    %3222 = vmatpush1.msra.mxu0 %v462
    %3223 = vmatprep.subr.mxu0 %v459
    %3224 = vmatpush1.msra.mxu0 %v458
    %3225 = vmatprep.subr.mxu0 %v455
    %3226 = vmatpush1.msra.mxu0 %v454
    %3227 = vmatprep.subr.mxu0 %v579
    %3228 = vmatpush2.msra.mxu0 %v578
    %3229 = vmatprep.subr.mxu0 %v575
    %3230 = vmatpush2.msra.mxu0 %v574
    %3231 = vmatprep.subr.mxu0 %v571
    %3232 = vmatpush2.msra.mxu0 %v570
    %3233 = vmatprep.subr.mxu0 %v567
    %3234 = vmatpush2.msra.mxu0 %v566
    %3235 = vmatprep.subr.mxu0 %v563
    %3236 = vmatpush2.msra.mxu0 %v562
    %3237 = vmatprep.subr.mxu0 %v559
    %3238 = vmatpush2.msra.mxu0 %v558
    %3239 = vmatprep.subr.mxu0 %v555
    %3240 = vmatpush2.msra.mxu0 %v554
    %3241 = vmatprep.subr.mxu0 %v551
    %3242 = vmatpush2.msra.mxu0 %v550
    %3243 = vmatprep.subr.mxu0 %v547
    %3244 = vmatpush2.msra.mxu0 %v546
    %3245 = vmatprep.subr.mxu0 %v543
    %3246 = vmatpush2.msra.mxu0 %v542
    %3247 = vmatprep.subr.mxu0 %v539
    %3248 = vmatpush2.msra.mxu0 %v538
    %3249 = vmatprep.subr.mxu0 %v535
    %3250 = vmatpush2.msra.mxu0 %v534
    %3251 = vmatprep.subr.mxu0 %v531
    %3252 = vmatpush2.msra.mxu0 %v530
    %3253 = vmatprep.subr.mxu0 %v527
    %3254 = vmatpush2.msra.mxu0 %v526
    %3255 = vmatprep.subr.mxu0 %v523
    %3256 = vmatpush2.msra.mxu0 %v522
    %3257 = vmatprep.subr.mxu0 %v519
    %3258 = vmatpush2.msra.mxu0 %v518
    %3259 = vmatprep.mubr.f32.mxu0 %v3123
    %3260 = vmatmul.mubr.f32.gmra.mxu0 %v2957
    %v3261 = vpop.f32.mrf.mxu0
    %v3262 = vadd.f32 %v593, %v3261
    %v3263 = vpop.f32.mrf.mxu0
    %v3264 = vadd.f32 %v597, %v3263
    %3265 = vdwg.mxu0
    %v3266 = vxor.u32 %v3191, 2147483648
    %v3267 = vxor.u32 %v3193, 2147483648
    %v3268 = vxor.u32 %v3262, 2147483648
    %v3269 = vmul.f32 %v3266, 1.442695
    %v3270 = vpow.pop %v3269
    %v3271 = vmul.f32 %v3267, 1.442695
    %v3272 = vpow.pop %v3271
    %v3273 = vmul.f32 %v3268, 1.442695
    %v3274 = vpow.pop %v3273
    %v3275 = vadd.f32 %v3270, 1.0
    %v3276 = vadd.f32 %v3272, 1.0
    %v3277 = vadd.f32 %v3274, 1.0
    %v3278 = vrcp.pop %v3275
    %v3279 = vmul.f32 1.0, %v3278
    %v3280 = vrcp.pop %v3276
    %v3281 = vmul.f32 1.0, %v3280
    %v3282 = vrcp.pop %v3277
    %v3283 = vmul.f32 1.0, %v3282
    %v3284 = vtanh.pop %v3264
    %v3285 = vmul.f32 %v3281, %v3121
    %v3286 = vmul.f32 %v3279, %v3284
    %v3287 = vadd.f32 %v3285, %v3286
    %v3288 = vtanh.pop %v3287
    %v3289 = vmul.f32 %v3283, %v3288
    %v3290 = vmax.f32 %v1107, 0.0
    %v3291 = vmax.f32 %v1443, 0.0
    %v3292 = vmax.f32 %v1779, 0.0
    %v3293 = vmax.f32 %v2115, 0.0
    %v3294 = vmax.f32 %v2451, 0.0
    %v3295 = vmax.f32 %v2787, 0.0
    %v3296 = vmax.f32 %v3123, 0.0
    %v3297 = vmax.f32 %v3289, 0.0
    %v3298 = vld [vmem:[#allocation7] sm:$0xff]
    %v3299 = vld [vmem:[#allocation7 + $0x8] sm:$0xff]
    %v3300 = vld [vmem:[#allocation7 + $0x10] sm:$0xff]
    %v3301 = vld [vmem:[#allocation7 + $0x18] sm:$0xff]
    %v3302 = vld [vmem:[#allocation7 + $0x20] sm:$0xff]
    %v3303 = vld [vmem:[#allocation7 + $0x28] sm:$0xff]
    %v3304 = vld [vmem:[#allocation7 + $0x30] sm:$0xff]
    %v3305 = vld [vmem:[#allocation7 + $0x38] sm:$0xff]
    %v3306 = vld [vmem:[#allocation7 + $0x40] sm:$0xff]
    %v3307 = vld [vmem:[#allocation7 + $0x48] sm:$0xff]
    %v3308 = vld [vmem:[#allocation7 + $0x50] sm:$0xff]
    %v3309 = vld [vmem:[#allocation7 + $0x58] sm:$0xff]
    %v3310 = vld [vmem:[#allocation7 + $0x60] sm:$0xff]
    %v3311 = vld [vmem:[#allocation7 + $0x68] sm:$0xff]
    %v3312 = vld [vmem:[#allocation7 + $0x70] sm:$0xff]
    %v3313 = vld [vmem:[#allocation7 + $0x78] sm:$0xff]
    %v3314 = vld [vmem:[%s7] sm:$0x1]
    %v3316 = vlaneseq
    %v3317 = vshrl.u32 %v3316, 7
    %v3318 = vsub.s32 0, %v3317
    %v3319 = vrot.slane %v3314, %v3318
    %3321 = vmatprep.subr.mxu0 0.0
    %3322 = vmatpush1.msra.mxu0 %v3313
    %3323 = vmatprep.subr.mxu0 0.0
    %3324 = vmatpush1.msra.mxu0 %v3312
    %3325 = vmatprep.subr.mxu0 0.0
    %3326 = vmatpush1.msra.mxu0 %v3311
    %3327 = vmatprep.subr.mxu0 0.0
    %3328 = vmatpush1.msra.mxu0 %v3310
    %3329 = vmatprep.subr.mxu0 0.0
    %3330 = vmatpush1.msra.mxu0 %v3309
    %3331 = vmatprep.subr.mxu0 0.0
    %3332 = vmatpush1.msra.mxu0 %v3308
    %3333 = vmatprep.subr.mxu0 0.0
    %3334 = vmatpush1.msra.mxu0 %v3307
    %3335 = vmatprep.subr.mxu0 0.0
    %3336 = vmatpush1.msra.mxu0 %v3306
    %3337 = vmatprep.subr.mxu0 0.0
    %3338 = vmatpush1.msra.mxu0 %v3305
    %3339 = vmatprep.subr.mxu0 0.0
    %3340 = vmatpush1.msra.mxu0 %v3304
    %3341 = vmatprep.subr.mxu0 0.0
    %3342 = vmatpush1.msra.mxu0 %v3303
    %3343 = vmatprep.subr.mxu0 0.0
    %3344 = vmatpush1.msra.mxu0 %v3302
    %3345 = vmatprep.subr.mxu0 0.0
    %3346 = vmatpush1.msra.mxu0 %v3301
    %3347 = vmatprep.subr.mxu0 0.0
    %3348 = vmatpush1.msra.mxu0 %v3300
    %3349 = vmatprep.subr.mxu0 0.0
    %3350 = vmatpush1.msra.mxu0 %v3299
    %3351 = vmatprep.subr.mxu0 0.0
    %3352 = vmatpush1.msra.mxu0 %v3298
    %3353 = vmatprep.subr.mxu0 0.0
    %3354 = vmatpush2.msra.mxu0 0.0
    %3355 = vmatprep.subr.mxu0 0.0
    %3356 = vmatpush2.msra.mxu0 0.0
    %3357 = vmatprep.subr.mxu0 0.0
    %3358 = vmatpush2.msra.mxu0 0.0
    %3359 = vmatprep.subr.mxu0 0.0
    %3360 = vmatpush2.msra.mxu0 0.0
    %3361 = vmatprep.subr.mxu0 0.0
    %3362 = vmatpush2.msra.mxu0 0.0
    %3363 = vmatprep.subr.mxu0 0.0
    %3364 = vmatpush2.msra.mxu0 0.0
    %3365 = vmatprep.subr.mxu0 0.0
    %3366 = vmatpush2.msra.mxu0 0.0
    %3367 = vmatprep.subr.mxu0 0.0
    %3368 = vmatpush2.msra.mxu0 0.0
    %3369 = vmatprep.subr.mxu0 0.0
    %3370 = vmatpush2.msra.mxu0 0.0
    %3371 = vmatprep.subr.mxu0 0.0
    %3372 = vmatpush2.msra.mxu0 0.0
    %3373 = vmatprep.subr.mxu0 0.0
    %3374 = vmatpush2.msra.mxu0 0.0
    %3375 = vmatprep.subr.mxu0 0.0
    %3376 = vmatpush2.msra.mxu0 0.0
    %3377 = vmatprep.subr.mxu0 0.0
    %3378 = vmatpush2.msra.mxu0 0.0
    %3379 = vmatprep.subr.mxu0 0.0
    %3380 = vmatpush2.msra.mxu0 0.0
    %3381 = vmatprep.subr.mxu0 0.0
    %3382 = vmatpush2.msra.mxu0 0.0
    %3383 = vmatprep.subr.mxu0 0.0
    %3384 = vmatpush2.msra.mxu0 0.0
    %3385 = vmatprep.mubr.f32.mxu0 0.0
    %3386 = vmatmul.mubr.f32.gmra.mxu0 %v3290
    %v3387 = vpop.f32.mrf.mxu0
    %v3388 = vadd.f32 %v3319, %v3387
    %v3389 = vpop.f32.mrf.mxu0
    %3390 = vmatprep.mubr.f32.mxu0 0.0
    %3391 = vmatmul.mubr.f32.gmra.mxu0 %v3291
    %v3392 = vpop.f32.mrf.mxu0
    %v3393 = vadd.f32 %v3319, %v3392
    %v3394 = vpop.f32.mrf.mxu0
    %3395 = vmatprep.mubr.f32.mxu0 0.0
    %3396 = vmatmul.mubr.f32.gmra.mxu0 %v3292
    %v3397 = vpop.f32.mrf.mxu0
    %v3398 = vadd.f32 %v3319, %v3397
    %v3399 = vpop.f32.mrf.mxu0
    %3400 = vmatprep.mubr.f32.mxu0 0.0
    %3401 = vmatmul.mubr.f32.gmra.mxu0 %v3293
    %v3402 = vpop.f32.mrf.mxu0
    %v3403 = vadd.f32 %v3319, %v3402
    %v3404 = vpop.f32.mrf.mxu0
    %3405 = vmatprep.mubr.f32.mxu0 0.0
    %3406 = vmatmul.mubr.f32.gmra.mxu0 %v3294
    %v3407 = vpop.f32.mrf.mxu0
    %v3408 = vadd.f32 %v3319, %v3407
    %v3409 = vpop.f32.mrf.mxu0
    %3410 = vmatprep.mubr.f32.mxu0 0.0
    %3411 = vmatmul.mubr.f32.gmra.mxu0 %v3295
    %v3412 = vpop.f32.mrf.mxu0
    %v3413 = vadd.f32 %v3319, %v3412
    %v3414 = vpop.f32.mrf.mxu0
    %3415 = vmatprep.mubr.f32.mxu0 0.0
    %3416 = vmatmul.mubr.f32.gmra.mxu0 %v3296
    %v3417 = vpop.f32.mrf.mxu0
    %v3418 = vadd.f32 %v3319, %v3417
    %v3419 = vpop.f32.mrf.mxu0
    %3420 = vmatprep.mubr.f32.mxu0 0.0
    %3421 = vmatmul.mubr.f32.gmra.mxu0 %v3297
    %v3422 = vpop.f32.mrf.mxu0
    %v3423 = vadd.f32 %v3319, %v3422
    %v3424 = vpop.f32.mrf.mxu0
    %3425 = vdwg.mxu0
    %v3426 = vmax.f32 %v3388, 0.0
    %v3427 = vmax.f32 %v3393, 0.0
    %v3428 = vmax.f32 %v3398, 0.0
    %v3429 = vmax.f32 %v3403, 0.0
    %v3430 = vmax.f32 %v3408, 0.0
    %v3431 = vmax.f32 %v3413, 0.0
    %v3432 = vmax.f32 %v3418, 0.0
    %v3433 = vmax.f32 %v3423, 0.0
    %v3434 = vld [vmem:[#allocation8] sm:$0xff]
    %v3435 = vld [vmem:[#allocation8 + $0x8] sm:$0xff]
    %v3436 = vld [vmem:[#allocation8 + $0x10] sm:$0xff]
    %v3437 = vld [vmem:[#allocation8 + $0x18] sm:$0xff]
    %v3438 = vld [vmem:[#allocation8 + $0x20] sm:$0xff]
    %v3439 = vld [vmem:[#allocation8 + $0x28] sm:$0xff]
    %v3440 = vld [vmem:[#allocation8 + $0x30] sm:$0xff]
    %v3441 = vld [vmem:[#allocation8 + $0x38] sm:$0xff]
    %v3442 = vld [vmem:[#allocation8 + $0x40] sm:$0xff]
    %v3443 = vld [vmem:[#allocation8 + $0x48] sm:$0xff]
    %v3444 = vld [vmem:[#allocation8 + $0x50] sm:$0xff]
    %v3445 = vld [vmem:[#allocation8 + $0x58] sm:$0xff]
    %v3446 = vld [vmem:[#allocation8 + $0x60] sm:$0xff]
    %v3447 = vld [vmem:[#allocation8 + $0x68] sm:$0xff]
    %v3448 = vld [vmem:[#allocation8 + $0x70] sm:$0xff]
    %v3449 = vld [vmem:[#allocation8 + $0x78] sm:$0xff]
    %v3450 = vld [vmem:[#allocation2] sm:$0x1]
    %v3452 = vlaneseq
    %v3453 = vshrl.u32 %v3452, 7
    %v3454 = vsub.s32 0, %v3453
    %v3455 = vrot.slane %v3450, %v3454
    %3456 = vset.pattern.permute.xlu0 0
    %3457 = vperm.xlu0 %3456, %v3455
    %v3458 = vpop.permute.xlu0 %3457
    %3460 = vmatprep.subr.mxu0 0.0
    %3461 = vmatpush1.msra.mxu0 %v3449
    %3462 = vmatprep.subr.mxu0 0.0
    %3463 = vmatpush1.msra.mxu0 %v3448
    %3464 = vmatprep.subr.mxu0 0.0
    %3465 = vmatpush1.msra.mxu0 %v3447
    %3466 = vmatprep.subr.mxu0 0.0
    %3467 = vmatpush1.msra.mxu0 %v3446
    %3468 = vmatprep.subr.mxu0 0.0
    %3469 = vmatpush1.msra.mxu0 %v3445
    %3470 = vmatprep.subr.mxu0 0.0
    %3471 = vmatpush1.msra.mxu0 %v3444
    %3472 = vmatprep.subr.mxu0 0.0
    %3473 = vmatpush1.msra.mxu0 %v3443
    %3474 = vmatprep.subr.mxu0 0.0
    %3475 = vmatpush1.msra.mxu0 %v3442
    %3476 = vmatprep.subr.mxu0 0.0
    %3477 = vmatpush1.msra.mxu0 %v3441
    %3478 = vmatprep.subr.mxu0 0.0
    %3479 = vmatpush1.msra.mxu0 %v3440
    %3480 = vmatprep.subr.mxu0 0.0
    %3481 = vmatpush1.msra.mxu0 %v3439
    %3482 = vmatprep.subr.mxu0 0.0
    %3483 = vmatpush1.msra.mxu0 %v3438
    %3484 = vmatprep.subr.mxu0 0.0
    %3485 = vmatpush1.msra.mxu0 %v3437
    %3486 = vmatprep.subr.mxu0 0.0
    %3487 = vmatpush1.msra.mxu0 %v3436
    %3488 = vmatprep.subr.mxu0 0.0
    %3489 = vmatpush1.msra.mxu0 %v3435
    %3490 = vmatprep.subr.mxu0 0.0
    %3491 = vmatpush1.msra.mxu0 %v3434
    %3492 = vmatprep.subr.mxu0 0.0
    %3493 = vmatpush2.msra.mxu0 0.0
    %3494 = vmatprep.subr.mxu0 0.0
    %3495 = vmatpush2.msra.mxu0 0.0
    %3496 = vmatprep.subr.mxu0 0.0
    %3497 = vmatpush2.msra.mxu0 0.0
    %3498 = vmatprep.subr.mxu0 0.0
    %3499 = vmatpush2.msra.mxu0 0.0
    %3500 = vmatprep.subr.mxu0 0.0
    %3501 = vmatpush2.msra.mxu0 0.0
    %3502 = vmatprep.subr.mxu0 0.0
    %3503 = vmatpush2.msra.mxu0 0.0
    %3504 = vmatprep.subr.mxu0 0.0
    %3505 = vmatpush2.msra.mxu0 0.0
    %3506 = vmatprep.subr.mxu0 0.0
    %3507 = vmatpush2.msra.mxu0 0.0
    %3508 = vmatprep.subr.mxu0 0.0
    %3509 = vmatpush2.msra.mxu0 0.0
    %3510 = vmatprep.subr.mxu0 0.0
    %3511 = vmatpush2.msra.mxu0 0.0
    %3512 = vmatprep.subr.mxu0 0.0
    %3513 = vmatpush2.msra.mxu0 0.0
    %3514 = vmatprep.subr.mxu0 0.0
    %3515 = vmatpush2.msra.mxu0 0.0
    %3516 = vmatprep.subr.mxu0 0.0
    %3517 = vmatpush2.msra.mxu0 0.0
    %3518 = vmatprep.subr.mxu0 0.0
    %3519 = vmatpush2.msra.mxu0 0.0
    %3520 = vmatprep.subr.mxu0 0.0
    %3521 = vmatpush2.msra.mxu0 0.0
    %3522 = vmatprep.subr.mxu0 0.0
    %3523 = vmatpush2.msra.mxu0 0.0
    %3524 = vmatprep.mubr.f32.mxu0 0.0
    %3525 = vmatmul.mubr.f32.gmra.mxu0 %v3426
    %v3526 = vpop.f32.mrf.mxu0
    %v3527 = vadd.f32 %v3458, %v3526
    %v3528 = vpop.f32.mrf.mxu0
    %3529 = vmatprep.mubr.f32.mxu0 0.0
    %3530 = vmatmul.mubr.f32.gmra.mxu0 %v3427
    %v3531 = vpop.f32.mrf.mxu0
    %v3532 = vadd.f32 %v3458, %v3531
    %v3533 = vpop.f32.mrf.mxu0
    %3534 = vmatprep.mubr.f32.mxu0 0.0
    %3535 = vmatmul.mubr.f32.gmra.mxu0 %v3428
    %v3536 = vpop.f32.mrf.mxu0
    %v3537 = vadd.f32 %v3458, %v3536
    %v3538 = vpop.f32.mrf.mxu0
    %3539 = vmatprep.mubr.f32.mxu0 0.0
    %3540 = vmatmul.mubr.f32.gmra.mxu0 %v3429
    %v3541 = vpop.f32.mrf.mxu0
    %v3542 = vadd.f32 %v3458, %v3541
    %v3543 = vpop.f32.mrf.mxu0
    %3544 = vmatprep.mubr.f32.mxu0 0.0
    %3545 = vmatmul.mubr.f32.gmra.mxu0 %v3430
    %v3546 = vpop.f32.mrf.mxu0
    %v3547 = vadd.f32 %v3458, %v3546
    %v3548 = vpop.f32.mrf.mxu0
    %3549 = vmatprep.mubr.f32.mxu0 0.0
    %3550 = vmatmul.mubr.f32.gmra.mxu0 %v3431
    %v3551 = vpop.f32.mrf.mxu0
    %v3552 = vadd.f32 %v3458, %v3551
    %v3553 = vpop.f32.mrf.mxu0
    %3554 = vmatprep.mubr.f32.mxu0 0.0
    %3555 = vmatmul.mubr.f32.gmra.mxu0 %v3432
    %v3556 = vpop.f32.mrf.mxu0
    %v3557 = vadd.f32 %v3458, %v3556
    %v3558 = vpop.f32.mrf.mxu0
    %3559 = vmatprep.mubr.f32.mxu0 0.0
    %3560 = vmatmul.mubr.f32.gmra.mxu0 %v3433
    %v3561 = vpop.f32.mrf.mxu0
    %v3562 = vadd.f32 %v3458, %v3561
    %v3563 = vpop.f32.mrf.mxu0
    %3564 = vdwg.mxu0
    %3565 = vst [vmem:[%s10] sm:$0xff] %v3527
    %3566 = vst [vmem:[%s10 + $0x8] sm:$0xff] %v3532
    %3567 = vst [vmem:[%s10 + $0x10] sm:$0xff] %v3537
    %3568 = vst [vmem:[%s10 + $0x18] sm:$0xff] %v3542
    %3569 = vst [vmem:[%s10 + $0x20] sm:$0xff] %v3547
    %3570 = vst [vmem:[%s10 + $0x28] sm:$0xff] %v3552
    %3571 = vst [vmem:[%s10 + $0x30] sm:$0xff] %v3557
    %3572 = vst [vmem:[%s10 + $0x38] sm:$0xff] %v3562
    // Predicated region
    $region58: #{netz_forward.1} parent=1 // pred_check
      _
    $region59: #{netz_forward.1} parent=1 // pred_check_branch
      %3574 = sbr.rel (0) target = $region61
    $region60: #{netz_forward.1} parent=1 // pred_region
      _
    $region61: #{netz_forward.1} parent=1 // pred_fallthru
      _
    // Predicated region
    $region62: #{netz_forward.1} parent=1 // pred_check
      _
    $region63: #{netz_forward.1} parent=1 // pred_check_branch
      %3576 = sbr.rel (0) target = $region65
    $region64: #{netz_forward.1} parent=1 // pred_region
      _
    $region65: #{netz_forward.1} parent=1 // pred_fallthru
      _
    %3577 = vsyncpa [#allocation4], 1
    %3578 = vsyncpa [#allocation6], 1
    %3579 = vsyncpa [#allocation9], 1

</llo_original>
